<compile_context>
chip_gen: v5e
topology: v5e:2x2
jax: 0.10.0
libtpu: 0.0.40
codegen_flags: <defaults>
</compile_context>

<pallas_src>
import functools

import jax
import jax.numpy as jnp
from jax import lax
from jax.experimental import pallas as pl
from jax.experimental.pallas import tpu as pltpu

LANE = 128


def _round_up(x, m):
    return (x + m - 1) // m * m


def _pad_last(a, target):
    pad = target - a.shape[-1]
    if pad == 0:
        return a
    cfg = [(0, 0)] * (a.ndim - 1) + [(0, pad)]
    return jnp.pad(a, cfg)


def _vmem_limit_bytes():
    # 128 MiB physical on v5e/v6e, 64 MiB on v7x: use most of it (leave
    # headroom) instead of pinning the 32 MiB scoped default.
    try:
        cap = getattr(pltpu.get_tpu_info(), "vmem_capacity_bytes", None)
        if cap:
            return int(min(cap - (16 << 20), 100 << 20))
    except Exception:
        pass
    return 64 << 20


def _pick_tile_h(H, tile_h):
    # Largest divisor of H that is <= tile_h (keeps the matmul M dimension
    # large on v6e/v7x; on v7x also keep N*nh >= #TensorCores for megacore).
    th = min(tile_h, H)
    while H % th:
        th -= 1
    return th


# ----------------------------------------------------------------------------
# Stage 1: atrous separable conv via 9 merged-weight MXU matmuls.
# Output is stored in a halo'd slab layout (N, nh, TH+2, Ws, Cout): each H-tile
# carries one extra row above/below and one extra column left/right so stage 2
# can read purely Blocked tiles; out-of-image halo entries are stored as zero.
# Also emits per-tile BatchNorm partial sums over the (TH, W) core pixels.
# ----------------------------------------------------------------------------
def _sepconv_to_slab_kernel(xpad_ref, wm_ref, slab_ref, stats_ref,
                            *, rate, TH, W, Ws):
    h = pl.program_id(1)
    nh = pl.num_programs(1)
    row0 = h * TH
    Cin = xpad_ref.shape[-1]
    Cout = wm_ref.shape[-1]
    THs = TH + 2
    Mrows = THs * Ws

    def tap(k):
        kh, kw = divmod(k, 3)
        patch = xpad_ref[0, pl.ds(row0 + kh * rate, THs),
                         kw * rate:kw * rate + Ws, :]
        return jnp.dot(patch.reshape(Mrows, Cin), wm_ref[k],
                       preferred_element_type=jnp.float32)

    acc = tap(0)                       # init with first tap (no zeros + add)
    for k in range(1, 9):
        acc = acc + tap(k)
    out = acc.reshape(THs, Ws, Cout)

    # Zero the out-of-image halo (slab row 0 only for the first tile, slab row
    # TH+1 only for the last tile, slab columns 0 / >= W+1 always).
    r = lax.broadcasted_iota(jnp.int32, (THs, Ws, 1), 0)
    c = lax.broadcasted_iota(jnp.int32, (THs, Ws, 1), 1)
    row_ok = jnp.logical_and(jnp.logical_or(r > 0, h > 0),
                             jnp.logical_or(r < TH + 1, h < nh - 1))
    col_ok = jnp.logical_and(c >= 1, c <= W)
    out = jnp.where(jnp.logical_and(row_ok, col_ok), out, 0.0)

    slab_ref[...] = out.reshape(1, 1, THs, Ws, Cout).astype(slab_ref.dtype)

    # BN partial stats over the core pixels only (each image pixel counted once).
    # NOTE: E[x^2]-E[x]^2 in f32; activations here are O(1)-ish so cancellation
    # is benign.
    core = out[1:TH + 1, 1:W + 1, :]
    stats_ref[0, 0, 0:1, :] = jnp.sum(core, axis=(0, 1)).reshape(1, Cout)
    stats_ref[0, 0, 1:2, :] = jnp.sum(core * core, axis=(0, 1)).reshape(1, Cout)


def sepconv_to_slab(xpad, wm, *, rate, H, W, TH, Ws, out_dtype):
    N, Hp2, Wp2, Cin = xpad.shape
    Cout = wm.shape[-1]
    nh = H // TH
    THs = TH + 2
    kern = functools.partial(_sepconv_to_slab_kernel, rate=rate, TH=TH, W=W,
                             Ws=Ws)
    return pl.pallas_call(
        kern,
        out_shape=(
            jax.ShapeDtypeStruct((N, nh, THs, Ws, Cout), out_dtype),
            jax.ShapeDtypeStruct((N, nh, 2, Cout), jnp.float32),
        ),
        grid=(N, nh),
        in_specs=[
            # TODO(synk): for very large feature maps on v7x (64 MiB VMEM) the
            # per-image padded block should become an H-halo tile (pl.Element
            # on H or a manual DMA double buffer); not needed at ASPP sizes.
            pl.BlockSpec((1, Hp2, Wp2, Cin), lambda n, h: (n, 0, 0, 0)),
            pl.BlockSpec((9, Cin, Cout), lambda n, h: (0, 0, 0)),
        ],
        out_specs=(
            pl.BlockSpec((1, 1, THs, Ws, Cout), lambda n, h: (n, h, 0, 0, 0)),
            pl.BlockSpec((1, 1, 2, Cout), lambda n, h: (n, h, 0, 0)),
        ),
        compiler_params=pltpu.CompilerParams(
            dimension_semantics=("parallel", "parallel"),
            vmem_limit_bytes=_vmem_limit_bytes()),
    )(xpad, wm)


# ----------------------------------------------------------------------------
# Stage 2: BN1 (scale/shift + out-of-image halo masking) fused into the conv1
# separable conv (again 9 merged-weight MXU matmuls), plus BN2 partial stats.
# Consumes stage 1's halo'd slab layout directly -- no bn_apply / jnp.pad HBM
# round trip between the two separable convs.
# ----------------------------------------------------------------------------
def _sepconv_from_slab_kernel(slab_ref, wm_ref, scale_ref, shift_ref,
                              y_ref, stats_ref, *, TH, W, Ws):
    h = pl.program_id(1)
    nh = pl.num_programs(1)
    Cin = slab_ref.shape[-1]
    Cout = wm_ref.shape[-1]
    THs = TH + 2

    # Apply BN1 to the slab, then re-zero the out-of-image halo (scale*0+shift
    # would otherwise leak `shift` into the zero padding of conv1).
    x = slab_ref[0, 0].astype(jnp.float32)                 # (THs, Ws, Cin)
    xb = x * scale_ref[...].reshape(1, 1, Cin) + shift_ref[...].reshape(1, 1, Cin)
    r = lax.broadcasted_iota(jnp.int32, (THs, Ws, 1), 0)
    c = lax.broadcasted_iota(jnp.int32, (THs, Ws, 1), 1)
    row_ok = jnp.logical_and(jnp.logical_or(r > 0, h > 0),
                             jnp.logical_or(r < TH + 1, h < nh - 1))
    col_ok = jnp.logical_and(c >= 1, c <= W)
    xb = jnp.where(jnp.logical_and(row_ok, col_ok), xb, 0.0)
    xb = xb.astype(wm_ref.dtype)

    def tap(k):
        kh, kw = divmod(k, 3)
        p = xb[kh:kh + TH, kw:kw + W, :].reshape(TH * W, Cin)
        return jnp.dot(p, wm_ref[k], preferred_element_type=jnp.float32)

    acc = tap(0)
    for k in range(1, 9):
        acc = acc + tap(k)                                  # (TH*W, Cout) f32

    y_ref[...] = acc.reshape(1, TH, W, Cout).astype(y_ref.dtype)
    stats_ref[0, 0, 0:1, :] = jnp.sum(acc, axis=0).reshape(1, Cout)
    stats_ref[0, 0, 1:2, :] = jnp.sum(acc * acc, axis=0).reshape(1, Cout)


def sepconv_from_slab(slab, wm, scale, shift, *, H, W, TH, Ws, out_dtype):
    N, nh, THs, _, Cin = slab.shape
    Cout = wm.shape[-1]
    kern = functools.partial(_sepconv_from_slab_kernel, TH=TH, W=W, Ws=Ws)
    return pl.pallas_call(
        kern,
        out_shape=(
            jax.ShapeDtypeStruct((N, H, W, Cout), out_dtype),
            jax.ShapeDtypeStruct((N, nh, 2, Cout), jnp.float32),
        ),
        grid=(N, nh),
        in_specs=[
            pl.BlockSpec((1, 1, THs, Ws, Cin), lambda n, h: (n, h, 0, 0, 0)),
            pl.BlockSpec((9, Cin, Cout), lambda n, h: (0, 0, 0)),
            pl.BlockSpec((1, Cin), lambda n, h: (0, 0)),
            pl.BlockSpec((1, Cin), lambda n, h: (0, 0)),
        ],
        out_specs=(
            pl.BlockSpec((1, TH, W, Cout), lambda n, h: (n, h, 0, 0)),
            pl.BlockSpec((1, 1, 2, Cout), lambda n, h: (n, h, 0, 0)),
        ),
        compiler_params=pltpu.CompilerParams(
            dimension_semantics=("parallel", "parallel"),
            vmem_limit_bytes=_vmem_limit_bytes()),
    )(slab, wm, scale, shift)


# ----------------------------------------------------------------------------
# Final BatchNorm apply + ReLU (tiled over N and H, lane-dense stores).
# ----------------------------------------------------------------------------
def _bn_relu_kernel(y_ref, scale_ref, shift_ref, o_ref):
    y = y_ref[...].astype(jnp.float32)
    sc = scale_ref[...].reshape(1, 1, 1, -1)
    sh = shift_ref[...].reshape(1, 1, 1, -1)
    o_ref[...] = jnp.maximum(y * sc + sh, 0.0).astype(o_ref.dtype)


def bn_relu(y, scale, shift, *, TH, out_dtype):
    N, H, W, C = y.shape
    nh = H // TH
    return pl.pallas_call(
        _bn_relu_kernel,
        out_shape=jax.ShapeDtypeStruct((N, H, W, C), out_dtype),
        grid=(N, nh),
        in_specs=[
            pl.BlockSpec((1, TH, W, C), lambda n, h: (n, h, 0, 0)),
            pl.BlockSpec((1, C), lambda n, h: (0, 0)),
            pl.BlockSpec((1, C), lambda n, h: (0, 0)),
        ],
        out_specs=pl.BlockSpec((1, TH, W, C), lambda n, h: (n, h, 0, 0)),
        compiler_params=pltpu.CompilerParams(
            dimension_semantics=("parallel", "parallel"),
            vmem_limit_bytes=_vmem_limit_bytes()),
    )(y, scale, shift)


def _bn_scale_shift(stats, gamma, beta, M, Cp, eps):
    """Tiny plain-JAX reduction of per-tile partial sums -> BN scale/shift."""
    s = stats.sum(axis=(0, 1))                    # (2, Cp) f32
    mean = s[0] / M
    var = jnp.maximum(s[1] / M - mean * mean, 0.0)
    g = _pad_last(gamma.astype(jnp.float32), Cp)
    b = _pad_last(beta.astype(jnp.float32), Cp)
    scale = g * jax.lax.rsqrt(var + eps)
    shift = b - mean * scale
    return scale.reshape(1, Cp), shift.reshape(1, Cp)


# ----------------------------------------------------------------------------
# ASPP forward (rate != 1 branch), NCHW in / NCHW out like PyTorch.
# ----------------------------------------------------------------------------
def aspp_forward(x_nchw, params, rate, compute_dtype=jnp.bfloat16,
                 eps=1e-5, tile_h=32):
    assert rate > 1, "this kernel implements the rate != 1 branch of ASPP"
    N, Cin, H, W = x_nchw.shape
    planes = params["atrous_pw"].shape[1]
    Cp_in = _round_up(Cin, LANE)
    Cp = _round_up(planes, LANE)
    TH = _pick_tile_h(H, tile_h)
    Ws = _round_up(W + 2, 8)          # sublane-aligned slab width (1px halo)
    P = rate + 1                      # dilation halo + 1 extra slab row/col
    Hp2 = H + 2 * P
    Wp2 = Ws + 2 * rate
    M = N * H * W

    # NCHW -> NHWC, lane-pad channels, single zero-pad for the dilated conv.
    x = jnp.transpose(x_nchw, (0, 2, 3, 1)).astype(compute_dtype)
    x = _pad_last(x, Cp_in)
    xpad = jnp.pad(x, ((0, 0), (P, P), (P, Wp2 - W - P), (0, 0)))

    # Merged depthwise*pointwise weights (9, Cin, Cout): the whole separable
    # conv becomes 9 shifted-patch MXU matmuls (computed once, host-side).
    wm_a = params["atrous_dw"][:, :, None] * params["atrous_pw"][None, :, :]
    wm_a = jnp.pad(wm_a, ((0, 0), (0, Cp_in - wm_a.shape[1]),
                          (0, Cp - wm_a.shape[2]))).astype(compute_dtype)
    wm_1 = params["conv1_dw"][:, :, None] * params["conv1_pw"][None, :, :]
    wm_1 = jnp.pad(wm_1, ((0, 0), (0, Cp - wm_1.shape[1]),
                          (0, Cp - wm_1.shape[2]))).astype(compute_dtype)

    # Stage 1: atrous sepconv -> halo'd slab layout + BN partial stats.
    slab1, st1 = sepconv_to_slab(xpad, wm_a, rate=rate, H=H, W=W, TH=TH,
                                 Ws=Ws, out_dtype=compute_dtype)
    scale1, shift1 = _bn_scale_shift(st1, params["bn_gamma"],
                                     params["bn_beta"], M, Cp, eps)

    # Stage 2: BN1 fused into conv1 sepconv + BN partial stats (no bn_apply /
    # padded intermediate between the two convs).
    y2, st2 = sepconv_from_slab(slab1, wm_1, scale1, shift1, H=H, W=W, TH=TH,
                                Ws=Ws, out_dtype=compute_dtype)
    scale2, shift2 = _bn_scale_shift(st2, params["bn1_gamma"],
                                     params["bn1_beta"], M, Cp, eps)

    out = bn_relu(y2, scale2, shift2, TH=TH, out_dtype=x_nchw.dtype)
    out = out[:, :, :, :planes]                   # drop lane padding
    return jnp.transpose(out, (0, 3, 1, 2))


# ----------------------------------------------------------------------------
# Deterministic parameter init (kaiming-normal style; BN weight=1, bias=0).
# Depthwise weights stored as (9, C) [tap-major], pointwise as (Cin, Cout).
# ----------------------------------------------------------------------------
def init_params(key, inplanes, planes):
    k = jax.random.split(key, 4)
    std_dw = (2.0 / 9.0) ** 0.5                   # fan_in = 1*3*3
    std_pw_a = (2.0 / inplanes) ** 0.5
    std_pw_c = (2.0 / planes) ** 0.5
    return {
        "atrous_dw": jax.random.normal(k[0], (9, inplanes), jnp.float32) * std_dw,
        "atrous_pw": jax.random.normal(k[1], (inplanes, planes), jnp.float32) * std_pw_a,
        "conv1_dw": jax.random.normal(k[2], (9, planes), jnp.float32) * std_dw,
        "conv1_pw": jax.random.normal(k[3], (planes, planes), jnp.float32) * std_pw_c,
        "bn_gamma": jnp.ones((planes,), jnp.float32),
        "bn_beta": jnp.zeros((planes,), jnp.float32),
        "bn1_gamma": jnp.ones((planes,), jnp.float32),
        "bn1_beta": jnp.zeros((planes,), jnp.float32),
    }


# ----------------------------------------------------------------------------
# Plain-JAX reference (lax convs, f32) for a correctness check of the kernels.
# ----------------------------------------------------------------------------
def aspp_reference(x_nchw, params, rate, eps=1e-5):
    hp = jax.lax.Precision.HIGHEST

    def dw_conv(x, w9c, dil):
        C = x.shape[1]
        w = jnp.transpose(w9c.reshape(3, 3, C), (2, 0, 1))[:, None, :, :]
        return jax.lax.conv_general_dilated(
            x, w, window_strides=(1, 1), padding=[(dil, dil), (dil, dil)],
            rhs_dilation=(dil, dil), feature_group_count=C,
            dimension_numbers=("NCHW", "OIHW", "NCHW"), precision=hp)

    def pw_conv(x, w_io):
        w = jnp.transpose(w_io)[:, :, None, None]
        return jax.lax.conv_general_dilated(
            x, w, window_strides=(1, 1), padding=[(0, 0), (0, 0)],
            dimension_numbers=("NCHW", "OIHW", "NCHW"), precision=hp)

    def bn(x, g, b, relu):
        mean = x.mean(axis=(0, 2, 3), keepdims=True)
        var = ((x - mean) ** 2).mean(axis=(0, 2, 3), keepdims=True)
        y = (x - mean) * jax.lax.rsqrt(var + eps)
        y = y * g.reshape(1, -1, 1, 1) + b.reshape(1, -1, 1, 1)
        return jnp.maximum(y, 0.0) if relu else y

    x = bn(pw_conv(dw_conv(x_nchw, params["atrous_dw"], rate), params["atrous_pw"]),
           params["bn_gamma"], params["bn_beta"], False)
    x = bn(pw_conv(dw_conv(x, params["conv1_dw"], 1), params["conv1_pw"]),
           params["bn1_gamma"], params["bn1_beta"], True)
    return x


if __name__ == "__main__":
    key = jax.random.PRNGKey(0)
    kx, kp = jax.random.split(key)

    # NOTE: tiny test config -- real ASPP channel counts (96/320) fill the
    # 128-lane padding; perf numbers from this config do not transfer.
    N, inplanes, planes, H, W, rate = 2, 8, 8, 16, 16, 2
    x = jax.random.normal(kx, (N, inplanes, H, W), jnp.float32)  # NCHW like PyTorch
    params = init_params(kp, inplanes, planes)

    ref = jax.block_until_ready(aspp_reference(x, params, rate))

    # f32 path: tight check against the lax reference.
    out_f32 = jax.block_until_ready(
        aspp_forward(x, params, rate, compute_dtype=jnp.float32))
    assert out_f32.shape == (N, planes, H, W)
    assert jnp.allclose(out_f32, ref, atol=2e-3, rtol=2e-3), "f32 mismatch vs reference"

    # bf16 path (production default): loose check.
    out_bf16 = jax.block_until_ready(
        aspp_forward(x, params, rate, compute_dtype=jnp.bfloat16))
    assert out_bf16.shape == (N, planes, H, W)
    assert jnp.allclose(out_bf16, ref, atol=1e-1, rtol=1e-1), "bf16 mismatch vs reference"

    print("KERNEL_OK")
</pallas_src>

<mosaic_0001>
module attributes {stable_mosaic.version = 11 : i64} {
  func.func @_sepconv_to_slab_kernel(%arg0: i32, %arg1: i32, %arg2: memref<1x22x28x128xf32, #tpu.memory_space<vmem>>, %arg3: memref<9x128x128xf32, #tpu.memory_space<vmem>>, %arg4: memref<1x1x18x24x128xf32, #tpu.memory_space<vmem>>, %arg5: memref<1x1x2x128xf32, #tpu.memory_space<vmem>>) attributes {dimension_semantics = [#tpu.dimension_semantics<parallel>, #tpu.dimension_semantics<parallel>], iteration_bounds = array<i64: 2, 1>, scalar_prefetch = 0 : i64, scratch_operands = 0 : i64, tpu.core_type = #tpu.core_type<tc>, window_params = [{transform_indices = @transform_0, window_bounds = array<i64: 1, 22, 28, 128>}, {pipeline_mode = #tpu.pipeline_mode<synchronous>, transform_indices = @transform_1, window_bounds = array<i64: 9, 128, 128>}, {transform_indices = @transform_2, window_bounds = array<i64: 1, 1, 18, 24, 128>}, {transform_indices = @transform_3, window_bounds = array<i64: 1, 1, 2, 128>}]} {
    %c16_i32 = arith.constant 16 : i32
    %0 = arith.muli %arg1, %c16_i32 : i32
    %c0_i32 = arith.constant 0 : i32
    %1 = arith.addi %0, %c0_i32 : i32
    %c0 = arith.constant 0 : index
    %2 = arith.index_cast %1 : i32 to index
    %c0_0 = arith.constant 0 : index
    %c0_1 = arith.constant 0 : index
    %3 = vector.load %arg2[%c0, %2, %c0_0, %c0_1] : memref<1x22x28x128xf32, #tpu.memory_space<vmem>>, vector<1x18x24x128xf32>
    %4 = vector.shape_cast %3 : vector<1x18x24x128xf32> to vector<18x24x128xf32>
    %5 = vector.shape_cast %4 : vector<18x24x128xf32> to vector<432x128xf32>
    %c0_2 = arith.constant 0 : index
    %c0_3 = arith.constant 0 : index
    %c0_4 = arith.constant 0 : index
    %6 = vector.load %arg3[%c0_2, %c0_3, %c0_4] : memref<9x128x128xf32, #tpu.memory_space<vmem>>, vector<1x128x128xf32>
    %7 = vector.shape_cast %6 : vector<1x128x128xf32> to vector<128x128xf32>
    %cst = arith.constant dense<0.000000e+00> : vector<432x128xf32>
    %8 = tpu.matmul %5, %7, %cst {dimension_numbers = #tpu.dot_dimension_numbers<[1], [0], [0], [1], [0, 0, 1, 1], [], []>} : vector<432x128xf32>, vector<128x128xf32>, vector<432x128xf32> -> vector<432x128xf32>
    %c0_i32_5 = arith.constant 0 : i32
    %9 = arith.addi %0, %c0_i32_5 : i32
    %c0_6 = arith.constant 0 : index
    %10 = arith.index_cast %9 : i32 to index
    %c2 = arith.constant 2 : index
    %c0_7 = arith.constant 0 : index
    %11 = vector.load %arg2[%c0_6, %10, %c2, %c0_7] : memref<1x22x28x128xf32, #tpu.memory_space<vmem>>, vector<1x18x24x128xf32>
    %12 = vector.shape_cast %11 : vector<1x18x24x128xf32> to vector<18x24x128xf32>
    %13 = vector.shape_cast %12 : vector<18x24x128xf32> to vector<432x128xf32>
    %c1 = arith.constant 1 : index
    %c0_8 = arith.constant 0 : index
    %c0_9 = arith.constant 0 : index
    %14 = vector.load %arg3[%c1, %c0_8, %c0_9] : memref<9x128x128xf32, #tpu.memory_space<vmem>>, vector<1x128x128xf32>
    %15 = vector.shape_cast %14 : vector<1x128x128xf32> to vector<128x128xf32>
    %cst_10 = arith.constant dense<0.000000e+00> : vector<432x128xf32>
    %16 = tpu.matmul %13, %15, %cst_10 {dimension_numbers = #tpu.dot_dimension_numbers<[1], [0], [0], [1], [0, 0, 1, 1], [], []>} : vector<432x128xf32>, vector<128x128xf32>, vector<432x128xf32> -> vector<432x128xf32>
    %17 = arith.addf %8, %16 : vector<432x128xf32>
    %c0_i32_11 = arith.constant 0 : i32
    %18 = arith.addi %0, %c0_i32_11 : i32
    %c0_12 = arith.constant 0 : index
    %19 = arith.index_cast %18 : i32 to index
    %c4 = arith.constant 4 : index
    %c0_13 = arith.constant 0 : index
    %20 = vector.load %arg2[%c0_12, %19, %c4, %c0_13] : memref<1x22x28x128xf32, #tpu.memory_space<vmem>>, vector<1x18x24x128xf32>
    %21 = vector.shape_cast %20 : vector<1x18x24x128xf32> to vector<18x24x128xf32>
    %22 = vector.shape_cast %21 : vector<18x24x128xf32> to vector<432x128xf32>
    %c2_14 = arith.constant 2 : index
    %c0_15 = arith.constant 0 : index
    %c0_16 = arith.constant 0 : index
    %23 = vector.load %arg3[%c2_14, %c0_15, %c0_16] : memref<9x128x128xf32, #tpu.memory_space<vmem>>, vector<1x128x128xf32>
    %24 = vector.shape_cast %23 : vector<1x128x128xf32> to vector<128x128xf32>
    %cst_17 = arith.constant dense<0.000000e+00> : vector<432x128xf32>
    %25 = tpu.matmul %22, %24, %cst_17 {dimension_numbers = #tpu.dot_dimension_numbers<[1], [0], [0], [1], [0, 0, 1, 1], [], []>} : vector<432x128xf32>, vector<128x128xf32>, vector<432x128xf32> -> vector<432x128xf32>
    %26 = arith.addf %17, %25 : vector<432x128xf32>
    %c2_i32 = arith.constant 2 : i32
    %27 = arith.addi %0, %c2_i32 : i32
    %c0_18 = arith.constant 0 : index
    %28 = arith.index_cast %27 : i32 to index
    %c0_19 = arith.constant 0 : index
    %c0_20 = arith.constant 0 : index
    %29 = vector.load %arg2[%c0_18, %28, %c0_19, %c0_20] : memref<1x22x28x128xf32, #tpu.memory_space<vmem>>, vector<1x18x24x128xf32>
    %30 = vector.shape_cast %29 : vector<1x18x24x128xf32> to vector<18x24x128xf32>
    %31 = vector.shape_cast %30 : vector<18x24x128xf32> to vector<432x128xf32>
    %c3 = arith.constant 3 : index
    %c0_21 = arith.constant 0 : index
    %c0_22 = arith.constant 0 : index
    %32 = vector.load %arg3[%c3, %c0_21, %c0_22] : memref<9x128x128xf32, #tpu.memory_space<vmem>>, vector<1x128x128xf32>
    %33 = vector.shape_cast %32 : vector<1x128x128xf32> to vector<128x128xf32>
    %cst_23 = arith.constant dense<0.000000e+00> : vector<432x128xf32>
    %34 = tpu.matmul %31, %33, %cst_23 {dimension_numbers = #tpu.dot_dimension_numbers<[1], [0], [0], [1], [0, 0, 1, 1], [], []>} : vector<432x128xf32>, vector<128x128xf32>, vector<432x128xf32> -> vector<432x128xf32>
    %35 = arith.addf %26, %34 : vector<432x128xf32>
    %c2_i32_24 = arith.constant 2 : i32
    %36 = arith.addi %0, %c2_i32_24 : i32
    %c0_25 = arith.constant 0 : index
    %37 = arith.index_cast %36 : i32 to index
    %c2_26 = arith.constant 2 : index
    %c0_27 = arith.constant 0 : index
    %38 = vector.load %arg2[%c0_25, %37, %c2_26, %c0_27] : memref<1x22x28x128xf32, #tpu.memory_space<vmem>>, vector<1x18x24x128xf32>
    %39 = vector.shape_cast %38 : vector<1x18x24x128xf32> to vector<18x24x128xf32>
    %40 = vector.shape_cast %39 : vector<18x24x128xf32> to vector<432x128xf32>
    %c4_28 = arith.constant 4 : index
    %c0_29 = arith.constant 0 : index
    %c0_30 = arith.constant 0 : index
    %41 = vector.load %arg3[%c4_28, %c0_29, %c0_30] : memref<9x128x128xf32, #tpu.memory_space<vmem>>, vector<1x128x128xf32>
    %42 = vector.shape_cast %41 : vector<1x128x128xf32> to vector<128x128xf32>
    %cst_31 = arith.constant dense<0.000000e+00> : vector<432x128xf32>
    %43 = tpu.matmul %40, %42, %cst_31 {dimension_numbers = #tpu.dot_dimension_numbers<[1], [0], [0], [1], [0, 0, 1, 1], [], []>} : vector<432x128xf32>, vector<128x128xf32>, vector<432x128xf32> -> vector<432x128xf32>
    %44 = arith.addf %35, %43 : vector<432x128xf32>
    %c2_i32_32 = arith.constant 2 : i32
    %45 = arith.addi %0, %c2_i32_32 : i32
    %c0_33 = arith.constant 0 : index
    %46 = arith.index_cast %45 : i32 to index
    %c4_34 = arith.constant 4 : index
    %c0_35 = arith.constant 0 : index
    %47 = vector.load %arg2[%c0_33, %46, %c4_34, %c0_35] : memref<1x22x28x128xf32, #tpu.memory_space<vmem>>, vector<1x18x24x128xf32>
    %48 = vector.shape_cast %47 : vector<1x18x24x128xf32> to vector<18x24x128xf32>
    %49 = vector.shape_cast %48 : vector<18x24x128xf32> to vector<432x128xf32>
    %c5 = arith.constant 5 : index
    %c0_36 = arith.constant 0 : index
    %c0_37 = arith.constant 0 : index
    %50 = vector.load %arg3[%c5, %c0_36, %c0_37] : memref<9x128x128xf32, #tpu.memory_space<vmem>>, vector<1x128x128xf32>
    %51 = vector.shape_cast %50 : vector<1x128x128xf32> to vector<128x128xf32>
    %cst_38 = arith.constant dense<0.000000e+00> : vector<432x128xf32>
    %52 = tpu.matmul %49, %51, %cst_38 {dimension_numbers = #tpu.dot_dimension_numbers<[1], [0], [0], [1], [0, 0, 1, 1], [], []>} : vector<432x128xf32>, vector<128x128xf32>, vector<432x128xf32> -> vector<432x128xf32>
    %53 = arith.addf %44, %52 : vector<432x128xf32>
    %c4_i32 = arith.constant 4 : i32
    %54 = arith.addi %0, %c4_i32 : i32
    %c0_39 = arith.constant 0 : index
    %55 = arith.index_cast %54 : i32 to index
    %c0_40 = arith.constant 0 : index
    %c0_41 = arith.constant 0 : index
    %56 = vector.load %arg2[%c0_39, %55, %c0_40, %c0_41] : memref<1x22x28x128xf32, #tpu.memory_space<vmem>>, vector<1x18x24x128xf32>
    %57 = vector.shape_cast %56 : vector<1x18x24x128xf32> to vector<18x24x128xf32>
    %58 = vector.shape_cast %57 : vector<18x24x128xf32> to vector<432x128xf32>
    %c6 = arith.constant 6 : index
    %c0_42 = arith.constant 0 : index
    %c0_43 = arith.constant 0 : index
    %59 = vector.load %arg3[%c6, %c0_42, %c0_43] : memref<9x128x128xf32, #tpu.memory_space<vmem>>, vector<1x128x128xf32>
    %60 = vector.shape_cast %59 : vector<1x128x128xf32> to vector<128x128xf32>
    %cst_44 = arith.constant dense<0.000000e+00> : vector<432x128xf32>
    %61 = tpu.matmul %58, %60, %cst_44 {dimension_numbers = #tpu.dot_dimension_numbers<[1], [0], [0], [1], [0, 0, 1, 1], [], []>} : vector<432x128xf32>, vector<128x128xf32>, vector<432x128xf32> -> vector<432x128xf32>
    %62 = arith.addf %53, %61 : vector<432x128xf32>
    %c4_i32_45 = arith.constant 4 : i32
    %63 = arith.addi %0, %c4_i32_45 : i32
    %c0_46 = arith.constant 0 : index
    %64 = arith.index_cast %63 : i32 to index
    %c2_47 = arith.constant 2 : index
    %c0_48 = arith.constant 0 : index
    %65 = vector.load %arg2[%c0_46, %64, %c2_47, %c0_48] : memref<1x22x28x128xf32, #tpu.memory_space<vmem>>, vector<1x18x24x128xf32>
    %66 = vector.shape_cast %65 : vector<1x18x24x128xf32> to vector<18x24x128xf32>
    %67 = vector.shape_cast %66 : vector<18x24x128xf32> to vector<432x128xf32>
    %c7 = arith.constant 7 : index
    %c0_49 = arith.constant 0 : index
    %c0_50 = arith.constant 0 : index
    %68 = vector.load %arg3[%c7, %c0_49, %c0_50] : memref<9x128x128xf32, #tpu.memory_space<vmem>>, vector<1x128x128xf32>
    %69 = vector.shape_cast %68 : vector<1x128x128xf32> to vector<128x128xf32>
    %cst_51 = arith.constant dense<0.000000e+00> : vector<432x128xf32>
    %70 = tpu.matmul %67, %69, %cst_51 {dimension_numbers = #tpu.dot_dimension_numbers<[1], [0], [0], [1], [0, 0, 1, 1], [], []>} : vector<432x128xf32>, vector<128x128xf32>, vector<432x128xf32> -> vector<432x128xf32>
    %71 = arith.addf %62, %70 : vector<432x128xf32>
    %c4_i32_52 = arith.constant 4 : i32
    %72 = arith.addi %0, %c4_i32_52 : i32
    %c0_53 = arith.constant 0 : index
    %73 = arith.index_cast %72 : i32 to index
    %c4_54 = arith.constant 4 : index
    %c0_55 = arith.constant 0 : index
    %74 = vector.load %arg2[%c0_53, %73, %c4_54, %c0_55] : memref<1x22x28x128xf32, #tpu.memory_space<vmem>>, vector<1x18x24x128xf32>
    %75 = vector.shape_cast %74 : vector<1x18x24x128xf32> to vector<18x24x128xf32>
    %76 = vector.shape_cast %75 : vector<18x24x128xf32> to vector<432x128xf32>
    %c8 = arith.constant 8 : index
    %c0_56 = arith.constant 0 : index
    %c0_57 = arith.constant 0 : index
    %77 = vector.load %arg3[%c8, %c0_56, %c0_57] : memref<9x128x128xf32, #tpu.memory_space<vmem>>, vector<1x128x128xf32>
    %78 = vector.shape_cast %77 : vector<1x128x128xf32> to vector<128x128xf32>
    %cst_58 = arith.constant dense<0.000000e+00> : vector<432x128xf32>
    %79 = tpu.matmul %76, %78, %cst_58 {dimension_numbers = #tpu.dot_dimension_numbers<[1], [0], [0], [1], [0, 0, 1, 1], [], []>} : vector<432x128xf32>, vector<128x128xf32>, vector<432x128xf32> -> vector<432x128xf32>
    %80 = arith.addf %71, %79 : vector<432x128xf32>
    %81 = vector.shape_cast %80 : vector<432x128xf32> to vector<18x24x128xf32>
    %82 = tpu.iota {dimensions = array<i32: 0>} : vector<18x24x1xi32>
    %83 = tpu.iota {dimensions = array<i32: 1>} : vector<18x24x1xi32>
    %c0_i32_59 = arith.constant 0 : i32
    %84 = vector.broadcast %c0_i32_59 : i32 to vector<18x24x1xi32>
    %85 = arith.cmpi sgt, %82, %84 : vector<18x24x1xi32>
    %c0_i32_60 = arith.constant 0 : i32
    %86 = arith.cmpi sgt, %arg1, %c0_i32_60 : i32
    %87 = vector.broadcast %86 : i1 to vector<18x24x1xi1>
    %88 = arith.ori %85, %87 : vector<18x24x1xi1>
    %c17_i32 = arith.constant 17 : i32
    %89 = vector.broadcast %c17_i32 : i32 to vector<18x24x1xi32>
    %90 = arith.cmpi slt, %82, %89 : vector<18x24x1xi32>
    %c0_i32_61 = arith.constant 0 : i32
    %91 = arith.cmpi slt, %arg1, %c0_i32_61 : i32
    %92 = vector.broadcast %91 : i1 to vector<18x24x1xi1>
    %93 = arith.ori %90, %92 : vector<18x24x1xi1>
    %94 = arith.andi %88, %93 : vector<18x24x1xi1>
    %c1_i32 = arith.constant 1 : i32
    %95 = vector.broadcast %c1_i32 : i32 to vector<18x24x1xi32>
    %96 = arith.cmpi sge, %83, %95 : vector<18x24x1xi32>
    %c16_i32_62 = arith.constant 16 : i32
    %97 = vector.broadcast %c16_i32_62 : i32 to vector<18x24x1xi32>
    %98 = arith.cmpi sle, %83, %97 : vector<18x24x1xi32>
    %99 = arith.andi %96, %98 : vector<18x24x1xi1>
    %100 = arith.andi %94, %99 : vector<18x24x1xi1>
    %cst_63 = arith.constant 0.000000e+00 : f32
    %101 = vector.shape_cast %100 : vector<18x24x1xi1> to vector<18x24x1xi1>
    %102 = vector.broadcast %101 : vector<18x24x1xi1> to vector<18x24x128xi1>
    %103 = vector.broadcast %cst_63 : f32 to vector<18x24x128xf32>
    %104 = arith.select %102, %81, %103 : vector<18x24x128xi1>, vector<18x24x128xf32>
    %105 = vector.shape_cast %104 : vector<18x24x128xf32> to vector<1x1x18x24x128xf32>
    %c0_64 = arith.constant 0 : index
    %c0_65 = arith.constant 0 : index
    %c0_66 = arith.constant 0 : index
    %c0_67 = arith.constant 0 : index
    %c0_68 = arith.constant 0 : index
    %106 = vector.load %arg4[%c0_64, %c0_65, %c0_66, %c0_67, %c0_68] : memref<1x1x18x24x128xf32, #tpu.memory_space<vmem>>, vector<1x1x18x24x128xf32>
    tpu.vector_store %arg4[%c0_64, %c0_65, %c0_66, %c0_67, %c0_68], %105 {strides = array<i32>} : memref<1x1x18x24x128xf32, #tpu.memory_space<vmem>>, vector<1x1x18x24x128xf32>,
    %107 = vector.extract_strided_slice %104 {offsets = [1, 1, 0], sizes = [16, 16, 128], strides = [1, 1, 1]} : vector<18x24x128xf32> to vector<16x16x128xf32>
    %cst_69 = arith.constant dense<0.000000e+00> : vector<128xf32>
    %108 = vector.multi_reduction <add>, %107, %cst_69 [0, 1] : vector<16x16x128xf32> to vector<128xf32>
    %109 = vector.shape_cast %108 : vector<128xf32> to vector<1x128xf32>
    %c0_70 = arith.constant 0 : index
    %c0_71 = arith.constant 0 : index
    %c0_72 = arith.constant 0 : index
    %c0_73 = arith.constant 0 : index
    %110 = vector.load %arg5[%c0_70, %c0_71, %c0_72, %c0_73] : memref<1x1x2x128xf32, #tpu.memory_space<vmem>>, vector<1x1x1x128xf32>
    %111 = vector.shape_cast %110 : vector<1x1x1x128xf32> to vector<1x128xf32>
    %112 = vector.shape_cast %109 : vector<1x128xf32> to vector<1x1x1x128xf32>
    tpu.vector_store %arg5[%c0_70, %c0_71, %c0_72, %c0_73], %112 {strides = array<i32>} : memref<1x1x2x128xf32, #tpu.memory_space<vmem>>, vector<1x1x1x128xf32>,
    %113 = arith.mulf %107, %107 : vector<16x16x128xf32>
    %cst_74 = arith.constant dense<0.000000e+00> : vector<128xf32>
    %114 = vector.multi_reduction <add>, %113, %cst_74 [0, 1] : vector<16x16x128xf32> to vector<128xf32>
    %115 = vector.shape_cast %114 : vector<128xf32> to vector<1x128xf32>
    %c0_75 = arith.constant 0 : index
    %c0_76 = arith.constant 0 : index
    %c1_77 = arith.constant 1 : index
    %c0_78 = arith.constant 0 : index
    %116 = vector.load %arg5[%c0_75, %c0_76, %c1_77, %c0_78] : memref<1x1x2x128xf32, #tpu.memory_space<vmem>>, vector<1x1x1x128xf32>
    %117 = vector.shape_cast %116 : vector<1x1x1x128xf32> to vector<1x128xf32>
    %118 = vector.shape_cast %115 : vector<1x128xf32> to vector<1x1x1x128xf32>
    tpu.vector_store %arg5[%c0_75, %c0_76, %c1_77, %c0_78], %118 {strides = array<i32>} : memref<1x1x2x128xf32, #tpu.memory_space<vmem>>, vector<1x1x1x128xf32>,
    return
  }
  func.func @transform_0(%arg0: i32, %arg1: i32) -> (i32, i32, i32, i32) {
    %c0_i32 = arith.constant 0 : i32
    %c0_i32_0 = arith.constant 0 : i32
    %c0_i32_1 = arith.constant 0 : i32
    %c0_i32_2 = arith.constant 0 : i32
    return %arg0, %c0_i32, %c0_i32_0, %c0_i32_1 : i32, i32, i32, i32
  }
  func.func @transform_1(%arg0: i32, %arg1: i32) -> (i32, i32, i32) {
    %c0_i32 = arith.constant 0 : i32
    %c0_i32_0 = arith.constant 0 : i32
    %c0_i32_1 = arith.constant 0 : i32
    %c0_i32_2 = arith.constant 0 : i32
    return %c0_i32, %c0_i32_0, %c0_i32_1 : i32, i32, i32
  }
  func.func @transform_2(%arg0: i32, %arg1: i32) -> (i32, i32, i32, i32, i32) {
    %c0_i32 = arith.constant 0 : i32
    %c0_i32_0 = arith.constant 0 : i32
    %c0_i32_1 = arith.constant 0 : i32
    %c0_i32_2 = arith.constant 0 : i32
    return %arg0, %arg1, %c0_i32, %c0_i32_0, %c0_i32_1 : i32, i32, i32, i32, i32
  }
  func.func @transform_3(%arg0: i32, %arg1: i32) -> (i32, i32, i32, i32) {
    %c0_i32 = arith.constant 0 : i32
    %c0_i32_0 = arith.constant 0 : i32
    %c0_i32_1 = arith.constant 0 : i32
    return %arg0, %arg1, %c0_i32, %c0_i32_0 : i32, i32, i32, i32
  }
}

</mosaic_0001>

<llo_original>
// kernel: tpu_custom_call.1
$region0: #{tpu_custom_call.1}
  #allocation0 [shape = 'u32[]', space=smem, size = 0x4, offset = 0x4, fixed_abs, tag = 'smem constant byte address 0x4 - core index']
  #allocation1 [shape = 'u32[72,128]{1,0:T(1,128)}', space=vmem, size = 0x9000, scoped, tag = 'internal scratch']
  %s0 = inlined_call_operand.vmem [shape: f32[2,22,28,128], index: 0, kind: input, shape index: {}]
  %s1 = inlined_call_operand.vmem [shape: f32[9,128,128], index: 1, kind: input, shape index: {}]
  %s2 = inlined_call_operand.hbm [shape: f32[2,1,18,24,128], index: 2, kind: output, shape index: {0}]
  %s3 = inlined_call_operand.hbm [shape: f32[2,1,2,128], index: 3, kind: output, shape index: {1}]
  %4 = xla_tuple %s2, %s3
  %s5 = sld [smem:[#allocation0]]
  $region49: #{tpu_custom_call.1} parent=0
    _
  %s7 = ssub.s32 1, %s5
  %s8 = scalar_select 0, %s7, %s5
  $region1: #{tpu_custom_call.1} parent=0
    #allocation2 [shape = 'u8[442368]{0}', space=vmem, size = 0x6c000, scoped, tag = 'output window, operand 0']
    #allocation3 [shape = 's32[2]{0}', space=sflag, size = 0x8, scoped, tag = 'scoped memory for tpu_custom_call.1']
    #allocation4 [shape = 'u8[2048]{0}', space=vmem, size = 0x800, scoped, tag = 'output window, operand 1']
    #allocation5 [shape = 's32[2]{0}', space=sflag, size = 0x8, scoped, tag = 'scoped memory for tpu_custom_call.1']
    %9 = vsyncpa [#allocation3], 0
    %s10 = scalar_lea.sflag [#allocation3], 1
    %11 = vsyncpa %s10, 0
    %12 = vsyncpa [#allocation5], 0
    %s13 = scalar_lea.sflag [#allocation5], 1
    %14 = vsyncpa %s13, 0
    loop: start=0, step=1, limit=4
    $region2: #{tpu_custom_call.1} parent=1 // loop_pre_header
      _
    $region3: #{tpu_custom_call.1} parent=1 // loop_header
      %s16 = sphi 0, %s20
      %p17 = scmp.ge.s32.totalorder %s16, 4
      %s23 = sphi 0, %s35
      %s24 = sphi 0, %s31
      %s25 = sphi 0, %s23
      %s26 = sphi 0, %s24
      %s27 = sphi 0, %s25
      %s28 = sphi 0, %s26
      %s38 = sphi 0, %s40
      %s41 = sphi 0, %s38
      %s42 = sphi 0, %s41
      %s58 = sphi 0, %s42
      %s62 = sphi 0, %s62
      %s64 = sphi 0, %s62
      %s65 = sphi 0, %s64
      %s79 = sphi 0, %s65
      %s87 = sphi 0, %s89
      %s90 = sphi 0, %s87
      %s91 = sphi 0, %s90
      %s107 = sphi 0, %s91
      %s115 = sphi 0, %s117
      %s118 = sphi 0, %s115
      %s119 = sphi 0, %s118
      %s135 = sphi 0, %s119
    $region4: #{tpu_custom_call.1} parent=1 // loop_header_branch
      %19 = sbr.rel (%p17) target = $region8
    $region5: #{tpu_custom_call.1} parent=1 // loop_body
      %s21 = ssub.s32 %s16, 1
      %s22 = ssub.s32 %s16, 2
      %s29 = sadd.s32 1, %s24
      %p30 = scmp.ge.s32.totalorder %s29, 1
      %s31 = scalar_select %p30, 0, %s29
      %s32 = sadd.s32 1, %s23
      %s33 = scalar_select %p30, %s32, %s23
      %p34 = scmp.ge.s32.totalorder %s33, 2
      %s35 = scalar_select %p34, 0, %s33
      %s36 = ssub.s32 %s23, %s35
      %p37 = scmp.eq.s32.totalorder %s36, 0
      %s39 = sadd.s32 %s38, 1
      %s40 = scalar_select %p37, %s38, %s39
      %p43 = pneg %p37
      %p44 = scmp.eq.s32.totalorder %s16, 1
      %p45 = por %p43, %p44
      %p46 = scmp.ne.s32.totalorder %s38, %s41
      %p47 = scmp.eq.s32.totalorder %s16, 0
      %p48 = por %p46, %p47
      %p49 = scmp.ne.s32.totalorder %s38, %s41
      %p50 = scmp.eq.s32.totalorder %s21, 1
      %p51 = por %p49, %p50
      %p52 = scmp.ne.s32.totalorder %s41, %s42
      %p53 = scmp.eq.s32.totalorder %s21, 0
      %p54 = por %p52, %p53
      %p55 = scmp.ne.s32.totalorder %s41, %s42
      %p56 = scmp.eq.s32.totalorder %s22, 1
      %p57 = por %p55, %p56
      %p59 = scmp.ne.s32.totalorder %s42, %s58
      %p60 = scmp.eq.s32.totalorder %s22, 0
      %p61 = por %p59, %p60
      %s63 = sadd.s32 %s62, 1
      %p66 = scmp.eq.s32.totalorder %s16, 1
      %p67 = scmp.ne.s32.totalorder %s62, %s64
      %p68 = scmp.eq.s32.totalorder %s16, 0
      %p69 = por %p67, %p68
      %p70 = scmp.ne.s32.totalorder %s62, %s64
      %p71 = scmp.eq.s32.totalorder %s21, 1
      %p72 = por %p70, %p71
      %p73 = scmp.ne.s32.totalorder %s64, %s65
      %p74 = scmp.eq.s32.totalorder %s21, 0
      %p75 = por %p73, %p74
      %p76 = scmp.ne.s32.totalorder %s64, %s65
      %p77 = scmp.eq.s32.totalorder %s22, 1
      %p78 = por %p76, %p77
      %p80 = scmp.ne.s32.totalorder %s65, %s79
      %p81 = scmp.eq.s32.totalorder %s22, 0
      %p82 = por %p80, %p81
      %s83 = ssub.s32 %s23, %s35
      %s84 = ssub.s32 %s24, %s31
      %s85 = sor.u32 %s83, %s84
      %p86 = scmp.eq.s32.totalorder %s85, 0
      %s88 = sadd.s32 %s87, 1
      %s89 = scalar_select %p86, %s87, %s88
      %p92 = pneg %p86
      %p93 = scmp.eq.s32.totalorder %s16, 1
      %p94 = por %p92, %p93
      %p95 = scmp.ne.s32.totalorder %s87, %s90
      %p96 = scmp.eq.s32.totalorder %s16, 0
      %p97 = por %p95, %p96
      %p98 = scmp.ne.s32.totalorder %s87, %s90
      %p99 = scmp.eq.s32.totalorder %s21, 1
      %p100 = por %p98, %p99
      %p101 = scmp.ne.s32.totalorder %s90, %s91
      %p102 = scmp.eq.s32.totalorder %s21, 0
      %p103 = por %p101, %p102
      %p104 = scmp.ne.s32.totalorder %s90, %s91
      %p105 = scmp.eq.s32.totalorder %s22, 1
      %p106 = por %p104, %p105
      %p108 = scmp.ne.s32.totalorder %s91, %s107
      %p109 = scmp.eq.s32.totalorder %s22, 0
      %p110 = por %p108, %p109
      %s111 = ssub.s32 %s23, %s35
      %s112 = ssub.s32 %s24, %s31
      %s113 = sor.u32 %s111, %s112
      %p114 = scmp.eq.s32.totalorder %s113, 0
      %s116 = sadd.s32 %s115, 1
      %s117 = scalar_select %p114, %s115, %s116
      %p120 = pneg %p114
      %p121 = scmp.eq.s32.totalorder %s16, 1
      %p122 = por %p120, %p121
      %p123 = scmp.ne.s32.totalorder %s115, %s118
      %p124 = scmp.eq.s32.totalorder %s16, 0
      %p125 = por %p123, %p124
      %p126 = scmp.ne.s32.totalorder %s115, %s118
      %p127 = scmp.eq.s32.totalorder %s21, 1
      %p128 = por %p126, %p127
      %p129 = scmp.ne.s32.totalorder %s118, %s119
      %p130 = scmp.eq.s32.totalorder %s21, 0
      %p131 = por %p129, %p130
      %p132 = scmp.ne.s32.totalorder %s118, %s119
      %p133 = scmp.eq.s32.totalorder %s22, 1
      %p134 = por %p132, %p133
      %p136 = scmp.ne.s32.totalorder %s119, %s135
      %p137 = scmp.eq.s32.totalorder %s22, 0
      %p138 = por %p136, %p137
      %p139 = scmp.le.s32.totalorder 1, %s16
      %p140 = scmp.lt.s32.totalorder %s16, 3
      %p141 = pnand %p139, %p140
      %p142 = pneg %p141
      // Predicated region
      $region9: #{tpu_custom_call.1} parent=5 // pred_check
        _
      $region10: #{tpu_custom_call.1} parent=5 // pred_check_branch
        %144 = sbr.rel (%p141) target = $region12
      $region11: #{tpu_custom_call.1} parent=5 // pred_region
        %s145 = ssub.s32 %s16, 1
        // Predicated region
        $region13: #{tpu_custom_call.1} parent=11 // pred_check
          %p146 = pneg %p75
        $region14: #{tpu_custom_call.1} parent=11 // pred_check_branch
          %148 = sbr.rel (%p146) target = $region16
        $region15: #{tpu_custom_call.1} parent=11 // pred_region
          _
        $region16: #{tpu_custom_call.1} parent=11 // pred_fallthru
          _
      $region12: #{tpu_custom_call.1} parent=5 // pred_fallthru
        _
      %p149 = scmp.lt.s32.totalorder %s16, 2
      // Predicated region
      $region17: #{tpu_custom_call.1} parent=5 // pred_check
        %p150 = pneg %p149
      $region18: #{tpu_custom_call.1} parent=5 // pred_check_branch
        %152 = sbr.rel (%p150) target = $region20
      $region19: #{tpu_custom_call.1} parent=5 // pred_region
        // Predicated region
        $region21: #{tpu_custom_call.1} parent=19 // pred_check
          %p153 = pneg %p48
        $region22: #{tpu_custom_call.1} parent=19 // pred_check_branch
          %155 = sbr.rel (%p153) target = $region24
        $region23: #{tpu_custom_call.1} parent=19 // pred_region
          %p156 = scmp.lt.s32.totalorder %s23, 1
          %s157 = scalar_select %p156, %s23, 1
          %s158 = smul.addr %s157, 88
          %s159 = smul.addr %s158, 8
          %s160 = scalar_lea.vmem %s0, %s159
        $region24: #{tpu_custom_call.1} parent=19 // pred_fallthru
          _
      $region20: #{tpu_custom_call.1} parent=5 // pred_fallthru
        _
      %p161 = scmp.le.s32.totalorder 1, %s16
      %p162 = scmp.lt.s32.totalorder %s16, 3
      %p163 = pnand %p161, %p162
      %p164 = pneg %p163
      // Predicated region
      $region25: #{tpu_custom_call.1} parent=5 // pred_check
        _
      $region26: #{tpu_custom_call.1} parent=5 // pred_check_branch
        %166 = sbr.rel (%p163) target = $region28
      $region27: #{tpu_custom_call.1} parent=5 // pred_region
        %s167 = ssub.s32 %s16, 1
        %p168 = scmp.lt.s32.totalorder %s25, 1
        %s169 = scalar_select %p168, %s25, 1
        %s170 = smul.addr %s169, 88
        %s171 = smul.addr %s170, 8
        %s172 = scalar_lea.vmem %s0, %s171
        %p173 = pneg %p54
        %p174 = pneg %p51
        %p175 = pneg %p75
        %p176 = pneg %p72
        %p177 = pneg %p103
        %p178 = pneg %p100
        %s179 = sand.u32 %s90, 1
        %s180 = scalar_lea.sflag [#allocation3], %s179
        %s181 = sand.u32 %s90, 1
        %s182 = smul.addr %s181, 432
        %s183 = scalar_lea.vmem [#allocation2], %s182
        %p184 = pneg %p131
        %p185 = pneg %p128
        %s186 = sand.u32 %s118, 1
        %s187 = scalar_lea.sflag [#allocation5], %s186
        %s188 = sand.u32 %s118, 1
        %s189 = smul.addr %s188, 2
        %s190 = scalar_lea.vmem [#allocation4], %s189
        %p191 = scmp.lt.s32.totalorder %s25, 1
        %s192 = scalar_select %p191, %s25, 1
        %s193 = smul.addr %s192, 88
        %s194 = smul.addr %s193, 8
        %s195 = scalar_lea.vmem %s0, %s194
        %s196 = smul.u32 %s26, 16
        %s197 = smul.u32 %s196, 32
        %s198 = scalar_lea.vmem %s195, %s197
        %v199 = vld [vmem:[%s198] sm:$0xff]
        %v200 = vld [vmem:[%s198 + $0x8] sm:$0xff]
        %v201 = vld [vmem:[%s198 + $0x10] sm:$0xff]
        %v202 = vld [vmem:[%s198 + $0x20] sm:$0xff]
        %v203 = vld [vmem:[%s198 + $0x28] sm:$0xff]
        %v204 = vld [vmem:[%s198 + $0x30] sm:$0xff]
        %v205 = vld [vmem:[%s198 + $0x40] sm:$0xff]
        %v206 = vld [vmem:[%s198 + $0x48] sm:$0xff]
        %v207 = vld [vmem:[%s198 + $0x50] sm:$0xff]
        %v208 = vld [vmem:[%s198 + $0x60] sm:$0xff]
        %v209 = vld [vmem:[%s198 + $0x68] sm:$0xff]
        %v210 = vld [vmem:[%s198 + $0x70] sm:$0xff]
        %v211 = vld [vmem:[%s198 + $0x80] sm:$0xff]
        %v212 = vld [vmem:[%s198 + $0x88] sm:$0xff]
        %v213 = vld [vmem:[%s198 + $0x90] sm:$0xff]
        %v214 = vld [vmem:[%s198 + $0xa0] sm:$0xff]
        %v215 = vld [vmem:[%s198 + $0xa8] sm:$0xff]
        %v216 = vld [vmem:[%s198 + $0xb0] sm:$0xff]
        %v217 = vld [vmem:[%s198 + $0xc0] sm:$0xff]
        %v218 = vld [vmem:[%s198 + $0xc8] sm:$0xff]
        %v219 = vld [vmem:[%s198 + $0xd0] sm:$0xff]
        %v220 = vld [vmem:[%s198 + $0xe0] sm:$0xff]
        %v221 = vld [vmem:[%s198 + $0xe8] sm:$0xff]
        %v222 = vld [vmem:[%s198 + $0xf0] sm:$0xff]
        %v223 = vld [vmem:[%s198 + $0x100] sm:$0xff]
        %v224 = vld [vmem:[%s198 + $0x108] sm:$0xff]
        %v225 = vld [vmem:[%s198 + $0x110] sm:$0xff]
        %v226 = vld [vmem:[%s198 + $0x120] sm:$0xff]
        %v227 = vld [vmem:[%s198 + $0x128] sm:$0xff]
        %v228 = vld [vmem:[%s198 + $0x130] sm:$0xff]
        %v229 = vld [vmem:[%s198 + $0x140] sm:$0xff]
        %v230 = vld [vmem:[%s198 + $0x148] sm:$0xff]
        %v231 = vld [vmem:[%s198 + $0x150] sm:$0xff]
        %v232 = vld [vmem:[%s198 + $0x160] sm:$0xff]
        %v233 = vld [vmem:[%s198 + $0x168] sm:$0xff]
        %v234 = vld [vmem:[%s198 + $0x170] sm:$0xff]
        %v235 = vld [vmem:[%s198 + $0x180] sm:$0xff]
        %v236 = vld [vmem:[%s198 + $0x188] sm:$0xff]
        %v237 = vld [vmem:[%s198 + $0x190] sm:$0xff]
        %v238 = vld [vmem:[%s198 + $0x1a0] sm:$0xff]
        %v239 = vld [vmem:[%s198 + $0x1a8] sm:$0xff]
        %v240 = vld [vmem:[%s198 + $0x1b0] sm:$0xff]
        %v241 = vld [vmem:[%s198 + $0x1c0] sm:$0xff]
        %v242 = vld [vmem:[%s198 + $0x1c8] sm:$0xff]
        %v243 = vld [vmem:[%s198 + $0x1d0] sm:$0xff]
        %v244 = vld [vmem:[%s198 + $0x1e0] sm:$0xff]
        %v245 = vld [vmem:[%s198 + $0x1e8] sm:$0xff]
        %v246 = vld [vmem:[%s198 + $0x1f0] sm:$0xff]
        %v247 = vld [vmem:[%s198 + $0x200] sm:$0xff]
        %v248 = vld [vmem:[%s198 + $0x208] sm:$0xff]
        %v249 = vld [vmem:[%s198 + $0x210] sm:$0xff]
        %v250 = vld [vmem:[%s198 + $0x220] sm:$0xff]
        %v251 = vld [vmem:[%s198 + $0x228] sm:$0xff]
        %v252 = vld [vmem:[%s198 + $0x230] sm:$0xff]
        %v253 = vld [vmem:[%s1] sm:$0xff]
        %v254 = vld [vmem:[%s1 + $0x8] sm:$0xff]
        %v255 = vld [vmem:[%s1 + $0x10] sm:$0xff]
        %v256 = vld [vmem:[%s1 + $0x18] sm:$0xff]
        %v257 = vld [vmem:[%s1 + $0x20] sm:$0xff]
        %v258 = vld [vmem:[%s1 + $0x28] sm:$0xff]
        %v259 = vld [vmem:[%s1 + $0x30] sm:$0xff]
        %v260 = vld [vmem:[%s1 + $0x38] sm:$0xff]
        %v261 = vld [vmem:[%s1 + $0x40] sm:$0xff]
        %v262 = vld [vmem:[%s1 + $0x48] sm:$0xff]
        %v263 = vld [vmem:[%s1 + $0x50] sm:$0xff]
        %v264 = vld [vmem:[%s1 + $0x58] sm:$0xff]
        %v265 = vld [vmem:[%s1 + $0x60] sm:$0xff]
        %v266 = vld [vmem:[%s1 + $0x68] sm:$0xff]
        %v267 = vld [vmem:[%s1 + $0x70] sm:$0xff]
        %v268 = vld [vmem:[%s1 + $0x78] sm:$0xff]
        %v269 = vld [vmem:[%s198 + $0x2] sm:$0xff]
        %v270 = vld [vmem:[%s198 + $0xa] sm:$0xff]
        %v271 = vld [vmem:[%s198 + $0x12] sm:$0xff]
        %v272 = vld [vmem:[%s198 + $0x22] sm:$0xff]
        %v273 = vld [vmem:[%s198 + $0x2a] sm:$0xff]
        %v274 = vld [vmem:[%s198 + $0x32] sm:$0xff]
        %v275 = vld [vmem:[%s198 + $0x42] sm:$0xff]
        %v276 = vld [vmem:[%s198 + $0x4a] sm:$0xff]
        %v277 = vld [vmem:[%s198 + $0x52] sm:$0xff]
        %v278 = vld [vmem:[%s198 + $0x62] sm:$0xff]
        %v279 = vld [vmem:[%s198 + $0x6a] sm:$0xff]
        %v280 = vld [vmem:[%s198 + $0x72] sm:$0xff]
        %v281 = vld [vmem:[%s198 + $0x82] sm:$0xff]
        %v282 = vld [vmem:[%s198 + $0x8a] sm:$0xff]
        %v283 = vld [vmem:[%s198 + $0x92] sm:$0xff]
        %v284 = vld [vmem:[%s198 + $0xa2] sm:$0xff]
        %v285 = vld [vmem:[%s198 + $0xaa] sm:$0xff]
        %v286 = vld [vmem:[%s198 + $0xb2] sm:$0xff]
        %v287 = vld [vmem:[%s198 + $0xc2] sm:$0xff]
        %v288 = vld [vmem:[%s198 + $0xca] sm:$0xff]
        %v289 = vld [vmem:[%s198 + $0xd2] sm:$0xff]
        %v290 = vld [vmem:[%s198 + $0xe2] sm:$0xff]
        %v291 = vld [vmem:[%s198 + $0xea] sm:$0xff]
        %v292 = vld [vmem:[%s198 + $0xf2] sm:$0xff]
        %v293 = vld [vmem:[%s198 + $0x102] sm:$0xff]
        %v294 = vld [vmem:[%s198 + $0x10a] sm:$0xff]
        %v295 = vld [vmem:[%s198 + $0x112] sm:$0xff]
        %v296 = vld [vmem:[%s198 + $0x122] sm:$0xff]
        %v297 = vld [vmem:[%s198 + $0x12a] sm:$0xff]
        %v298 = vld [vmem:[%s198 + $0x132] sm:$0xff]
        %v299 = vld [vmem:[%s198 + $0x142] sm:$0xff]
        %v300 = vld [vmem:[%s198 + $0x14a] sm:$0xff]
        %v301 = vld [vmem:[%s198 + $0x152] sm:$0xff]
        %v302 = vld [vmem:[%s198 + $0x162] sm:$0xff]
        %v303 = vld [vmem:[%s198 + $0x16a] sm:$0xff]
        %v304 = vld [vmem:[%s198 + $0x172] sm:$0xff]
        %v305 = vld [vmem:[%s198 + $0x182] sm:$0xff]
        %v306 = vld [vmem:[%s198 + $0x18a] sm:$0xff]
        %v307 = vld [vmem:[%s198 + $0x192] sm:$0xff]
        %v308 = vld [vmem:[%s198 + $0x1a2] sm:$0xff]
        %v309 = vld [vmem:[%s198 + $0x1aa] sm:$0xff]
        %v310 = vld [vmem:[%s198 + $0x1b2] sm:$0xff]
        %v311 = vld [vmem:[%s198 + $0x1c2] sm:$0xff]
        %v312 = vld [vmem:[%s198 + $0x1ca] sm:$0xff]
        %v313 = vld [vmem:[%s198 + $0x1d2] sm:$0xff]
        %v314 = vld [vmem:[%s198 + $0x1e2] sm:$0xff]
        %v315 = vld [vmem:[%s198 + $0x1ea] sm:$0xff]
        %v316 = vld [vmem:[%s198 + $0x1f2] sm:$0xff]
        %v317 = vld [vmem:[%s198 + $0x202] sm:$0xff]
        %v318 = vld [vmem:[%s198 + $0x20a] sm:$0xff]
        %v319 = vld [vmem:[%s198 + $0x212] sm:$0xff]
        %v320 = vld [vmem:[%s198 + $0x222] sm:$0xff]
        %v321 = vld [vmem:[%s198 + $0x22a] sm:$0xff]
        %v322 = vld [vmem:[%s198 + $0x232] sm:$0xff]
        %s323 = scalar_lea.vmem %s1, 128
        %v324 = vld [vmem:[%s323] sm:$0xff]
        %v325 = vld [vmem:[%s323 + $0x8] sm:$0xff]
        %v326 = vld [vmem:[%s323 + $0x10] sm:$0xff]
        %v327 = vld [vmem:[%s323 + $0x18] sm:$0xff]
        %v328 = vld [vmem:[%s323 + $0x20] sm:$0xff]
        %v329 = vld [vmem:[%s323 + $0x28] sm:$0xff]
        %v330 = vld [vmem:[%s323 + $0x30] sm:$0xff]
        %v331 = vld [vmem:[%s323 + $0x38] sm:$0xff]
        %v332 = vld [vmem:[%s323 + $0x40] sm:$0xff]
        %v333 = vld [vmem:[%s323 + $0x48] sm:$0xff]
        %v334 = vld [vmem:[%s323 + $0x50] sm:$0xff]
        %v335 = vld [vmem:[%s323 + $0x58] sm:$0xff]
        %v336 = vld [vmem:[%s323 + $0x60] sm:$0xff]
        %v337 = vld [vmem:[%s323 + $0x68] sm:$0xff]
        %v338 = vld [vmem:[%s323 + $0x70] sm:$0xff]
        %v339 = vld [vmem:[%s323 + $0x78] sm:$0xff]
        %340 = vmatpush.msra.mxu0 %v339
        %341 = vmatpush.msra.mxu0 %v338
        %342 = vmatpush.msra.mxu0 %v337
        %343 = vmatpush.msra.mxu0 %v336
        %344 = vmatpush.msra.mxu0 %v335
        %345 = vmatpush.msra.mxu0 %v334
        %346 = vmatpush.msra.mxu0 %v333
        %347 = vmatpush.msra.mxu0 %v332
        %348 = vmatpush.msra.mxu0 %v331
        %349 = vmatpush.msra.mxu0 %v330
        %350 = vmatpush.msra.mxu0 %v329
        %351 = vmatpush.msra.mxu0 %v328
        %352 = vmatpush.msra.mxu0 %v327
        %353 = vmatpush.msra.mxu0 %v326
        %354 = vmatpush.msra.mxu0 %v325
        %355 = vmatpush.msra.mxu0 %v324
        %356 = vmatmul.f32.gmra.mxu0 %v269
        %v357 = vpop.f32.mrf.mxu0
        %v358 = vadd.f32 0.0, %v357
        %359 = vmatmul.f32.gmra.mxu0 %v270
        %v360 = vpop.f32.mrf.mxu0
        %v361 = vadd.f32 0.0, %v360
        %362 = vmatmul.f32.gmra.mxu0 %v271
        %v363 = vpop.f32.mrf.mxu0
        %v364 = vadd.f32 0.0, %v363
        %365 = vmatmul.f32.gmra.mxu0 %v272
        %v366 = vpop.f32.mrf.mxu0
        %v367 = vadd.f32 0.0, %v366
        %368 = vmatmul.f32.gmra.mxu0 %v273
        %v369 = vpop.f32.mrf.mxu0
        %v370 = vadd.f32 0.0, %v369
        %371 = vmatmul.f32.gmra.mxu0 %v274
        %v372 = vpop.f32.mrf.mxu0
        %v373 = vadd.f32 0.0, %v372
        %374 = vmatmul.f32.gmra.mxu0 %v275
        %v375 = vpop.f32.mrf.mxu0
        %v376 = vadd.f32 0.0, %v375
        %377 = vmatmul.f32.gmra.mxu0 %v276
        %v378 = vpop.f32.mrf.mxu0
        %v379 = vadd.f32 0.0, %v378
        %380 = vmatmul.f32.gmra.mxu0 %v277
        %v381 = vpop.f32.mrf.mxu0
        %v382 = vadd.f32 0.0, %v381
        %383 = vmatmul.f32.gmra.mxu0 %v278
        %v384 = vpop.f32.mrf.mxu0
        %v385 = vadd.f32 0.0, %v384
        %386 = vmatmul.f32.gmra.mxu0 %v279
        %v387 = vpop.f32.mrf.mxu0
        %v388 = vadd.f32 0.0, %v387
        %389 = vmatmul.f32.gmra.mxu0 %v280
        %v390 = vpop.f32.mrf.mxu0
        %v391 = vadd.f32 0.0, %v390
        %392 = vmatmul.f32.gmra.mxu0 %v281
        %v393 = vpop.f32.mrf.mxu0
        %v394 = vadd.f32 0.0, %v393
        %395 = vmatmul.f32.gmra.mxu0 %v282
        %v396 = vpop.f32.mrf.mxu0
        %v397 = vadd.f32 0.0, %v396
        %398 = vmatmul.f32.gmra.mxu0 %v283
        %v399 = vpop.f32.mrf.mxu0
        %v400 = vadd.f32 0.0, %v399
        %401 = vmatmul.f32.gmra.mxu0 %v284
        %v402 = vpop.f32.mrf.mxu0
        %v403 = vadd.f32 0.0, %v402
        %404 = vmatmul.f32.gmra.mxu0 %v285
        %v405 = vpop.f32.mrf.mxu0
        %v406 = vadd.f32 0.0, %v405
        %407 = vmatmul.f32.gmra.mxu0 %v286
        %v408 = vpop.f32.mrf.mxu0
        %v409 = vadd.f32 0.0, %v408
        %410 = vmatmul.f32.gmra.mxu0 %v287
        %v411 = vpop.f32.mrf.mxu0
        %v412 = vadd.f32 0.0, %v411
        %413 = vmatmul.f32.gmra.mxu0 %v288
        %v414 = vpop.f32.mrf.mxu0
        %v415 = vadd.f32 0.0, %v414
        %416 = vmatmul.f32.gmra.mxu0 %v289
        %v417 = vpop.f32.mrf.mxu0
        %v418 = vadd.f32 0.0, %v417
        %419 = vmatmul.f32.gmra.mxu0 %v290
        %v420 = vpop.f32.mrf.mxu0
        %v421 = vadd.f32 0.0, %v420
        %422 = vmatmul.f32.gmra.mxu0 %v291
        %v423 = vpop.f32.mrf.mxu0
        %v424 = vadd.f32 0.0, %v423
        %425 = vmatmul.f32.gmra.mxu0 %v292
        %v426 = vpop.f32.mrf.mxu0
        %v427 = vadd.f32 0.0, %v426
        %428 = vmatmul.f32.gmra.mxu0 %v293
        %v429 = vpop.f32.mrf.mxu0
        %v430 = vadd.f32 0.0, %v429
        %431 = vmatmul.f32.gmra.mxu0 %v294
        %v432 = vpop.f32.mrf.mxu0
        %v433 = vadd.f32 0.0, %v432
        %434 = vmatmul.f32.gmra.mxu0 %v295
        %v435 = vpop.f32.mrf.mxu0
        %v436 = vadd.f32 0.0, %v435
        %437 = vmatmul.f32.gmra.mxu0 %v296
        %v438 = vpop.f32.mrf.mxu0
        %v439 = vadd.f32 0.0, %v438
        %440 = vmatmul.f32.gmra.mxu0 %v297
        %v441 = vpop.f32.mrf.mxu0
        %v442 = vadd.f32 0.0, %v441
        %443 = vmatmul.f32.gmra.mxu0 %v298
        %v444 = vpop.f32.mrf.mxu0
        %v445 = vadd.f32 0.0, %v444
        %446 = vmatmul.f32.gmra.mxu0 %v299
        %v447 = vpop.f32.mrf.mxu0
        %v448 = vadd.f32 0.0, %v447
        %449 = vmatmul.f32.gmra.mxu0 %v300
        %v450 = vpop.f32.mrf.mxu0
        %v451 = vadd.f32 0.0, %v450
        %452 = vmatmul.f32.gmra.mxu0 %v301
        %v453 = vpop.f32.mrf.mxu0
        %v454 = vadd.f32 0.0, %v453
        %455 = vmatmul.f32.gmra.mxu0 %v302
        %v456 = vpop.f32.mrf.mxu0
        %v457 = vadd.f32 0.0, %v456
        %458 = vmatmul.f32.gmra.mxu0 %v303
        %v459 = vpop.f32.mrf.mxu0
        %v460 = vadd.f32 0.0, %v459
        %461 = vmatmul.f32.gmra.mxu0 %v304
        %v462 = vpop.f32.mrf.mxu0
        %v463 = vadd.f32 0.0, %v462
        %464 = vmatmul.f32.gmra.mxu0 %v305
        %v465 = vpop.f32.mrf.mxu0
        %v466 = vadd.f32 0.0, %v465
        %467 = vmatmul.f32.gmra.mxu0 %v306
        %v468 = vpop.f32.mrf.mxu0
        %v469 = vadd.f32 0.0, %v468
        %470 = vmatmul.f32.gmra.mxu0 %v307
        %v471 = vpop.f32.mrf.mxu0
        %v472 = vadd.f32 0.0, %v471
        %473 = vmatmul.f32.gmra.mxu0 %v308
        %v474 = vpop.f32.mrf.mxu0
        %v475 = vadd.f32 0.0, %v474
        %476 = vmatmul.f32.gmra.mxu0 %v309
        %v477 = vpop.f32.mrf.mxu0
        %v478 = vadd.f32 0.0, %v477
        %479 = vmatmul.f32.gmra.mxu0 %v310
        %v480 = vpop.f32.mrf.mxu0
        %v481 = vadd.f32 0.0, %v480
        %482 = vmatmul.f32.gmra.mxu0 %v311
        %v483 = vpop.f32.mrf.mxu0
        %v484 = vadd.f32 0.0, %v483
        %485 = vmatmul.f32.gmra.mxu0 %v312
        %v486 = vpop.f32.mrf.mxu0
        %v487 = vadd.f32 0.0, %v486
        %488 = vmatmul.f32.gmra.mxu0 %v313
        %v489 = vpop.f32.mrf.mxu0
        %v490 = vadd.f32 0.0, %v489
        %491 = vmatmul.f32.gmra.mxu0 %v314
        %v492 = vpop.f32.mrf.mxu0
        %v493 = vadd.f32 0.0, %v492
        %494 = vmatmul.f32.gmra.mxu0 %v315
        %v495 = vpop.f32.mrf.mxu0
        %v496 = vadd.f32 0.0, %v495
        %497 = vmatmul.f32.gmra.mxu0 %v316
        %v498 = vpop.f32.mrf.mxu0
        %v499 = vadd.f32 0.0, %v498
        %500 = vmatmul.f32.gmra.mxu0 %v317
        %v501 = vpop.f32.mrf.mxu0
        %v502 = vadd.f32 0.0, %v501
        %503 = vmatmul.f32.gmra.mxu0 %v318
        %v504 = vpop.f32.mrf.mxu0
        %v505 = vadd.f32 0.0, %v504
        %506 = vmatmul.f32.gmra.mxu0 %v319
        %v507 = vpop.f32.mrf.mxu0
        %v508 = vadd.f32 0.0, %v507
        %509 = vmatmul.f32.gmra.mxu0 %v320
        %v510 = vpop.f32.mrf.mxu0
        %v511 = vadd.f32 0.0, %v510
        %512 = vmatmul.f32.gmra.mxu0 %v321
        %v513 = vpop.f32.mrf.mxu0
        %v514 = vadd.f32 0.0, %v513
        %515 = vmatmul.f32.gmra.mxu0 %v322
        %v516 = vpop.f32.mrf.mxu0
        %v517 = vadd.f32 0.0, %v516
        %518 = vdwg.mxu0
        %519 = vmatpush.msra.mxu0 %v268
        %520 = vmatpush.msra.mxu0 %v267
        %521 = vmatpush.msra.mxu0 %v266
        %522 = vmatpush.msra.mxu0 %v265
        %523 = vmatpush.msra.mxu0 %v264
        %524 = vmatpush.msra.mxu0 %v263
        %525 = vmatpush.msra.mxu0 %v262
        %526 = vmatpush.msra.mxu0 %v261
        %527 = vmatpush.msra.mxu0 %v260
        %528 = vmatpush.msra.mxu0 %v259
        %529 = vmatpush.msra.mxu0 %v258
        %530 = vmatpush.msra.mxu0 %v257
        %531 = vmatpush.msra.mxu0 %v256
        %532 = vmatpush.msra.mxu0 %v255
        %533 = vmatpush.msra.mxu0 %v254
        %534 = vmatpush.msra.mxu0 %v253
        %535 = vmatmul.f32.gmra.mxu0 %v199
        %v536 = vpop.f32.mrf.mxu0
        %v537 = vadd.f32 %v358, %v536
        %538 = vmatmul.f32.gmra.mxu0 %v200
        %v539 = vpop.f32.mrf.mxu0
        %v540 = vadd.f32 %v361, %v539
        %541 = vmatmul.f32.gmra.mxu0 %v201
        %v542 = vpop.f32.mrf.mxu0
        %v543 = vadd.f32 %v364, %v542
        %544 = vmatmul.f32.gmra.mxu0 %v202
        %v545 = vpop.f32.mrf.mxu0
        %v546 = vadd.f32 %v367, %v545
        %547 = vmatmul.f32.gmra.mxu0 %v203
        %v548 = vpop.f32.mrf.mxu0
        %v549 = vadd.f32 %v370, %v548
        %550 = vmatmul.f32.gmra.mxu0 %v204
        %v551 = vpop.f32.mrf.mxu0
        %v552 = vadd.f32 %v373, %v551
        %553 = vmatmul.f32.gmra.mxu0 %v205
        %v554 = vpop.f32.mrf.mxu0
        %v555 = vadd.f32 %v376, %v554
        %556 = vmatmul.f32.gmra.mxu0 %v206
        %v557 = vpop.f32.mrf.mxu0
        %v558 = vadd.f32 %v379, %v557
        %559 = vmatmul.f32.gmra.mxu0 %v207
        %v560 = vpop.f32.mrf.mxu0
        %v561 = vadd.f32 %v382, %v560
        %562 = vmatmul.f32.gmra.mxu0 %v208
        %v563 = vpop.f32.mrf.mxu0
        %v564 = vadd.f32 %v385, %v563
        %565 = vmatmul.f32.gmra.mxu0 %v209
        %v566 = vpop.f32.mrf.mxu0
        %v567 = vadd.f32 %v388, %v566
        %568 = vmatmul.f32.gmra.mxu0 %v210
        %v569 = vpop.f32.mrf.mxu0
        %v570 = vadd.f32 %v391, %v569
        %571 = vmatmul.f32.gmra.mxu0 %v211
        %v572 = vpop.f32.mrf.mxu0
        %v573 = vadd.f32 %v394, %v572
        %574 = vmatmul.f32.gmra.mxu0 %v212
        %v575 = vpop.f32.mrf.mxu0
        %v576 = vadd.f32 %v397, %v575
        %577 = vmatmul.f32.gmra.mxu0 %v213
        %v578 = vpop.f32.mrf.mxu0
        %v579 = vadd.f32 %v400, %v578
        %580 = vmatmul.f32.gmra.mxu0 %v214
        %v581 = vpop.f32.mrf.mxu0
        %v582 = vadd.f32 %v403, %v581
        %583 = vmatmul.f32.gmra.mxu0 %v215
        %v584 = vpop.f32.mrf.mxu0
        %v585 = vadd.f32 %v406, %v584
        %586 = vmatmul.f32.gmra.mxu0 %v216
        %v587 = vpop.f32.mrf.mxu0
        %v588 = vadd.f32 %v409, %v587
        %589 = vmatmul.f32.gmra.mxu0 %v217
        %v590 = vpop.f32.mrf.mxu0
        %v591 = vadd.f32 %v412, %v590
        %592 = vmatmul.f32.gmra.mxu0 %v218
        %v593 = vpop.f32.mrf.mxu0
        %v594 = vadd.f32 %v415, %v593
        %595 = vmatmul.f32.gmra.mxu0 %v219
        %v596 = vpop.f32.mrf.mxu0
        %v597 = vadd.f32 %v418, %v596
        %598 = vmatmul.f32.gmra.mxu0 %v220
        %v599 = vpop.f32.mrf.mxu0
        %v600 = vadd.f32 %v421, %v599
        %601 = vmatmul.f32.gmra.mxu0 %v221
        %v602 = vpop.f32.mrf.mxu0
        %v603 = vadd.f32 %v424, %v602
        %604 = vmatmul.f32.gmra.mxu0 %v222
        %v605 = vpop.f32.mrf.mxu0
        %v606 = vadd.f32 %v427, %v605
        %607 = vmatmul.f32.gmra.mxu0 %v223
        %v608 = vpop.f32.mrf.mxu0
        %v609 = vadd.f32 %v430, %v608
        %610 = vmatmul.f32.gmra.mxu0 %v224
        %v611 = vpop.f32.mrf.mxu0
        %v612 = vadd.f32 %v433, %v611
        %613 = vmatmul.f32.gmra.mxu0 %v225
        %v614 = vpop.f32.mrf.mxu0
        %v615 = vadd.f32 %v436, %v614
        %616 = vmatmul.f32.gmra.mxu0 %v226
        %v617 = vpop.f32.mrf.mxu0
        %v618 = vadd.f32 %v439, %v617
        %619 = vmatmul.f32.gmra.mxu0 %v227
        %v620 = vpop.f32.mrf.mxu0
        %v621 = vadd.f32 %v442, %v620
        %622 = vmatmul.f32.gmra.mxu0 %v228
        %v623 = vpop.f32.mrf.mxu0
        %v624 = vadd.f32 %v445, %v623
        %625 = vmatmul.f32.gmra.mxu0 %v229
        %v626 = vpop.f32.mrf.mxu0
        %v627 = vadd.f32 %v448, %v626
        %628 = vmatmul.f32.gmra.mxu0 %v230
        %v629 = vpop.f32.mrf.mxu0
        %v630 = vadd.f32 %v451, %v629
        %631 = vmatmul.f32.gmra.mxu0 %v231
        %v632 = vpop.f32.mrf.mxu0
        %v633 = vadd.f32 %v454, %v632
        %634 = vmatmul.f32.gmra.mxu0 %v232
        %v635 = vpop.f32.mrf.mxu0
        %v636 = vadd.f32 %v457, %v635
        %637 = vmatmul.f32.gmra.mxu0 %v233
        %v638 = vpop.f32.mrf.mxu0
        %v639 = vadd.f32 %v460, %v638
        %640 = vmatmul.f32.gmra.mxu0 %v234
        %v641 = vpop.f32.mrf.mxu0
        %v642 = vadd.f32 %v463, %v641
        %643 = vmatmul.f32.gmra.mxu0 %v235
        %v644 = vpop.f32.mrf.mxu0
        %v645 = vadd.f32 %v466, %v644
        %646 = vmatmul.f32.gmra.mxu0 %v236
        %v647 = vpop.f32.mrf.mxu0
        %v648 = vadd.f32 %v469, %v647
        %649 = vmatmul.f32.gmra.mxu0 %v237
        %v650 = vpop.f32.mrf.mxu0
        %v651 = vadd.f32 %v472, %v650
        %652 = vmatmul.f32.gmra.mxu0 %v238
        %v653 = vpop.f32.mrf.mxu0
        %v654 = vadd.f32 %v475, %v653
        %655 = vmatmul.f32.gmra.mxu0 %v239
        %v656 = vpop.f32.mrf.mxu0
        %v657 = vadd.f32 %v478, %v656
        %658 = vmatmul.f32.gmra.mxu0 %v240
        %v659 = vpop.f32.mrf.mxu0
        %v660 = vadd.f32 %v481, %v659
        %661 = vmatmul.f32.gmra.mxu0 %v241
        %v662 = vpop.f32.mrf.mxu0
        %v663 = vadd.f32 %v484, %v662
        %664 = vmatmul.f32.gmra.mxu0 %v242
        %v665 = vpop.f32.mrf.mxu0
        %v666 = vadd.f32 %v487, %v665
        %667 = vmatmul.f32.gmra.mxu0 %v243
        %v668 = vpop.f32.mrf.mxu0
        %v669 = vadd.f32 %v490, %v668
        %670 = vmatmul.f32.gmra.mxu0 %v244
        %v671 = vpop.f32.mrf.mxu0
        %v672 = vadd.f32 %v493, %v671
        %673 = vmatmul.f32.gmra.mxu0 %v245
        %v674 = vpop.f32.mrf.mxu0
        %v675 = vadd.f32 %v496, %v674
        %676 = vmatmul.f32.gmra.mxu0 %v246
        %v677 = vpop.f32.mrf.mxu0
        %v678 = vadd.f32 %v499, %v677
        %679 = vmatmul.f32.gmra.mxu0 %v247
        %v680 = vpop.f32.mrf.mxu0
        %v681 = vadd.f32 %v502, %v680
        %682 = vmatmul.f32.gmra.mxu0 %v248
        %v683 = vpop.f32.mrf.mxu0
        %v684 = vadd.f32 %v505, %v683
        %685 = vmatmul.f32.gmra.mxu0 %v249
        %v686 = vpop.f32.mrf.mxu0
        %v687 = vadd.f32 %v508, %v686
        %688 = vmatmul.f32.gmra.mxu0 %v250
        %v689 = vpop.f32.mrf.mxu0
        %v690 = vadd.f32 %v511, %v689
        %691 = vmatmul.f32.gmra.mxu0 %v251
        %v692 = vpop.f32.mrf.mxu0
        %v693 = vadd.f32 %v514, %v692
        %694 = vmatmul.f32.gmra.mxu0 %v252
        %v695 = vpop.f32.mrf.mxu0
        %v696 = vadd.f32 %v517, %v695
        %697 = vdwg.mxu0
        %v698 = vld [vmem:[%s198 + $0x4] sm:$0xff]
        %v699 = vld [vmem:[%s198 + $0xc] sm:$0xff]
        %v700 = vld [vmem:[%s198 + $0x14] sm:$0xff]
        %v701 = vld [vmem:[%s198 + $0x24] sm:$0xff]
        %v702 = vld [vmem:[%s198 + $0x2c] sm:$0xff]
        %v703 = vld [vmem:[%s198 + $0x34] sm:$0xff]
        %v704 = vld [vmem:[%s198 + $0x44] sm:$0xff]
        %v705 = vld [vmem:[%s198 + $0x4c] sm:$0xff]
        %v706 = vld [vmem:[%s198 + $0x54] sm:$0xff]
        %v707 = vld [vmem:[%s198 + $0x64] sm:$0xff]
        %v708 = vld [vmem:[%s198 + $0x6c] sm:$0xff]
        %v709 = vld [vmem:[%s198 + $0x74] sm:$0xff]
        %v710 = vld [vmem:[%s198 + $0x84] sm:$0xff]
        %v711 = vld [vmem:[%s198 + $0x8c] sm:$0xff]
        %v712 = vld [vmem:[%s198 + $0x94] sm:$0xff]
        %v713 = vld [vmem:[%s198 + $0xa4] sm:$0xff]
        %v714 = vld [vmem:[%s198 + $0xac] sm:$0xff]
        %v715 = vld [vmem:[%s198 + $0xb4] sm:$0xff]
        %v716 = vld [vmem:[%s198 + $0xc4] sm:$0xff]
        %v717 = vld [vmem:[%s198 + $0xcc] sm:$0xff]
        %v718 = vld [vmem:[%s198 + $0xd4] sm:$0xff]
        %v719 = vld [vmem:[%s198 + $0xe4] sm:$0xff]
        %v720 = vld [vmem:[%s198 + $0xec] sm:$0xff]
        %v721 = vld [vmem:[%s198 + $0xf4] sm:$0xff]
        %v722 = vld [vmem:[%s198 + $0x104] sm:$0xff]
        %v723 = vld [vmem:[%s198 + $0x10c] sm:$0xff]
        %v724 = vld [vmem:[%s198 + $0x114] sm:$0xff]
        %v725 = vld [vmem:[%s198 + $0x124] sm:$0xff]
        %v726 = vld [vmem:[%s198 + $0x12c] sm:$0xff]
        %v727 = vld [vmem:[%s198 + $0x134] sm:$0xff]
        %v728 = vld [vmem:[%s198 + $0x144] sm:$0xff]
        %v729 = vld [vmem:[%s198 + $0x14c] sm:$0xff]
        %v730 = vld [vmem:[%s198 + $0x154] sm:$0xff]
        %v731 = vld [vmem:[%s198 + $0x164] sm:$0xff]
        %v732 = vld [vmem:[%s198 + $0x16c] sm:$0xff]
        %v733 = vld [vmem:[%s198 + $0x174] sm:$0xff]
        %v734 = vld [vmem:[%s198 + $0x184] sm:$0xff]
        %v735 = vld [vmem:[%s198 + $0x18c] sm:$0xff]
        %v736 = vld [vmem:[%s198 + $0x194] sm:$0xff]
        %v737 = vld [vmem:[%s198 + $0x1a4] sm:$0xff]
        %v738 = vld [vmem:[%s198 + $0x1ac] sm:$0xff]
        %v739 = vld [vmem:[%s198 + $0x1b4] sm:$0xff]
        %v740 = vld [vmem:[%s198 + $0x1c4] sm:$0xff]
        %v741 = vld [vmem:[%s198 + $0x1cc] sm:$0xff]
        %v742 = vld [vmem:[%s198 + $0x1d4] sm:$0xff]
        %v743 = vld [vmem:[%s198 + $0x1e4] sm:$0xff]
        %v744 = vld [vmem:[%s198 + $0x1ec] sm:$0xff]
        %v745 = vld [vmem:[%s198 + $0x1f4] sm:$0xff]
        %v746 = vld [vmem:[%s198 + $0x204] sm:$0xff]
        %v747 = vld [vmem:[%s198 + $0x20c] sm:$0xff]
        %v748 = vld [vmem:[%s198 + $0x214] sm:$0xff]
        %v749 = vld [vmem:[%s198 + $0x224] sm:$0xff]
        %v750 = vld [vmem:[%s198 + $0x22c] sm:$0xff]
        %v751 = vld [vmem:[%s198 + $0x234] sm:$0xff]
        %s752 = scalar_lea.vmem %s1, 256
        %v753 = vld [vmem:[%s752] sm:$0xff]
        %v754 = vld [vmem:[%s752 + $0x8] sm:$0xff]
        %v755 = vld [vmem:[%s752 + $0x10] sm:$0xff]
        %v756 = vld [vmem:[%s752 + $0x18] sm:$0xff]
        %v757 = vld [vmem:[%s752 + $0x20] sm:$0xff]
        %v758 = vld [vmem:[%s752 + $0x28] sm:$0xff]
        %v759 = vld [vmem:[%s752 + $0x30] sm:$0xff]
        %v760 = vld [vmem:[%s752 + $0x38] sm:$0xff]
        %v761 = vld [vmem:[%s752 + $0x40] sm:$0xff]
        %v762 = vld [vmem:[%s752 + $0x48] sm:$0xff]
        %v763 = vld [vmem:[%s752 + $0x50] sm:$0xff]
        %v764 = vld [vmem:[%s752 + $0x58] sm:$0xff]
        %v765 = vld [vmem:[%s752 + $0x60] sm:$0xff]
        %v766 = vld [vmem:[%s752 + $0x68] sm:$0xff]
        %v767 = vld [vmem:[%s752 + $0x70] sm:$0xff]
        %v768 = vld [vmem:[%s752 + $0x78] sm:$0xff]
        %769 = vmatpush.msra.mxu0 %v768
        %770 = vmatpush.msra.mxu0 %v767
        %771 = vmatpush.msra.mxu0 %v766
        %772 = vmatpush.msra.mxu0 %v765
        %773 = vmatpush.msra.mxu0 %v764
        %774 = vmatpush.msra.mxu0 %v763
        %775 = vmatpush.msra.mxu0 %v762
        %776 = vmatpush.msra.mxu0 %v761
        %777 = vmatpush.msra.mxu0 %v760
        %778 = vmatpush.msra.mxu0 %v759
        %779 = vmatpush.msra.mxu0 %v758
        %780 = vmatpush.msra.mxu0 %v757
        %781 = vmatpush.msra.mxu0 %v756
        %782 = vmatpush.msra.mxu0 %v755
        %783 = vmatpush.msra.mxu0 %v754
        %784 = vmatpush.msra.mxu0 %v753
        %785 = vmatmul.f32.gmra.mxu0 %v698
        %v786 = vpop.f32.mrf.mxu0
        %v787 = vadd.f32 0.0, %v786
        %788 = vmatmul.f32.gmra.mxu0 %v699
        %v789 = vpop.f32.mrf.mxu0
        %v790 = vadd.f32 0.0, %v789
        %791 = vmatmul.f32.gmra.mxu0 %v700
        %v792 = vpop.f32.mrf.mxu0
        %v793 = vadd.f32 0.0, %v792
        %794 = vmatmul.f32.gmra.mxu0 %v701
        %v795 = vpop.f32.mrf.mxu0
        %v796 = vadd.f32 0.0, %v795
        %797 = vmatmul.f32.gmra.mxu0 %v702
        %v798 = vpop.f32.mrf.mxu0
        %v799 = vadd.f32 0.0, %v798
        %800 = vmatmul.f32.gmra.mxu0 %v703
        %v801 = vpop.f32.mrf.mxu0
        %v802 = vadd.f32 0.0, %v801
        %803 = vmatmul.f32.gmra.mxu0 %v704
        %v804 = vpop.f32.mrf.mxu0
        %v805 = vadd.f32 0.0, %v804
        %806 = vmatmul.f32.gmra.mxu0 %v705
        %v807 = vpop.f32.mrf.mxu0
        %v808 = vadd.f32 0.0, %v807
        %809 = vmatmul.f32.gmra.mxu0 %v706
        %v810 = vpop.f32.mrf.mxu0
        %v811 = vadd.f32 0.0, %v810
        %812 = vmatmul.f32.gmra.mxu0 %v707
        %v813 = vpop.f32.mrf.mxu0
        %v814 = vadd.f32 0.0, %v813
        %815 = vmatmul.f32.gmra.mxu0 %v708
        %v816 = vpop.f32.mrf.mxu0
        %v817 = vadd.f32 0.0, %v816
        %818 = vmatmul.f32.gmra.mxu0 %v709
        %v819 = vpop.f32.mrf.mxu0
        %v820 = vadd.f32 0.0, %v819
        %821 = vmatmul.f32.gmra.mxu0 %v710
        %v822 = vpop.f32.mrf.mxu0
        %v823 = vadd.f32 0.0, %v822
        %824 = vmatmul.f32.gmra.mxu0 %v711
        %v825 = vpop.f32.mrf.mxu0
        %v826 = vadd.f32 0.0, %v825
        %827 = vmatmul.f32.gmra.mxu0 %v712
        %v828 = vpop.f32.mrf.mxu0
        %v829 = vadd.f32 0.0, %v828
        %830 = vmatmul.f32.gmra.mxu0 %v713
        %v831 = vpop.f32.mrf.mxu0
        %v832 = vadd.f32 0.0, %v831
        %833 = vmatmul.f32.gmra.mxu0 %v714
        %v834 = vpop.f32.mrf.mxu0
        %v835 = vadd.f32 0.0, %v834
        %836 = vmatmul.f32.gmra.mxu0 %v715
        %v837 = vpop.f32.mrf.mxu0
        %v838 = vadd.f32 0.0, %v837
        %839 = vmatmul.f32.gmra.mxu0 %v716
        %v840 = vpop.f32.mrf.mxu0
        %v841 = vadd.f32 0.0, %v840
        %842 = vmatmul.f32.gmra.mxu0 %v717
        %v843 = vpop.f32.mrf.mxu0
        %v844 = vadd.f32 0.0, %v843
        %845 = vmatmul.f32.gmra.mxu0 %v718
        %v846 = vpop.f32.mrf.mxu0
        %v847 = vadd.f32 0.0, %v846
        %848 = vmatmul.f32.gmra.mxu0 %v719
        %v849 = vpop.f32.mrf.mxu0
        %v850 = vadd.f32 0.0, %v849
        %851 = vmatmul.f32.gmra.mxu0 %v720
        %v852 = vpop.f32.mrf.mxu0
        %v853 = vadd.f32 0.0, %v852
        %854 = vmatmul.f32.gmra.mxu0 %v721
        %v855 = vpop.f32.mrf.mxu0
        %v856 = vadd.f32 0.0, %v855
        %857 = vmatmul.f32.gmra.mxu0 %v722
        %v858 = vpop.f32.mrf.mxu0
        %v859 = vadd.f32 0.0, %v858
        %860 = vmatmul.f32.gmra.mxu0 %v723
        %v861 = vpop.f32.mrf.mxu0
        %v862 = vadd.f32 0.0, %v861
        %863 = vmatmul.f32.gmra.mxu0 %v724
        %v864 = vpop.f32.mrf.mxu0
        %v865 = vadd.f32 0.0, %v864
        %866 = vmatmul.f32.gmra.mxu0 %v725
        %v867 = vpop.f32.mrf.mxu0
        %v868 = vadd.f32 0.0, %v867
        %869 = vmatmul.f32.gmra.mxu0 %v726
        %v870 = vpop.f32.mrf.mxu0
        %v871 = vadd.f32 0.0, %v870
        %872 = vmatmul.f32.gmra.mxu0 %v727
        %v873 = vpop.f32.mrf.mxu0
        %v874 = vadd.f32 0.0, %v873
        %875 = vmatmul.f32.gmra.mxu0 %v728
        %v876 = vpop.f32.mrf.mxu0
        %v877 = vadd.f32 0.0, %v876
        %878 = vmatmul.f32.gmra.mxu0 %v729
        %v879 = vpop.f32.mrf.mxu0
        %v880 = vadd.f32 0.0, %v879
        %881 = vmatmul.f32.gmra.mxu0 %v730
        %v882 = vpop.f32.mrf.mxu0
        %v883 = vadd.f32 0.0, %v882
        %884 = vmatmul.f32.gmra.mxu0 %v731
        %v885 = vpop.f32.mrf.mxu0
        %v886 = vadd.f32 0.0, %v885
        %887 = vmatmul.f32.gmra.mxu0 %v732
        %v888 = vpop.f32.mrf.mxu0
        %v889 = vadd.f32 0.0, %v888
        %890 = vmatmul.f32.gmra.mxu0 %v733
        %v891 = vpop.f32.mrf.mxu0
        %v892 = vadd.f32 0.0, %v891
        %893 = vmatmul.f32.gmra.mxu0 %v734
        %v894 = vpop.f32.mrf.mxu0
        %v895 = vadd.f32 0.0, %v894
        %896 = vmatmul.f32.gmra.mxu0 %v735
        %v897 = vpop.f32.mrf.mxu0
        %v898 = vadd.f32 0.0, %v897
        %899 = vmatmul.f32.gmra.mxu0 %v736
        %v900 = vpop.f32.mrf.mxu0
        %v901 = vadd.f32 0.0, %v900
        %902 = vmatmul.f32.gmra.mxu0 %v737
        %v903 = vpop.f32.mrf.mxu0
        %v904 = vadd.f32 0.0, %v903
        %905 = vmatmul.f32.gmra.mxu0 %v738
        %v906 = vpop.f32.mrf.mxu0
        %v907 = vadd.f32 0.0, %v906
        %908 = vmatmul.f32.gmra.mxu0 %v739
        %v909 = vpop.f32.mrf.mxu0
        %v910 = vadd.f32 0.0, %v909
        %911 = vmatmul.f32.gmra.mxu0 %v740
        %v912 = vpop.f32.mrf.mxu0
        %v913 = vadd.f32 0.0, %v912
        %914 = vmatmul.f32.gmra.mxu0 %v741
        %v915 = vpop.f32.mrf.mxu0
        %v916 = vadd.f32 0.0, %v915
        %917 = vmatmul.f32.gmra.mxu0 %v742
        %v918 = vpop.f32.mrf.mxu0
        %v919 = vadd.f32 0.0, %v918
        %920 = vmatmul.f32.gmra.mxu0 %v743
        %v921 = vpop.f32.mrf.mxu0
        %v922 = vadd.f32 0.0, %v921
        %923 = vmatmul.f32.gmra.mxu0 %v744
        %v924 = vpop.f32.mrf.mxu0
        %v925 = vadd.f32 0.0, %v924
        %926 = vmatmul.f32.gmra.mxu0 %v745
        %v927 = vpop.f32.mrf.mxu0
        %v928 = vadd.f32 0.0, %v927
        %929 = vmatmul.f32.gmra.mxu0 %v746
        %v930 = vpop.f32.mrf.mxu0
        %v931 = vadd.f32 0.0, %v930
        %932 = vmatmul.f32.gmra.mxu0 %v747
        %v933 = vpop.f32.mrf.mxu0
        %v934 = vadd.f32 0.0, %v933
        %935 = vmatmul.f32.gmra.mxu0 %v748
        %v936 = vpop.f32.mrf.mxu0
        %v937 = vadd.f32 0.0, %v936
        %938 = vmatmul.f32.gmra.mxu0 %v749
        %v939 = vpop.f32.mrf.mxu0
        %v940 = vadd.f32 0.0, %v939
        %941 = vmatmul.f32.gmra.mxu0 %v750
        %v942 = vpop.f32.mrf.mxu0
        %v943 = vadd.f32 0.0, %v942
        %944 = vmatmul.f32.gmra.mxu0 %v751
        %v945 = vpop.f32.mrf.mxu0
        %v946 = vadd.f32 0.0, %v945
        %947 = vdwg.mxu0
        %v948 = vadd.f32 %v537, %v787
        %v949 = vadd.f32 %v540, %v790
        %v950 = vadd.f32 %v543, %v793
        %v951 = vadd.f32 %v546, %v796
        %v952 = vadd.f32 %v549, %v799
        %v953 = vadd.f32 %v552, %v802
        %v954 = vadd.f32 %v555, %v805
        %v955 = vadd.f32 %v558, %v808
        %v956 = vadd.f32 %v561, %v811
        %v957 = vadd.f32 %v564, %v814
        %v958 = vadd.f32 %v567, %v817
        %v959 = vadd.f32 %v570, %v820
        %v960 = vadd.f32 %v573, %v823
        %v961 = vadd.f32 %v576, %v826
        %v962 = vadd.f32 %v579, %v829
        %v963 = vadd.f32 %v582, %v832
        %v964 = vadd.f32 %v585, %v835
        %v965 = vadd.f32 %v588, %v838
        %v966 = vadd.f32 %v591, %v841
        %v967 = vadd.f32 %v594, %v844
        %v968 = vadd.f32 %v597, %v847
        %v969 = vadd.f32 %v600, %v850
        %v970 = vadd.f32 %v603, %v853
        %v971 = vadd.f32 %v606, %v856
        %v972 = vadd.f32 %v609, %v859
        %v973 = vadd.f32 %v612, %v862
        %v974 = vadd.f32 %v615, %v865
        %v975 = vadd.f32 %v618, %v868
        %v976 = vadd.f32 %v621, %v871
        %v977 = vadd.f32 %v624, %v874
        %v978 = vadd.f32 %v627, %v877
        %v979 = vadd.f32 %v630, %v880
        %v980 = vadd.f32 %v633, %v883
        %v981 = vadd.f32 %v636, %v886
        %v982 = vadd.f32 %v639, %v889
        %v983 = vadd.f32 %v642, %v892
        %v984 = vadd.f32 %v645, %v895
        %v985 = vadd.f32 %v648, %v898
        %v986 = vadd.f32 %v651, %v901
        %v987 = vadd.f32 %v654, %v904
        %v988 = vadd.f32 %v657, %v907
        %v989 = vadd.f32 %v660, %v910
        %v990 = vadd.f32 %v663, %v913
        %v991 = vadd.f32 %v666, %v916
        %v992 = vadd.f32 %v669, %v919
        %v993 = vadd.f32 %v672, %v922
        %v994 = vadd.f32 %v675, %v925
        %v995 = vadd.f32 %v678, %v928
        %v996 = vadd.f32 %v681, %v931
        %v997 = vadd.f32 %v684, %v934
        %v998 = vadd.f32 %v687, %v937
        %v999 = vadd.f32 %v690, %v940
        %v1000 = vadd.f32 %v693, %v943
        %v1001 = vadd.f32 %v696, %v946
        %s1002 = sadd.s32 %s196, 2
        %s1003 = smul.u32 %s1002, 32
        %s1004 = scalar_lea.vmem %s195, %s1003
        %v1005 = vld [vmem:[%s1004] sm:$0xff]
        %v1006 = vld [vmem:[%s1004 + $0x8] sm:$0xff]
        %v1007 = vld [vmem:[%s1004 + $0x10] sm:$0xff]
        %v1008 = vld [vmem:[%s1004 + $0x20] sm:$0xff]
        %v1009 = vld [vmem:[%s1004 + $0x28] sm:$0xff]
        %v1010 = vld [vmem:[%s1004 + $0x30] sm:$0xff]
        %v1011 = vld [vmem:[%s1004 + $0x40] sm:$0xff]
        %v1012 = vld [vmem:[%s1004 + $0x48] sm:$0xff]
        %v1013 = vld [vmem:[%s1004 + $0x50] sm:$0xff]
        %v1014 = vld [vmem:[%s1004 + $0x60] sm:$0xff]
        %v1015 = vld [vmem:[%s1004 + $0x68] sm:$0xff]
        %v1016 = vld [vmem:[%s1004 + $0x70] sm:$0xff]
        %v1017 = vld [vmem:[%s1004 + $0x80] sm:$0xff]
        %v1018 = vld [vmem:[%s1004 + $0x88] sm:$0xff]
        %v1019 = vld [vmem:[%s1004 + $0x90] sm:$0xff]
        %v1020 = vld [vmem:[%s1004 + $0xa0] sm:$0xff]
        %v1021 = vld [vmem:[%s1004 + $0xa8] sm:$0xff]
        %v1022 = vld [vmem:[%s1004 + $0xb0] sm:$0xff]
        %v1023 = vld [vmem:[%s1004 + $0xc0] sm:$0xff]
        %v1024 = vld [vmem:[%s1004 + $0xc8] sm:$0xff]
        %v1025 = vld [vmem:[%s1004 + $0xd0] sm:$0xff]
        %v1026 = vld [vmem:[%s1004 + $0xe0] sm:$0xff]
        %v1027 = vld [vmem:[%s1004 + $0xe8] sm:$0xff]
        %v1028 = vld [vmem:[%s1004 + $0xf0] sm:$0xff]
        %v1029 = vld [vmem:[%s1004 + $0x100] sm:$0xff]
        %v1030 = vld [vmem:[%s1004 + $0x108] sm:$0xff]
        %v1031 = vld [vmem:[%s1004 + $0x110] sm:$0xff]
        %v1032 = vld [vmem:[%s1004 + $0x120] sm:$0xff]
        %v1033 = vld [vmem:[%s1004 + $0x128] sm:$0xff]
        %v1034 = vld [vmem:[%s1004 + $0x130] sm:$0xff]
        %v1035 = vld [vmem:[%s1004 + $0x140] sm:$0xff]
        %v1036 = vld [vmem:[%s1004 + $0x148] sm:$0xff]
        %v1037 = vld [vmem:[%s1004 + $0x150] sm:$0xff]
        %v1038 = vld [vmem:[%s1004 + $0x160] sm:$0xff]
        %v1039 = vld [vmem:[%s1004 + $0x168] sm:$0xff]
        %v1040 = vld [vmem:[%s1004 + $0x170] sm:$0xff]
        %v1041 = vld [vmem:[%s1004 + $0x180] sm:$0xff]
        %v1042 = vld [vmem:[%s1004 + $0x188] sm:$0xff]
        %v1043 = vld [vmem:[%s1004 + $0x190] sm:$0xff]
        %v1044 = vld [vmem:[%s1004 + $0x1a0] sm:$0xff]
        %v1045 = vld [vmem:[%s1004 + $0x1a8] sm:$0xff]
        %v1046 = vld [vmem:[%s1004 + $0x1b0] sm:$0xff]
        %v1047 = vld [vmem:[%s1004 + $0x1c0] sm:$0xff]
        %v1048 = vld [vmem:[%s1004 + $0x1c8] sm:$0xff]
        %v1049 = vld [vmem:[%s1004 + $0x1d0] sm:$0xff]
        %v1050 = vld [vmem:[%s1004 + $0x1e0] sm:$0xff]
        %v1051 = vld [vmem:[%s1004 + $0x1e8] sm:$0xff]
        %v1052 = vld [vmem:[%s1004 + $0x1f0] sm:$0xff]
        %v1053 = vld [vmem:[%s1004 + $0x200] sm:$0xff]
        %v1054 = vld [vmem:[%s1004 + $0x208] sm:$0xff]
        %v1055 = vld [vmem:[%s1004 + $0x210] sm:$0xff]
        %v1056 = vld [vmem:[%s1004 + $0x220] sm:$0xff]
        %v1057 = vld [vmem:[%s1004 + $0x228] sm:$0xff]
        %v1058 = vld [vmem:[%s1004 + $0x230] sm:$0xff]
        %s1059 = scalar_lea.vmem %s1, 384
        %v1060 = vld [vmem:[%s1059] sm:$0xff]
        %v1061 = vld [vmem:[%s1059 + $0x8] sm:$0xff]
        %v1062 = vld [vmem:[%s1059 + $0x10] sm:$0xff]
        %v1063 = vld [vmem:[%s1059 + $0x18] sm:$0xff]
        %v1064 = vld [vmem:[%s1059 + $0x20] sm:$0xff]
        %v1065 = vld [vmem:[%s1059 + $0x28] sm:$0xff]
        %v1066 = vld [vmem:[%s1059 + $0x30] sm:$0xff]
        %v1067 = vld [vmem:[%s1059 + $0x38] sm:$0xff]
        %v1068 = vld [vmem:[%s1059 + $0x40] sm:$0xff]
        %v1069 = vld [vmem:[%s1059 + $0x48] sm:$0xff]
        %v1070 = vld [vmem:[%s1059 + $0x50] sm:$0xff]
        %v1071 = vld [vmem:[%s1059 + $0x58] sm:$0xff]
        %v1072 = vld [vmem:[%s1059 + $0x60] sm:$0xff]
        %v1073 = vld [vmem:[%s1059 + $0x68] sm:$0xff]
        %v1074 = vld [vmem:[%s1059 + $0x70] sm:$0xff]
        %v1075 = vld [vmem:[%s1059 + $0x78] sm:$0xff]
        %1076 = vmatpush.msra.mxu0 %v1075
        %1077 = vmatpush.msra.mxu0 %v1074
        %1078 = vmatpush.msra.mxu0 %v1073
        %1079 = vmatpush.msra.mxu0 %v1072
        %1080 = vmatpush.msra.mxu0 %v1071
        %1081 = vmatpush.msra.mxu0 %v1070
        %1082 = vmatpush.msra.mxu0 %v1069
        %1083 = vmatpush.msra.mxu0 %v1068
        %1084 = vmatpush.msra.mxu0 %v1067
        %1085 = vmatpush.msra.mxu0 %v1066
        %1086 = vmatpush.msra.mxu0 %v1065
        %1087 = vmatpush.msra.mxu0 %v1064
        %1088 = vmatpush.msra.mxu0 %v1063
        %1089 = vmatpush.msra.mxu0 %v1062
        %1090 = vmatpush.msra.mxu0 %v1061
        %1091 = vmatpush.msra.mxu0 %v1060
        %1092 = vmatmul.f32.gmra.mxu0 %v1005
        %v1093 = vpop.f32.mrf.mxu0
        %v1094 = vadd.f32 0.0, %v1093
        %1095 = vmatmul.f32.gmra.mxu0 %v1006
        %v1096 = vpop.f32.mrf.mxu0
        %v1097 = vadd.f32 0.0, %v1096
        %1098 = vmatmul.f32.gmra.mxu0 %v1007
        %v1099 = vpop.f32.mrf.mxu0
        %v1100 = vadd.f32 0.0, %v1099
        %1101 = vmatmul.f32.gmra.mxu0 %v1008
        %v1102 = vpop.f32.mrf.mxu0
        %v1103 = vadd.f32 0.0, %v1102
        %1104 = vmatmul.f32.gmra.mxu0 %v1009
        %v1105 = vpop.f32.mrf.mxu0
        %v1106 = vadd.f32 0.0, %v1105
        %1107 = vmatmul.f32.gmra.mxu0 %v1010
        %v1108 = vpop.f32.mrf.mxu0
        %v1109 = vadd.f32 0.0, %v1108
        %1110 = vmatmul.f32.gmra.mxu0 %v1011
        %v1111 = vpop.f32.mrf.mxu0
        %v1112 = vadd.f32 0.0, %v1111
        %1113 = vmatmul.f32.gmra.mxu0 %v1012
        %v1114 = vpop.f32.mrf.mxu0
        %v1115 = vadd.f32 0.0, %v1114
        %1116 = vmatmul.f32.gmra.mxu0 %v1013
        %v1117 = vpop.f32.mrf.mxu0
        %v1118 = vadd.f32 0.0, %v1117
        %1119 = vmatmul.f32.gmra.mxu0 %v1014
        %v1120 = vpop.f32.mrf.mxu0
        %v1121 = vadd.f32 0.0, %v1120
        %1122 = vmatmul.f32.gmra.mxu0 %v1015
        %v1123 = vpop.f32.mrf.mxu0
        %v1124 = vadd.f32 0.0, %v1123
        %1125 = vmatmul.f32.gmra.mxu0 %v1016
        %v1126 = vpop.f32.mrf.mxu0
        %v1127 = vadd.f32 0.0, %v1126
        %1128 = vmatmul.f32.gmra.mxu0 %v1017
        %v1129 = vpop.f32.mrf.mxu0
        %v1130 = vadd.f32 0.0, %v1129
        %1131 = vmatmul.f32.gmra.mxu0 %v1018
        %v1132 = vpop.f32.mrf.mxu0
        %v1133 = vadd.f32 0.0, %v1132
        %1134 = vmatmul.f32.gmra.mxu0 %v1019
        %v1135 = vpop.f32.mrf.mxu0
        %v1136 = vadd.f32 0.0, %v1135
        %1137 = vmatmul.f32.gmra.mxu0 %v1020
        %v1138 = vpop.f32.mrf.mxu0
        %v1139 = vadd.f32 0.0, %v1138
        %1140 = vmatmul.f32.gmra.mxu0 %v1021
        %v1141 = vpop.f32.mrf.mxu0
        %v1142 = vadd.f32 0.0, %v1141
        %1143 = vmatmul.f32.gmra.mxu0 %v1022
        %v1144 = vpop.f32.mrf.mxu0
        %v1145 = vadd.f32 0.0, %v1144
        %1146 = vmatmul.f32.gmra.mxu0 %v1023
        %v1147 = vpop.f32.mrf.mxu0
        %v1148 = vadd.f32 0.0, %v1147
        %1149 = vmatmul.f32.gmra.mxu0 %v1024
        %v1150 = vpop.f32.mrf.mxu0
        %v1151 = vadd.f32 0.0, %v1150
        %1152 = vmatmul.f32.gmra.mxu0 %v1025
        %v1153 = vpop.f32.mrf.mxu0
        %v1154 = vadd.f32 0.0, %v1153
        %1155 = vmatmul.f32.gmra.mxu0 %v1026
        %v1156 = vpop.f32.mrf.mxu0
        %v1157 = vadd.f32 0.0, %v1156
        %1158 = vmatmul.f32.gmra.mxu0 %v1027
        %v1159 = vpop.f32.mrf.mxu0
        %v1160 = vadd.f32 0.0, %v1159
        %1161 = vmatmul.f32.gmra.mxu0 %v1028
        %v1162 = vpop.f32.mrf.mxu0
        %v1163 = vadd.f32 0.0, %v1162
        %1164 = vmatmul.f32.gmra.mxu0 %v1029
        %v1165 = vpop.f32.mrf.mxu0
        %v1166 = vadd.f32 0.0, %v1165
        %1167 = vmatmul.f32.gmra.mxu0 %v1030
        %v1168 = vpop.f32.mrf.mxu0
        %v1169 = vadd.f32 0.0, %v1168
        %1170 = vmatmul.f32.gmra.mxu0 %v1031
        %v1171 = vpop.f32.mrf.mxu0
        %v1172 = vadd.f32 0.0, %v1171
        %1173 = vmatmul.f32.gmra.mxu0 %v1032
        %v1174 = vpop.f32.mrf.mxu0
        %v1175 = vadd.f32 0.0, %v1174
        %1176 = vmatmul.f32.gmra.mxu0 %v1033
        %v1177 = vpop.f32.mrf.mxu0
        %v1178 = vadd.f32 0.0, %v1177
        %1179 = vmatmul.f32.gmra.mxu0 %v1034
        %v1180 = vpop.f32.mrf.mxu0
        %v1181 = vadd.f32 0.0, %v1180
        %1182 = vmatmul.f32.gmra.mxu0 %v1035
        %v1183 = vpop.f32.mrf.mxu0
        %v1184 = vadd.f32 0.0, %v1183
        %1185 = vmatmul.f32.gmra.mxu0 %v1036
        %v1186 = vpop.f32.mrf.mxu0
        %v1187 = vadd.f32 0.0, %v1186
        %1188 = vmatmul.f32.gmra.mxu0 %v1037
        %v1189 = vpop.f32.mrf.mxu0
        %v1190 = vadd.f32 0.0, %v1189
        %1191 = vmatmul.f32.gmra.mxu0 %v1038
        %v1192 = vpop.f32.mrf.mxu0
        %v1193 = vadd.f32 0.0, %v1192
        %1194 = vmatmul.f32.gmra.mxu0 %v1039
        %v1195 = vpop.f32.mrf.mxu0
        %v1196 = vadd.f32 0.0, %v1195
        %1197 = vmatmul.f32.gmra.mxu0 %v1040
        %v1198 = vpop.f32.mrf.mxu0
        %v1199 = vadd.f32 0.0, %v1198
        %1200 = vmatmul.f32.gmra.mxu0 %v1041
        %v1201 = vpop.f32.mrf.mxu0
        %v1202 = vadd.f32 0.0, %v1201
        %1203 = vmatmul.f32.gmra.mxu0 %v1042
        %v1204 = vpop.f32.mrf.mxu0
        %v1205 = vadd.f32 0.0, %v1204
        %1206 = vmatmul.f32.gmra.mxu0 %v1043
        %v1207 = vpop.f32.mrf.mxu0
        %v1208 = vadd.f32 0.0, %v1207
        %1209 = vmatmul.f32.gmra.mxu0 %v1044
        %v1210 = vpop.f32.mrf.mxu0
        %v1211 = vadd.f32 0.0, %v1210
        %1212 = vmatmul.f32.gmra.mxu0 %v1045
        %v1213 = vpop.f32.mrf.mxu0
        %v1214 = vadd.f32 0.0, %v1213
        %1215 = vmatmul.f32.gmra.mxu0 %v1046
        %v1216 = vpop.f32.mrf.mxu0
        %v1217 = vadd.f32 0.0, %v1216
        %1218 = vmatmul.f32.gmra.mxu0 %v1047
        %v1219 = vpop.f32.mrf.mxu0
        %v1220 = vadd.f32 0.0, %v1219
        %1221 = vmatmul.f32.gmra.mxu0 %v1048
        %v1222 = vpop.f32.mrf.mxu0
        %v1223 = vadd.f32 0.0, %v1222
        %1224 = vmatmul.f32.gmra.mxu0 %v1049
        %v1225 = vpop.f32.mrf.mxu0
        %v1226 = vadd.f32 0.0, %v1225
        %1227 = vmatmul.f32.gmra.mxu0 %v1050
        %v1228 = vpop.f32.mrf.mxu0
        %v1229 = vadd.f32 0.0, %v1228
        %1230 = vmatmul.f32.gmra.mxu0 %v1051
        %v1231 = vpop.f32.mrf.mxu0
        %v1232 = vadd.f32 0.0, %v1231
        %1233 = vmatmul.f32.gmra.mxu0 %v1052
        %v1234 = vpop.f32.mrf.mxu0
        %v1235 = vadd.f32 0.0, %v1234
        %1236 = vmatmul.f32.gmra.mxu0 %v1053
        %v1237 = vpop.f32.mrf.mxu0
        %v1238 = vadd.f32 0.0, %v1237
        %1239 = vmatmul.f32.gmra.mxu0 %v1054
        %v1240 = vpop.f32.mrf.mxu0
        %v1241 = vadd.f32 0.0, %v1240
        %1242 = vmatmul.f32.gmra.mxu0 %v1055
        %v1243 = vpop.f32.mrf.mxu0
        %v1244 = vadd.f32 0.0, %v1243
        %1245 = vmatmul.f32.gmra.mxu0 %v1056
        %v1246 = vpop.f32.mrf.mxu0
        %v1247 = vadd.f32 0.0, %v1246
        %1248 = vmatmul.f32.gmra.mxu0 %v1057
        %v1249 = vpop.f32.mrf.mxu0
        %v1250 = vadd.f32 0.0, %v1249
        %1251 = vmatmul.f32.gmra.mxu0 %v1058
        %v1252 = vpop.f32.mrf.mxu0
        %v1253 = vadd.f32 0.0, %v1252
        %1254 = vdwg.mxu0
        %v1255 = vadd.f32 %v948, %v1094
        %v1256 = vadd.f32 %v949, %v1097
        %v1257 = vadd.f32 %v950, %v1100
        %v1258 = vadd.f32 %v951, %v1103
        %v1259 = vadd.f32 %v952, %v1106
        %v1260 = vadd.f32 %v953, %v1109
        %v1261 = vadd.f32 %v954, %v1112
        %v1262 = vadd.f32 %v955, %v1115
        %v1263 = vadd.f32 %v956, %v1118
        %v1264 = vadd.f32 %v957, %v1121
        %v1265 = vadd.f32 %v958, %v1124
        %v1266 = vadd.f32 %v959, %v1127
        %v1267 = vadd.f32 %v960, %v1130
        %v1268 = vadd.f32 %v961, %v1133
        %v1269 = vadd.f32 %v962, %v1136
        %v1270 = vadd.f32 %v963, %v1139
        %v1271 = vadd.f32 %v964, %v1142
        %v1272 = vadd.f32 %v965, %v1145
        %v1273 = vadd.f32 %v966, %v1148
        %v1274 = vadd.f32 %v967, %v1151
        %v1275 = vadd.f32 %v968, %v1154
        %v1276 = vadd.f32 %v969, %v1157
        %v1277 = vadd.f32 %v970, %v1160
        %v1278 = vadd.f32 %v971, %v1163
        %v1279 = vadd.f32 %v972, %v1166
        %v1280 = vadd.f32 %v973, %v1169
        %v1281 = vadd.f32 %v974, %v1172
        %v1282 = vadd.f32 %v975, %v1175
        %v1283 = vadd.f32 %v976, %v1178
        %v1284 = vadd.f32 %v977, %v1181
        %v1285 = vadd.f32 %v978, %v1184
        %v1286 = vadd.f32 %v979, %v1187
        %v1287 = vadd.f32 %v980, %v1190
        %v1288 = vadd.f32 %v981, %v1193
        %v1289 = vadd.f32 %v982, %v1196
        %v1290 = vadd.f32 %v983, %v1199
        %v1291 = vadd.f32 %v984, %v1202
        %v1292 = vadd.f32 %v985, %v1205
        %v1293 = vadd.f32 %v986, %v1208
        %v1294 = vadd.f32 %v987, %v1211
        %v1295 = vadd.f32 %v988, %v1214
        %v1296 = vadd.f32 %v989, %v1217
        %v1297 = vadd.f32 %v990, %v1220
        %v1298 = vadd.f32 %v991, %v1223
        %v1299 = vadd.f32 %v992, %v1226
        %v1300 = vadd.f32 %v993, %v1229
        %v1301 = vadd.f32 %v994, %v1232
        %v1302 = vadd.f32 %v995, %v1235
        %v1303 = vadd.f32 %v996, %v1238
        %v1304 = vadd.f32 %v997, %v1241
        %v1305 = vadd.f32 %v998, %v1244
        %v1306 = vadd.f32 %v999, %v1247
        %v1307 = vadd.f32 %v1000, %v1250
        %v1308 = vadd.f32 %v1001, %v1253
        %v1309 = vld [vmem:[%s1004 + $0x2] sm:$0xff]
        %v1310 = vld [vmem:[%s1004 + $0xa] sm:$0xff]
        %v1311 = vld [vmem:[%s1004 + $0x12] sm:$0xff]
        %v1312 = vld [vmem:[%s1004 + $0x22] sm:$0xff]
        %v1313 = vld [vmem:[%s1004 + $0x2a] sm:$0xff]
        %v1314 = vld [vmem:[%s1004 + $0x32] sm:$0xff]
        %v1315 = vld [vmem:[%s1004 + $0x42] sm:$0xff]
        %v1316 = vld [vmem:[%s1004 + $0x4a] sm:$0xff]
        %v1317 = vld [vmem:[%s1004 + $0x52] sm:$0xff]
        %v1318 = vld [vmem:[%s1004 + $0x62] sm:$0xff]
        %v1319 = vld [vmem:[%s1004 + $0x6a] sm:$0xff]
        %v1320 = vld [vmem:[%s1004 + $0x72] sm:$0xff]
        %v1321 = vld [vmem:[%s1004 + $0x82] sm:$0xff]
        %v1322 = vld [vmem:[%s1004 + $0x8a] sm:$0xff]
        %v1323 = vld [vmem:[%s1004 + $0x92] sm:$0xff]
        %v1324 = vld [vmem:[%s1004 + $0xa2] sm:$0xff]
        %v1325 = vld [vmem:[%s1004 + $0xaa] sm:$0xff]
        %v1326 = vld [vmem:[%s1004 + $0xb2] sm:$0xff]
        %v1327 = vld [vmem:[%s1004 + $0xc2] sm:$0xff]
        %v1328 = vld [vmem:[%s1004 + $0xca] sm:$0xff]
        %v1329 = vld [vmem:[%s1004 + $0xd2] sm:$0xff]
        %v1330 = vld [vmem:[%s1004 + $0xe2] sm:$0xff]
        %v1331 = vld [vmem:[%s1004 + $0xea] sm:$0xff]
        %v1332 = vld [vmem:[%s1004 + $0xf2] sm:$0xff]
        %v1333 = vld [vmem:[%s1004 + $0x102] sm:$0xff]
        %v1334 = vld [vmem:[%s1004 + $0x10a] sm:$0xff]
        %v1335 = vld [vmem:[%s1004 + $0x112] sm:$0xff]
        %v1336 = vld [vmem:[%s1004 + $0x122] sm:$0xff]
        %v1337 = vld [vmem:[%s1004 + $0x12a] sm:$0xff]
        %v1338 = vld [vmem:[%s1004 + $0x132] sm:$0xff]
        %v1339 = vld [vmem:[%s1004 + $0x142] sm:$0xff]
        %v1340 = vld [vmem:[%s1004 + $0x14a] sm:$0xff]
        %v1341 = vld [vmem:[%s1004 + $0x152] sm:$0xff]
        %v1342 = vld [vmem:[%s1004 + $0x162] sm:$0xff]
        %v1343 = vld [vmem:[%s1004 + $0x16a] sm:$0xff]
        %v1344 = vld [vmem:[%s1004 + $0x172] sm:$0xff]
        %v1345 = vld [vmem:[%s1004 + $0x182] sm:$0xff]
        %v1346 = vld [vmem:[%s1004 + $0x18a] sm:$0xff]
        %v1347 = vld [vmem:[%s1004 + $0x192] sm:$0xff]
        %v1348 = vld [vmem:[%s1004 + $0x1a2] sm:$0xff]
        %v1349 = vld [vmem:[%s1004 + $0x1aa] sm:$0xff]
        %v1350 = vld [vmem:[%s1004 + $0x1b2] sm:$0xff]
        %v1351 = vld [vmem:[%s1004 + $0x1c2] sm:$0xff]
        %v1352 = vld [vmem:[%s1004 + $0x1ca] sm:$0xff]
        %v1353 = vld [vmem:[%s1004 + $0x1d2] sm:$0xff]
        %v1354 = vld [vmem:[%s1004 + $0x1e2] sm:$0xff]
        %v1355 = vld [vmem:[%s1004 + $0x1ea] sm:$0xff]
        %v1356 = vld [vmem:[%s1004 + $0x1f2] sm:$0xff]
        %v1357 = vld [vmem:[%s1004 + $0x202] sm:$0xff]
        %v1358 = vld [vmem:[%s1004 + $0x20a] sm:$0xff]
        %v1359 = vld [vmem:[%s1004 + $0x212] sm:$0xff]
        %v1360 = vld [vmem:[%s1004 + $0x222] sm:$0xff]
        %v1361 = vld [vmem:[%s1004 + $0x22a] sm:$0xff]
        %v1362 = vld [vmem:[%s1004 + $0x232] sm:$0xff]
        %s1363 = scalar_lea.vmem %s1, 512
        %v1364 = vld [vmem:[%s1363] sm:$0xff]
        %v1365 = vld [vmem:[%s1363 + $0x8] sm:$0xff]
        %v1366 = vld [vmem:[%s1363 + $0x10] sm:$0xff]
        %v1367 = vld [vmem:[%s1363 + $0x18] sm:$0xff]
        %v1368 = vld [vmem:[%s1363 + $0x20] sm:$0xff]
        %v1369 = vld [vmem:[%s1363 + $0x28] sm:$0xff]
        %v1370 = vld [vmem:[%s1363 + $0x30] sm:$0xff]
        %v1371 = vld [vmem:[%s1363 + $0x38] sm:$0xff]
        %v1372 = vld [vmem:[%s1363 + $0x40] sm:$0xff]
        %v1373 = vld [vmem:[%s1363 + $0x48] sm:$0xff]
        %v1374 = vld [vmem:[%s1363 + $0x50] sm:$0xff]
        %v1375 = vld [vmem:[%s1363 + $0x58] sm:$0xff]
        %v1376 = vld [vmem:[%s1363 + $0x60] sm:$0xff]
        %v1377 = vld [vmem:[%s1363 + $0x68] sm:$0xff]
        %v1378 = vld [vmem:[%s1363 + $0x70] sm:$0xff]
        %v1379 = vld [vmem:[%s1363 + $0x78] sm:$0xff]
        %1380 = vmatpush.msra.mxu0 %v1379
        %1381 = vmatpush.msra.mxu0 %v1378
        %1382 = vmatpush.msra.mxu0 %v1377
        %1383 = vmatpush.msra.mxu0 %v1376
        %1384 = vmatpush.msra.mxu0 %v1375
        %1385 = vmatpush.msra.mxu0 %v1374
        %1386 = vmatpush.msra.mxu0 %v1373
        %1387 = vmatpush.msra.mxu0 %v1372
        %1388 = vmatpush.msra.mxu0 %v1371
        %1389 = vmatpush.msra.mxu0 %v1370
        %1390 = vmatpush.msra.mxu0 %v1369
        %1391 = vmatpush.msra.mxu0 %v1368
        %1392 = vmatpush.msra.mxu0 %v1367
        %1393 = vmatpush.msra.mxu0 %v1366
        %1394 = vmatpush.msra.mxu0 %v1365
        %1395 = vmatpush.msra.mxu0 %v1364
        %1396 = vmatmul.f32.gmra.mxu0 %v1309
        %v1397 = vpop.f32.mrf.mxu0
        %v1398 = vadd.f32 0.0, %v1397
        %1399 = vmatmul.f32.gmra.mxu0 %v1310
        %v1400 = vpop.f32.mrf.mxu0
        %v1401 = vadd.f32 0.0, %v1400
        %1402 = vmatmul.f32.gmra.mxu0 %v1311
        %v1403 = vpop.f32.mrf.mxu0
        %v1404 = vadd.f32 0.0, %v1403
        %1405 = vmatmul.f32.gmra.mxu0 %v1312
        %v1406 = vpop.f32.mrf.mxu0
        %v1407 = vadd.f32 0.0, %v1406
        %1408 = vmatmul.f32.gmra.mxu0 %v1313
        %v1409 = vpop.f32.mrf.mxu0
        %v1410 = vadd.f32 0.0, %v1409
        %1411 = vmatmul.f32.gmra.mxu0 %v1314
        %v1412 = vpop.f32.mrf.mxu0
        %v1413 = vadd.f32 0.0, %v1412
        %1414 = vmatmul.f32.gmra.mxu0 %v1315
        %v1415 = vpop.f32.mrf.mxu0
        %v1416 = vadd.f32 0.0, %v1415
        %1417 = vmatmul.f32.gmra.mxu0 %v1316
        %v1418 = vpop.f32.mrf.mxu0
        %v1419 = vadd.f32 0.0, %v1418
        %1420 = vmatmul.f32.gmra.mxu0 %v1317
        %v1421 = vpop.f32.mrf.mxu0
        %v1422 = vadd.f32 0.0, %v1421
        %1423 = vmatmul.f32.gmra.mxu0 %v1318
        %v1424 = vpop.f32.mrf.mxu0
        %v1425 = vadd.f32 0.0, %v1424
        %1426 = vmatmul.f32.gmra.mxu0 %v1319
        %v1427 = vpop.f32.mrf.mxu0
        %v1428 = vadd.f32 0.0, %v1427
        %1429 = vmatmul.f32.gmra.mxu0 %v1320
        %v1430 = vpop.f32.mrf.mxu0
        %v1431 = vadd.f32 0.0, %v1430
        %1432 = vmatmul.f32.gmra.mxu0 %v1321
        %v1433 = vpop.f32.mrf.mxu0
        %v1434 = vadd.f32 0.0, %v1433
        %1435 = vmatmul.f32.gmra.mxu0 %v1322
        %v1436 = vpop.f32.mrf.mxu0
        %v1437 = vadd.f32 0.0, %v1436
        %1438 = vmatmul.f32.gmra.mxu0 %v1323
        %v1439 = vpop.f32.mrf.mxu0
        %v1440 = vadd.f32 0.0, %v1439
        %1441 = vmatmul.f32.gmra.mxu0 %v1324
        %v1442 = vpop.f32.mrf.mxu0
        %v1443 = vadd.f32 0.0, %v1442
        %1444 = vmatmul.f32.gmra.mxu0 %v1325
        %v1445 = vpop.f32.mrf.mxu0
        %v1446 = vadd.f32 0.0, %v1445
        %1447 = vmatmul.f32.gmra.mxu0 %v1326
        %v1448 = vpop.f32.mrf.mxu0
        %v1449 = vadd.f32 0.0, %v1448
        %1450 = vmatmul.f32.gmra.mxu0 %v1327
        %v1451 = vpop.f32.mrf.mxu0
        %v1452 = vadd.f32 0.0, %v1451
        %1453 = vmatmul.f32.gmra.mxu0 %v1328
        %v1454 = vpop.f32.mrf.mxu0
        %v1455 = vadd.f32 0.0, %v1454
        %1456 = vmatmul.f32.gmra.mxu0 %v1329
        %v1457 = vpop.f32.mrf.mxu0
        %v1458 = vadd.f32 0.0, %v1457
        %1459 = vmatmul.f32.gmra.mxu0 %v1330
        %v1460 = vpop.f32.mrf.mxu0
        %v1461 = vadd.f32 0.0, %v1460
        %1462 = vmatmul.f32.gmra.mxu0 %v1331
        %v1463 = vpop.f32.mrf.mxu0
        %v1464 = vadd.f32 0.0, %v1463
        %1465 = vmatmul.f32.gmra.mxu0 %v1332
        %v1466 = vpop.f32.mrf.mxu0
        %v1467 = vadd.f32 0.0, %v1466
        %1468 = vmatmul.f32.gmra.mxu0 %v1333
        %v1469 = vpop.f32.mrf.mxu0
        %v1470 = vadd.f32 0.0, %v1469
        %1471 = vmatmul.f32.gmra.mxu0 %v1334
        %v1472 = vpop.f32.mrf.mxu0
        %v1473 = vadd.f32 0.0, %v1472
        %1474 = vmatmul.f32.gmra.mxu0 %v1335
        %v1475 = vpop.f32.mrf.mxu0
        %v1476 = vadd.f32 0.0, %v1475
        %1477 = vmatmul.f32.gmra.mxu0 %v1336
        %v1478 = vpop.f32.mrf.mxu0
        %v1479 = vadd.f32 0.0, %v1478
        %1480 = vmatmul.f32.gmra.mxu0 %v1337
        %v1481 = vpop.f32.mrf.mxu0
        %v1482 = vadd.f32 0.0, %v1481
        %1483 = vmatmul.f32.gmra.mxu0 %v1338
        %v1484 = vpop.f32.mrf.mxu0
        %v1485 = vadd.f32 0.0, %v1484
        %1486 = vmatmul.f32.gmra.mxu0 %v1339
        %v1487 = vpop.f32.mrf.mxu0
        %v1488 = vadd.f32 0.0, %v1487
        %1489 = vmatmul.f32.gmra.mxu0 %v1340
        %v1490 = vpop.f32.mrf.mxu0
        %v1491 = vadd.f32 0.0, %v1490
        %1492 = vmatmul.f32.gmra.mxu0 %v1341
        %v1493 = vpop.f32.mrf.mxu0
        %v1494 = vadd.f32 0.0, %v1493
        %1495 = vmatmul.f32.gmra.mxu0 %v1342
        %v1496 = vpop.f32.mrf.mxu0
        %v1497 = vadd.f32 0.0, %v1496
        %1498 = vmatmul.f32.gmra.mxu0 %v1343
        %v1499 = vpop.f32.mrf.mxu0
        %v1500 = vadd.f32 0.0, %v1499
        %1501 = vmatmul.f32.gmra.mxu0 %v1344
        %v1502 = vpop.f32.mrf.mxu0
        %v1503 = vadd.f32 0.0, %v1502
        %1504 = vmatmul.f32.gmra.mxu0 %v1345
        %v1505 = vpop.f32.mrf.mxu0
        %v1506 = vadd.f32 0.0, %v1505
        %1507 = vmatmul.f32.gmra.mxu0 %v1346
        %v1508 = vpop.f32.mrf.mxu0
        %v1509 = vadd.f32 0.0, %v1508
        %1510 = vmatmul.f32.gmra.mxu0 %v1347
        %v1511 = vpop.f32.mrf.mxu0
        %v1512 = vadd.f32 0.0, %v1511
        %1513 = vmatmul.f32.gmra.mxu0 %v1348
        %v1514 = vpop.f32.mrf.mxu0
        %v1515 = vadd.f32 0.0, %v1514
        %1516 = vmatmul.f32.gmra.mxu0 %v1349
        %v1517 = vpop.f32.mrf.mxu0
        %v1518 = vadd.f32 0.0, %v1517
        %1519 = vmatmul.f32.gmra.mxu0 %v1350
        %v1520 = vpop.f32.mrf.mxu0
        %v1521 = vadd.f32 0.0, %v1520
        %1522 = vmatmul.f32.gmra.mxu0 %v1351
        %v1523 = vpop.f32.mrf.mxu0
        %v1524 = vadd.f32 0.0, %v1523
        %1525 = vmatmul.f32.gmra.mxu0 %v1352
        %v1526 = vpop.f32.mrf.mxu0
        %v1527 = vadd.f32 0.0, %v1526
        %1528 = vmatmul.f32.gmra.mxu0 %v1353
        %v1529 = vpop.f32.mrf.mxu0
        %v1530 = vadd.f32 0.0, %v1529
        %1531 = vmatmul.f32.gmra.mxu0 %v1354
        %v1532 = vpop.f32.mrf.mxu0
        %v1533 = vadd.f32 0.0, %v1532
        %1534 = vmatmul.f32.gmra.mxu0 %v1355
        %v1535 = vpop.f32.mrf.mxu0
        %v1536 = vadd.f32 0.0, %v1535
        %1537 = vmatmul.f32.gmra.mxu0 %v1356
        %v1538 = vpop.f32.mrf.mxu0
        %v1539 = vadd.f32 0.0, %v1538
        %1540 = vmatmul.f32.gmra.mxu0 %v1357
        %v1541 = vpop.f32.mrf.mxu0
        %v1542 = vadd.f32 0.0, %v1541
        %1543 = vmatmul.f32.gmra.mxu0 %v1358
        %v1544 = vpop.f32.mrf.mxu0
        %v1545 = vadd.f32 0.0, %v1544
        %1546 = vmatmul.f32.gmra.mxu0 %v1359
        %v1547 = vpop.f32.mrf.mxu0
        %v1548 = vadd.f32 0.0, %v1547
        %1549 = vmatmul.f32.gmra.mxu0 %v1360
        %v1550 = vpop.f32.mrf.mxu0
        %v1551 = vadd.f32 0.0, %v1550
        %1552 = vmatmul.f32.gmra.mxu0 %v1361
        %v1553 = vpop.f32.mrf.mxu0
        %v1554 = vadd.f32 0.0, %v1553
        %1555 = vmatmul.f32.gmra.mxu0 %v1362
        %v1556 = vpop.f32.mrf.mxu0
        %v1557 = vadd.f32 0.0, %v1556
        %1558 = vdwg.mxu0
        %v1559 = vadd.f32 %v1255, %v1398
        %v1560 = vadd.f32 %v1256, %v1401
        %v1561 = vadd.f32 %v1257, %v1404
        %v1562 = vadd.f32 %v1258, %v1407
        %v1563 = vadd.f32 %v1259, %v1410
        %v1564 = vadd.f32 %v1260, %v1413
        %v1565 = vadd.f32 %v1261, %v1416
        %v1566 = vadd.f32 %v1262, %v1419
        %v1567 = vadd.f32 %v1263, %v1422
        %v1568 = vadd.f32 %v1264, %v1425
        %v1569 = vadd.f32 %v1265, %v1428
        %v1570 = vadd.f32 %v1266, %v1431
        %v1571 = vadd.f32 %v1267, %v1434
        %v1572 = vadd.f32 %v1268, %v1437
        %v1573 = vadd.f32 %v1269, %v1440
        %v1574 = vadd.f32 %v1270, %v1443
        %v1575 = vadd.f32 %v1271, %v1446
        %v1576 = vadd.f32 %v1272, %v1449
        %v1577 = vadd.f32 %v1273, %v1452
        %v1578 = vadd.f32 %v1274, %v1455
        %v1579 = vadd.f32 %v1275, %v1458
        %v1580 = vadd.f32 %v1276, %v1461
        %v1581 = vadd.f32 %v1277, %v1464
        %v1582 = vadd.f32 %v1278, %v1467
        %v1583 = vadd.f32 %v1279, %v1470
        %v1584 = vadd.f32 %v1280, %v1473
        %v1585 = vadd.f32 %v1281, %v1476
        %v1586 = vadd.f32 %v1282, %v1479
        %v1587 = vadd.f32 %v1283, %v1482
        %v1588 = vadd.f32 %v1284, %v1485
        %v1589 = vadd.f32 %v1285, %v1488
        %v1590 = vadd.f32 %v1286, %v1491
        %v1591 = vadd.f32 %v1287, %v1494
        %v1592 = vadd.f32 %v1288, %v1497
        %v1593 = vadd.f32 %v1289, %v1500
        %v1594 = vadd.f32 %v1290, %v1503
        %v1595 = vadd.f32 %v1291, %v1506
        %v1596 = vadd.f32 %v1292, %v1509
        %v1597 = vadd.f32 %v1293, %v1512
        %v1598 = vadd.f32 %v1294, %v1515
        %v1599 = vadd.f32 %v1295, %v1518
        %v1600 = vadd.f32 %v1296, %v1521
        %v1601 = vadd.f32 %v1297, %v1524
        %v1602 = vadd.f32 %v1298, %v1527
        %v1603 = vadd.f32 %v1299, %v1530
        %v1604 = vadd.f32 %v1300, %v1533
        %v1605 = vadd.f32 %v1301, %v1536
        %v1606 = vadd.f32 %v1302, %v1539
        %v1607 = vadd.f32 %v1303, %v1542
        %v1608 = vadd.f32 %v1304, %v1545
        %v1609 = vadd.f32 %v1305, %v1548
        %v1610 = vadd.f32 %v1306, %v1551
        %v1611 = vadd.f32 %v1307, %v1554
        %v1612 = vadd.f32 %v1308, %v1557
        %v1613 = vld [vmem:[%s1004 + $0x4] sm:$0xff]
        %v1614 = vld [vmem:[%s1004 + $0xc] sm:$0xff]
        %v1615 = vld [vmem:[%s1004 + $0x14] sm:$0xff]
        %v1616 = vld [vmem:[%s1004 + $0x24] sm:$0xff]
        %v1617 = vld [vmem:[%s1004 + $0x2c] sm:$0xff]
        %v1618 = vld [vmem:[%s1004 + $0x34] sm:$0xff]
        %v1619 = vld [vmem:[%s1004 + $0x44] sm:$0xff]
        %v1620 = vld [vmem:[%s1004 + $0x4c] sm:$0xff]
        %v1621 = vld [vmem:[%s1004 + $0x54] sm:$0xff]
        %v1622 = vld [vmem:[%s1004 + $0x64] sm:$0xff]
        %v1623 = vld [vmem:[%s1004 + $0x6c] sm:$0xff]
        %v1624 = vld [vmem:[%s1004 + $0x74] sm:$0xff]
        %v1625 = vld [vmem:[%s1004 + $0x84] sm:$0xff]
        %v1626 = vld [vmem:[%s1004 + $0x8c] sm:$0xff]
        %v1627 = vld [vmem:[%s1004 + $0x94] sm:$0xff]
        %v1628 = vld [vmem:[%s1004 + $0xa4] sm:$0xff]
        %v1629 = vld [vmem:[%s1004 + $0xac] sm:$0xff]
        %v1630 = vld [vmem:[%s1004 + $0xb4] sm:$0xff]
        %v1631 = vld [vmem:[%s1004 + $0xc4] sm:$0xff]
        %v1632 = vld [vmem:[%s1004 + $0xcc] sm:$0xff]
        %v1633 = vld [vmem:[%s1004 + $0xd4] sm:$0xff]
        %v1634 = vld [vmem:[%s1004 + $0xe4] sm:$0xff]
        %v1635 = vld [vmem:[%s1004 + $0xec] sm:$0xff]
        %v1636 = vld [vmem:[%s1004 + $0xf4] sm:$0xff]
        %v1637 = vld [vmem:[%s1004 + $0x104] sm:$0xff]
        %v1638 = vld [vmem:[%s1004 + $0x10c] sm:$0xff]
        %v1639 = vld [vmem:[%s1004 + $0x114] sm:$0xff]
        %v1640 = vld [vmem:[%s1004 + $0x124] sm:$0xff]
        %v1641 = vld [vmem:[%s1004 + $0x12c] sm:$0xff]
        %v1642 = vld [vmem:[%s1004 + $0x134] sm:$0xff]
        %v1643 = vld [vmem:[%s1004 + $0x144] sm:$0xff]
        %v1644 = vld [vmem:[%s1004 + $0x14c] sm:$0xff]
        %v1645 = vld [vmem:[%s1004 + $0x154] sm:$0xff]
        %v1646 = vld [vmem:[%s1004 + $0x164] sm:$0xff]
        %v1647 = vld [vmem:[%s1004 + $0x16c] sm:$0xff]
        %v1648 = vld [vmem:[%s1004 + $0x174] sm:$0xff]
        %v1649 = vld [vmem:[%s1004 + $0x184] sm:$0xff]
        %v1650 = vld [vmem:[%s1004 + $0x18c] sm:$0xff]
        %v1651 = vld [vmem:[%s1004 + $0x194] sm:$0xff]
        %v1652 = vld [vmem:[%s1004 + $0x1a4] sm:$0xff]
        %v1653 = vld [vmem:[%s1004 + $0x1ac] sm:$0xff]
        %v1654 = vld [vmem:[%s1004 + $0x1b4] sm:$0xff]
        %v1655 = vld [vmem:[%s1004 + $0x1c4] sm:$0xff]
        %v1656 = vld [vmem:[%s1004 + $0x1cc] sm:$0xff]
        %v1657 = vld [vmem:[%s1004 + $0x1d4] sm:$0xff]
        %v1658 = vld [vmem:[%s1004 + $0x1e4] sm:$0xff]
        %v1659 = vld [vmem:[%s1004 + $0x1ec] sm:$0xff]
        %v1660 = vld [vmem:[%s1004 + $0x1f4] sm:$0xff]
        %v1661 = vld [vmem:[%s1004 + $0x204] sm:$0xff]
        %v1662 = vld [vmem:[%s1004 + $0x20c] sm:$0xff]
        %v1663 = vld [vmem:[%s1004 + $0x214] sm:$0xff]
        %v1664 = vld [vmem:[%s1004 + $0x224] sm:$0xff]
        %v1665 = vld [vmem:[%s1004 + $0x22c] sm:$0xff]
        %v1666 = vld [vmem:[%s1004 + $0x234] sm:$0xff]
        %s1667 = scalar_lea.vmem %s1, 640
        %v1668 = vld [vmem:[%s1667] sm:$0xff]
        %v1669 = vld [vmem:[%s1667 + $0x8] sm:$0xff]
        %v1670 = vld [vmem:[%s1667 + $0x10] sm:$0xff]
        %v1671 = vld [vmem:[%s1667 + $0x18] sm:$0xff]
        %v1672 = vld [vmem:[%s1667 + $0x20] sm:$0xff]
        %v1673 = vld [vmem:[%s1667 + $0x28] sm:$0xff]
        %v1674 = vld [vmem:[%s1667 + $0x30] sm:$0xff]
        %v1675 = vld [vmem:[%s1667 + $0x38] sm:$0xff]
        %v1676 = vld [vmem:[%s1667 + $0x40] sm:$0xff]
        %v1677 = vld [vmem:[%s1667 + $0x48] sm:$0xff]
        %v1678 = vld [vmem:[%s1667 + $0x50] sm:$0xff]
        %v1679 = vld [vmem:[%s1667 + $0x58] sm:$0xff]
        %v1680 = vld [vmem:[%s1667 + $0x60] sm:$0xff]
        %v1681 = vld [vmem:[%s1667 + $0x68] sm:$0xff]
        %v1682 = vld [vmem:[%s1667 + $0x70] sm:$0xff]
        %v1683 = vld [vmem:[%s1667 + $0x78] sm:$0xff]
        %1684 = vmatpush.msra.mxu0 %v1683
        %1685 = vmatpush.msra.mxu0 %v1682
        %1686 = vmatpush.msra.mxu0 %v1681
        %1687 = vmatpush.msra.mxu0 %v1680
        %1688 = vmatpush.msra.mxu0 %v1679
        %1689 = vmatpush.msra.mxu0 %v1678
        %1690 = vmatpush.msra.mxu0 %v1677
        %1691 = vmatpush.msra.mxu0 %v1676
        %1692 = vmatpush.msra.mxu0 %v1675
        %1693 = vmatpush.msra.mxu0 %v1674
        %1694 = vmatpush.msra.mxu0 %v1673
        %1695 = vmatpush.msra.mxu0 %v1672
        %1696 = vmatpush.msra.mxu0 %v1671
        %1697 = vmatpush.msra.mxu0 %v1670
        %1698 = vmatpush.msra.mxu0 %v1669
        %1699 = vmatpush.msra.mxu0 %v1668
        %1700 = vmatmul.f32.gmra.mxu0 %v1613
        %v1701 = vpop.f32.mrf.mxu0
        %v1702 = vadd.f32 0.0, %v1701
        %1703 = vmatmul.f32.gmra.mxu0 %v1614
        %v1704 = vpop.f32.mrf.mxu0
        %v1705 = vadd.f32 0.0, %v1704
        %1706 = vmatmul.f32.gmra.mxu0 %v1615
        %v1707 = vpop.f32.mrf.mxu0
        %v1708 = vadd.f32 0.0, %v1707
        %1709 = vmatmul.f32.gmra.mxu0 %v1616
        %v1710 = vpop.f32.mrf.mxu0
        %v1711 = vadd.f32 0.0, %v1710
        %1712 = vmatmul.f32.gmra.mxu0 %v1617
        %v1713 = vpop.f32.mrf.mxu0
        %v1714 = vadd.f32 0.0, %v1713
        %1715 = vmatmul.f32.gmra.mxu0 %v1618
        %v1716 = vpop.f32.mrf.mxu0
        %v1717 = vadd.f32 0.0, %v1716
        %1718 = vmatmul.f32.gmra.mxu0 %v1619
        %v1719 = vpop.f32.mrf.mxu0
        %v1720 = vadd.f32 0.0, %v1719
        %1721 = vmatmul.f32.gmra.mxu0 %v1620
        %v1722 = vpop.f32.mrf.mxu0
        %v1723 = vadd.f32 0.0, %v1722
        %1724 = vmatmul.f32.gmra.mxu0 %v1621
        %v1725 = vpop.f32.mrf.mxu0
        %v1726 = vadd.f32 0.0, %v1725
        %1727 = vmatmul.f32.gmra.mxu0 %v1622
        %v1728 = vpop.f32.mrf.mxu0
        %v1729 = vadd.f32 0.0, %v1728
        %1730 = vmatmul.f32.gmra.mxu0 %v1623
        %v1731 = vpop.f32.mrf.mxu0
        %v1732 = vadd.f32 0.0, %v1731
        %1733 = vmatmul.f32.gmra.mxu0 %v1624
        %v1734 = vpop.f32.mrf.mxu0
        %v1735 = vadd.f32 0.0, %v1734
        %1736 = vmatmul.f32.gmra.mxu0 %v1625
        %v1737 = vpop.f32.mrf.mxu0
        %v1738 = vadd.f32 0.0, %v1737
        %1739 = vmatmul.f32.gmra.mxu0 %v1626
        %v1740 = vpop.f32.mrf.mxu0
        %v1741 = vadd.f32 0.0, %v1740
        %1742 = vmatmul.f32.gmra.mxu0 %v1627
        %v1743 = vpop.f32.mrf.mxu0
        %v1744 = vadd.f32 0.0, %v1743
        %1745 = vmatmul.f32.gmra.mxu0 %v1628
        %v1746 = vpop.f32.mrf.mxu0
        %v1747 = vadd.f32 0.0, %v1746
        %1748 = vmatmul.f32.gmra.mxu0 %v1629
        %v1749 = vpop.f32.mrf.mxu0
        %v1750 = vadd.f32 0.0, %v1749
        %1751 = vmatmul.f32.gmra.mxu0 %v1630
        %v1752 = vpop.f32.mrf.mxu0
        %v1753 = vadd.f32 0.0, %v1752
        %1754 = vmatmul.f32.gmra.mxu0 %v1631
        %v1755 = vpop.f32.mrf.mxu0
        %v1756 = vadd.f32 0.0, %v1755
        %1757 = vmatmul.f32.gmra.mxu0 %v1632
        %v1758 = vpop.f32.mrf.mxu0
        %v1759 = vadd.f32 0.0, %v1758
        %1760 = vmatmul.f32.gmra.mxu0 %v1633
        %v1761 = vpop.f32.mrf.mxu0
        %v1762 = vadd.f32 0.0, %v1761
        %1763 = vmatmul.f32.gmra.mxu0 %v1634
        %v1764 = vpop.f32.mrf.mxu0
        %v1765 = vadd.f32 0.0, %v1764
        %1766 = vmatmul.f32.gmra.mxu0 %v1635
        %v1767 = vpop.f32.mrf.mxu0
        %v1768 = vadd.f32 0.0, %v1767
        %1769 = vmatmul.f32.gmra.mxu0 %v1636
        %v1770 = vpop.f32.mrf.mxu0
        %v1771 = vadd.f32 0.0, %v1770
        %1772 = vmatmul.f32.gmra.mxu0 %v1637
        %v1773 = vpop.f32.mrf.mxu0
        %v1774 = vadd.f32 0.0, %v1773
        %1775 = vmatmul.f32.gmra.mxu0 %v1638
        %v1776 = vpop.f32.mrf.mxu0
        %v1777 = vadd.f32 0.0, %v1776
        %1778 = vmatmul.f32.gmra.mxu0 %v1639
        %v1779 = vpop.f32.mrf.mxu0
        %v1780 = vadd.f32 0.0, %v1779
        %1781 = vmatmul.f32.gmra.mxu0 %v1640
        %v1782 = vpop.f32.mrf.mxu0
        %v1783 = vadd.f32 0.0, %v1782
        %1784 = vmatmul.f32.gmra.mxu0 %v1641
        %v1785 = vpop.f32.mrf.mxu0
        %v1786 = vadd.f32 0.0, %v1785
        %1787 = vmatmul.f32.gmra.mxu0 %v1642
        %v1788 = vpop.f32.mrf.mxu0
        %v1789 = vadd.f32 0.0, %v1788
        %1790 = vmatmul.f32.gmra.mxu0 %v1643
        %v1791 = vpop.f32.mrf.mxu0
        %v1792 = vadd.f32 0.0, %v1791
        %1793 = vmatmul.f32.gmra.mxu0 %v1644
        %v1794 = vpop.f32.mrf.mxu0
        %v1795 = vadd.f32 0.0, %v1794
        %1796 = vmatmul.f32.gmra.mxu0 %v1645
        %v1797 = vpop.f32.mrf.mxu0
        %v1798 = vadd.f32 0.0, %v1797
        %1799 = vmatmul.f32.gmra.mxu0 %v1646
        %v1800 = vpop.f32.mrf.mxu0
        %v1801 = vadd.f32 0.0, %v1800
        %1802 = vmatmul.f32.gmra.mxu0 %v1647
        %v1803 = vpop.f32.mrf.mxu0
        %v1804 = vadd.f32 0.0, %v1803
        %1805 = vmatmul.f32.gmra.mxu0 %v1648
        %v1806 = vpop.f32.mrf.mxu0
        %v1807 = vadd.f32 0.0, %v1806
        %1808 = vmatmul.f32.gmra.mxu0 %v1649
        %v1809 = vpop.f32.mrf.mxu0
        %v1810 = vadd.f32 0.0, %v1809
        %1811 = vmatmul.f32.gmra.mxu0 %v1650
        %v1812 = vpop.f32.mrf.mxu0
        %v1813 = vadd.f32 0.0, %v1812
        %1814 = vmatmul.f32.gmra.mxu0 %v1651
        %v1815 = vpop.f32.mrf.mxu0
        %v1816 = vadd.f32 0.0, %v1815
        %1817 = vmatmul.f32.gmra.mxu0 %v1652
        %v1818 = vpop.f32.mrf.mxu0
        %v1819 = vadd.f32 0.0, %v1818
        %1820 = vmatmul.f32.gmra.mxu0 %v1653
        %v1821 = vpop.f32.mrf.mxu0
        %v1822 = vadd.f32 0.0, %v1821
        %1823 = vmatmul.f32.gmra.mxu0 %v1654
        %v1824 = vpop.f32.mrf.mxu0
        %v1825 = vadd.f32 0.0, %v1824
        %1826 = vmatmul.f32.gmra.mxu0 %v1655
        %v1827 = vpop.f32.mrf.mxu0
        %v1828 = vadd.f32 0.0, %v1827
        %1829 = vmatmul.f32.gmra.mxu0 %v1656
        %v1830 = vpop.f32.mrf.mxu0
        %v1831 = vadd.f32 0.0, %v1830
        %1832 = vmatmul.f32.gmra.mxu0 %v1657
        %v1833 = vpop.f32.mrf.mxu0
        %v1834 = vadd.f32 0.0, %v1833
        %1835 = vmatmul.f32.gmra.mxu0 %v1658
        %v1836 = vpop.f32.mrf.mxu0
        %v1837 = vadd.f32 0.0, %v1836
        %1838 = vmatmul.f32.gmra.mxu0 %v1659
        %v1839 = vpop.f32.mrf.mxu0
        %v1840 = vadd.f32 0.0, %v1839
        %1841 = vmatmul.f32.gmra.mxu0 %v1660
        %v1842 = vpop.f32.mrf.mxu0
        %v1843 = vadd.f32 0.0, %v1842
        %1844 = vmatmul.f32.gmra.mxu0 %v1661
        %v1845 = vpop.f32.mrf.mxu0
        %v1846 = vadd.f32 0.0, %v1845
        %1847 = vmatmul.f32.gmra.mxu0 %v1662
        %v1848 = vpop.f32.mrf.mxu0
        %v1849 = vadd.f32 0.0, %v1848
        %1850 = vmatmul.f32.gmra.mxu0 %v1663
        %v1851 = vpop.f32.mrf.mxu0
        %v1852 = vadd.f32 0.0, %v1851
        %1853 = vmatmul.f32.gmra.mxu0 %v1664
        %v1854 = vpop.f32.mrf.mxu0
        %v1855 = vadd.f32 0.0, %v1854
        %1856 = vmatmul.f32.gmra.mxu0 %v1665
        %v1857 = vpop.f32.mrf.mxu0
        %v1858 = vadd.f32 0.0, %v1857
        %1859 = vmatmul.f32.gmra.mxu0 %v1666
        %v1860 = vpop.f32.mrf.mxu0
        %v1861 = vadd.f32 0.0, %v1860
        %1862 = vdwg.mxu0
        %v1863 = vadd.f32 %v1559, %v1702
        %v1864 = vadd.f32 %v1560, %v1705
        %v1865 = vadd.f32 %v1561, %v1708
        %v1866 = vadd.f32 %v1562, %v1711
        %v1867 = vadd.f32 %v1563, %v1714
        %v1868 = vadd.f32 %v1564, %v1717
        %v1869 = vadd.f32 %v1565, %v1720
        %v1870 = vadd.f32 %v1566, %v1723
        %v1871 = vadd.f32 %v1567, %v1726
        %v1872 = vadd.f32 %v1568, %v1729
        %v1873 = vadd.f32 %v1569, %v1732
        %v1874 = vadd.f32 %v1570, %v1735
        %v1875 = vadd.f32 %v1571, %v1738
        %v1876 = vadd.f32 %v1572, %v1741
        %v1877 = vadd.f32 %v1573, %v1744
        %v1878 = vadd.f32 %v1574, %v1747
        %v1879 = vadd.f32 %v1575, %v1750
        %v1880 = vadd.f32 %v1576, %v1753
        %v1881 = vadd.f32 %v1577, %v1756
        %v1882 = vadd.f32 %v1578, %v1759
        %v1883 = vadd.f32 %v1579, %v1762
        %v1884 = vadd.f32 %v1580, %v1765
        %v1885 = vadd.f32 %v1581, %v1768
        %v1886 = vadd.f32 %v1582, %v1771
        %v1887 = vadd.f32 %v1583, %v1774
        %v1888 = vadd.f32 %v1584, %v1777
        %v1889 = vadd.f32 %v1585, %v1780
        %v1890 = vadd.f32 %v1586, %v1783
        %v1891 = vadd.f32 %v1587, %v1786
        %v1892 = vadd.f32 %v1588, %v1789
        %v1893 = vadd.f32 %v1589, %v1792
        %v1894 = vadd.f32 %v1590, %v1795
        %v1895 = vadd.f32 %v1591, %v1798
        %v1896 = vadd.f32 %v1592, %v1801
        %v1897 = vadd.f32 %v1593, %v1804
        %v1898 = vadd.f32 %v1594, %v1807
        %v1899 = vadd.f32 %v1595, %v1810
        %v1900 = vadd.f32 %v1596, %v1813
        %v1901 = vadd.f32 %v1597, %v1816
        %v1902 = vadd.f32 %v1598, %v1819
        %v1903 = vadd.f32 %v1599, %v1822
        %v1904 = vadd.f32 %v1600, %v1825
        %v1905 = vadd.f32 %v1601, %v1828
        %v1906 = vadd.f32 %v1602, %v1831
        %v1907 = vadd.f32 %v1603, %v1834
        %v1908 = vadd.f32 %v1604, %v1837
        %v1909 = vadd.f32 %v1605, %v1840
        %v1910 = vadd.f32 %v1606, %v1843
        %v1911 = vadd.f32 %v1607, %v1846
        %v1912 = vadd.f32 %v1608, %v1849
        %v1913 = vadd.f32 %v1609, %v1852
        %v1914 = vadd.f32 %v1610, %v1855
        %v1915 = vadd.f32 %v1611, %v1858
        %v1916 = vadd.f32 %v1612, %v1861
        %s1917 = sadd.s32 %s196, 4
        %s1918 = smul.u32 %s1917, 32
        %s1919 = scalar_lea.vmem %s195, %s1918
        %v1920 = vld [vmem:[%s1919] sm:$0xff]
        %v1921 = vld [vmem:[%s1919 + $0x8] sm:$0xff]
        %v1922 = vld [vmem:[%s1919 + $0x10] sm:$0xff]
        %v1923 = vld [vmem:[%s1919 + $0x20] sm:$0xff]
        %v1924 = vld [vmem:[%s1919 + $0x28] sm:$0xff]
        %v1925 = vld [vmem:[%s1919 + $0x30] sm:$0xff]
        %v1926 = vld [vmem:[%s1919 + $0x40] sm:$0xff]
        %v1927 = vld [vmem:[%s1919 + $0x48] sm:$0xff]
        %v1928 = vld [vmem:[%s1919 + $0x50] sm:$0xff]
        %v1929 = vld [vmem:[%s1919 + $0x60] sm:$0xff]
        %v1930 = vld [vmem:[%s1919 + $0x68] sm:$0xff]
        %v1931 = vld [vmem:[%s1919 + $0x70] sm:$0xff]
        %v1932 = vld [vmem:[%s1919 + $0x80] sm:$0xff]
        %v1933 = vld [vmem:[%s1919 + $0x88] sm:$0xff]
        %v1934 = vld [vmem:[%s1919 + $0x90] sm:$0xff]
        %v1935 = vld [vmem:[%s1919 + $0xa0] sm:$0xff]
        %v1936 = vld [vmem:[%s1919 + $0xa8] sm:$0xff]
        %v1937 = vld [vmem:[%s1919 + $0xb0] sm:$0xff]
        %v1938 = vld [vmem:[%s1919 + $0xc0] sm:$0xff]
        %v1939 = vld [vmem:[%s1919 + $0xc8] sm:$0xff]
        %v1940 = vld [vmem:[%s1919 + $0xd0] sm:$0xff]
        %v1941 = vld [vmem:[%s1919 + $0xe0] sm:$0xff]
        %v1942 = vld [vmem:[%s1919 + $0xe8] sm:$0xff]
        %v1943 = vld [vmem:[%s1919 + $0xf0] sm:$0xff]
        %v1944 = vld [vmem:[%s1919 + $0x100] sm:$0xff]
        %v1945 = vld [vmem:[%s1919 + $0x108] sm:$0xff]
        %v1946 = vld [vmem:[%s1919 + $0x110] sm:$0xff]
        %v1947 = vld [vmem:[%s1919 + $0x120] sm:$0xff]
        %v1948 = vld [vmem:[%s1919 + $0x128] sm:$0xff]
        %v1949 = vld [vmem:[%s1919 + $0x130] sm:$0xff]
        %v1950 = vld [vmem:[%s1919 + $0x140] sm:$0xff]
        %v1951 = vld [vmem:[%s1919 + $0x148] sm:$0xff]
        %v1952 = vld [vmem:[%s1919 + $0x150] sm:$0xff]
        %v1953 = vld [vmem:[%s1919 + $0x160] sm:$0xff]
        %v1954 = vld [vmem:[%s1919 + $0x168] sm:$0xff]
        %v1955 = vld [vmem:[%s1919 + $0x170] sm:$0xff]
        %v1956 = vld [vmem:[%s1919 + $0x180] sm:$0xff]
        %v1957 = vld [vmem:[%s1919 + $0x188] sm:$0xff]
        %v1958 = vld [vmem:[%s1919 + $0x190] sm:$0xff]
        %v1959 = vld [vmem:[%s1919 + $0x1a0] sm:$0xff]
        %v1960 = vld [vmem:[%s1919 + $0x1a8] sm:$0xff]
        %v1961 = vld [vmem:[%s1919 + $0x1b0] sm:$0xff]
        %v1962 = vld [vmem:[%s1919 + $0x1c0] sm:$0xff]
        %v1963 = vld [vmem:[%s1919 + $0x1c8] sm:$0xff]
        %v1964 = vld [vmem:[%s1919 + $0x1d0] sm:$0xff]
        %v1965 = vld [vmem:[%s1919 + $0x1e0] sm:$0xff]
        %v1966 = vld [vmem:[%s1919 + $0x1e8] sm:$0xff]
        %v1967 = vld [vmem:[%s1919 + $0x1f0] sm:$0xff]
        %v1968 = vld [vmem:[%s1919 + $0x200] sm:$0xff]
        %v1969 = vld [vmem:[%s1919 + $0x208] sm:$0xff]
        %v1970 = vld [vmem:[%s1919 + $0x210] sm:$0xff]
        %v1971 = vld [vmem:[%s1919 + $0x220] sm:$0xff]
        %v1972 = vld [vmem:[%s1919 + $0x228] sm:$0xff]
        %v1973 = vld [vmem:[%s1919 + $0x230] sm:$0xff]
        %s1974 = scalar_lea.vmem %s1, 768
        %v1975 = vld [vmem:[%s1974] sm:$0xff]
        %v1976 = vld [vmem:[%s1974 + $0x8] sm:$0xff]
        %v1977 = vld [vmem:[%s1974 + $0x10] sm:$0xff]
        %v1978 = vld [vmem:[%s1974 + $0x18] sm:$0xff]
        %v1979 = vld [vmem:[%s1974 + $0x20] sm:$0xff]
        %v1980 = vld [vmem:[%s1974 + $0x28] sm:$0xff]
        %v1981 = vld [vmem:[%s1974 + $0x30] sm:$0xff]
        %v1982 = vld [vmem:[%s1974 + $0x38] sm:$0xff]
        %v1983 = vld [vmem:[%s1974 + $0x40] sm:$0xff]
        %v1984 = vld [vmem:[%s1974 + $0x48] sm:$0xff]
        %v1985 = vld [vmem:[%s1974 + $0x50] sm:$0xff]
        %v1986 = vld [vmem:[%s1974 + $0x58] sm:$0xff]
        %v1987 = vld [vmem:[%s1974 + $0x60] sm:$0xff]
        %v1988 = vld [vmem:[%s1974 + $0x68] sm:$0xff]
        %v1989 = vld [vmem:[%s1974 + $0x70] sm:$0xff]
        %v1990 = vld [vmem:[%s1974 + $0x78] sm:$0xff]
        %1991 = vmatpush.msra.mxu0 %v1990
        %1992 = vmatpush.msra.mxu0 %v1989
        %1993 = vmatpush.msra.mxu0 %v1988
        %1994 = vmatpush.msra.mxu0 %v1987
        %1995 = vmatpush.msra.mxu0 %v1986
        %1996 = vmatpush.msra.mxu0 %v1985
        %1997 = vmatpush.msra.mxu0 %v1984
        %1998 = vmatpush.msra.mxu0 %v1983
        %1999 = vmatpush.msra.mxu0 %v1982
        %2000 = vmatpush.msra.mxu0 %v1981
        %2001 = vmatpush.msra.mxu0 %v1980
        %2002 = vmatpush.msra.mxu0 %v1979
        %2003 = vmatpush.msra.mxu0 %v1978
        %2004 = vmatpush.msra.mxu0 %v1977
        %2005 = vmatpush.msra.mxu0 %v1976
        %2006 = vmatpush.msra.mxu0 %v1975
        %2007 = vmatmul.f32.gmra.mxu0 %v1920
        %v2008 = vpop.f32.mrf.mxu0
        %v2009 = vadd.f32 0.0, %v2008
        %2010 = vmatmul.f32.gmra.mxu0 %v1921
        %v2011 = vpop.f32.mrf.mxu0
        %v2012 = vadd.f32 0.0, %v2011
        %2013 = vmatmul.f32.gmra.mxu0 %v1922
        %v2014 = vpop.f32.mrf.mxu0
        %v2015 = vadd.f32 0.0, %v2014
        %2016 = vmatmul.f32.gmra.mxu0 %v1923
        %v2017 = vpop.f32.mrf.mxu0
        %v2018 = vadd.f32 0.0, %v2017
        %2019 = vmatmul.f32.gmra.mxu0 %v1924
        %v2020 = vpop.f32.mrf.mxu0
        %v2021 = vadd.f32 0.0, %v2020
        %2022 = vmatmul.f32.gmra.mxu0 %v1925
        %v2023 = vpop.f32.mrf.mxu0
        %v2024 = vadd.f32 0.0, %v2023
        %2025 = vmatmul.f32.gmra.mxu0 %v1926
        %v2026 = vpop.f32.mrf.mxu0
        %v2027 = vadd.f32 0.0, %v2026
        %2028 = vmatmul.f32.gmra.mxu0 %v1927
        %v2029 = vpop.f32.mrf.mxu0
        %v2030 = vadd.f32 0.0, %v2029
        %2031 = vmatmul.f32.gmra.mxu0 %v1928
        %v2032 = vpop.f32.mrf.mxu0
        %v2033 = vadd.f32 0.0, %v2032
        %2034 = vmatmul.f32.gmra.mxu0 %v1929
        %v2035 = vpop.f32.mrf.mxu0
        %v2036 = vadd.f32 0.0, %v2035
        %2037 = vmatmul.f32.gmra.mxu0 %v1930
        %v2038 = vpop.f32.mrf.mxu0
        %v2039 = vadd.f32 0.0, %v2038
        %2040 = vmatmul.f32.gmra.mxu0 %v1931
        %v2041 = vpop.f32.mrf.mxu0
        %v2042 = vadd.f32 0.0, %v2041
        %2043 = vmatmul.f32.gmra.mxu0 %v1932
        %v2044 = vpop.f32.mrf.mxu0
        %v2045 = vadd.f32 0.0, %v2044
        %2046 = vmatmul.f32.gmra.mxu0 %v1933
        %v2047 = vpop.f32.mrf.mxu0
        %v2048 = vadd.f32 0.0, %v2047
        %2049 = vmatmul.f32.gmra.mxu0 %v1934
        %v2050 = vpop.f32.mrf.mxu0
        %v2051 = vadd.f32 0.0, %v2050
        %2052 = vmatmul.f32.gmra.mxu0 %v1935
        %v2053 = vpop.f32.mrf.mxu0
        %v2054 = vadd.f32 0.0, %v2053
        %2055 = vmatmul.f32.gmra.mxu0 %v1936
        %v2056 = vpop.f32.mrf.mxu0
        %v2057 = vadd.f32 0.0, %v2056
        %2058 = vmatmul.f32.gmra.mxu0 %v1937
        %v2059 = vpop.f32.mrf.mxu0
        %v2060 = vadd.f32 0.0, %v2059
        %2061 = vmatmul.f32.gmra.mxu0 %v1938
        %v2062 = vpop.f32.mrf.mxu0
        %v2063 = vadd.f32 0.0, %v2062
        %2064 = vmatmul.f32.gmra.mxu0 %v1939
        %v2065 = vpop.f32.mrf.mxu0
        %v2066 = vadd.f32 0.0, %v2065
        %2067 = vmatmul.f32.gmra.mxu0 %v1940
        %v2068 = vpop.f32.mrf.mxu0
        %v2069 = vadd.f32 0.0, %v2068
        %2070 = vmatmul.f32.gmra.mxu0 %v1941
        %v2071 = vpop.f32.mrf.mxu0
        %v2072 = vadd.f32 0.0, %v2071
        %2073 = vmatmul.f32.gmra.mxu0 %v1942
        %v2074 = vpop.f32.mrf.mxu0
        %v2075 = vadd.f32 0.0, %v2074
        %2076 = vmatmul.f32.gmra.mxu0 %v1943
        %v2077 = vpop.f32.mrf.mxu0
        %v2078 = vadd.f32 0.0, %v2077
        %2079 = vmatmul.f32.gmra.mxu0 %v1944
        %v2080 = vpop.f32.mrf.mxu0
        %v2081 = vadd.f32 0.0, %v2080
        %2082 = vmatmul.f32.gmra.mxu0 %v1945
        %v2083 = vpop.f32.mrf.mxu0
        %v2084 = vadd.f32 0.0, %v2083
        %2085 = vmatmul.f32.gmra.mxu0 %v1946
        %v2086 = vpop.f32.mrf.mxu0
        %v2087 = vadd.f32 0.0, %v2086
        %2088 = vmatmul.f32.gmra.mxu0 %v1947
        %v2089 = vpop.f32.mrf.mxu0
        %v2090 = vadd.f32 0.0, %v2089
        %2091 = vmatmul.f32.gmra.mxu0 %v1948
        %v2092 = vpop.f32.mrf.mxu0
        %v2093 = vadd.f32 0.0, %v2092
        %2094 = vmatmul.f32.gmra.mxu0 %v1949
        %v2095 = vpop.f32.mrf.mxu0
        %v2096 = vadd.f32 0.0, %v2095
        %2097 = vmatmul.f32.gmra.mxu0 %v1950
        %v2098 = vpop.f32.mrf.mxu0
        %v2099 = vadd.f32 0.0, %v2098
        %2100 = vmatmul.f32.gmra.mxu0 %v1951
        %v2101 = vpop.f32.mrf.mxu0
        %v2102 = vadd.f32 0.0, %v2101
        %2103 = vmatmul.f32.gmra.mxu0 %v1952
        %v2104 = vpop.f32.mrf.mxu0
        %v2105 = vadd.f32 0.0, %v2104
        %2106 = vmatmul.f32.gmra.mxu0 %v1953
        %v2107 = vpop.f32.mrf.mxu0
        %v2108 = vadd.f32 0.0, %v2107
        %2109 = vmatmul.f32.gmra.mxu0 %v1954
        %v2110 = vpop.f32.mrf.mxu0
        %v2111 = vadd.f32 0.0, %v2110
        %2112 = vmatmul.f32.gmra.mxu0 %v1955
        %v2113 = vpop.f32.mrf.mxu0
        %v2114 = vadd.f32 0.0, %v2113
        %2115 = vmatmul.f32.gmra.mxu0 %v1956
        %v2116 = vpop.f32.mrf.mxu0
        %v2117 = vadd.f32 0.0, %v2116
        %2118 = vmatmul.f32.gmra.mxu0 %v1957
        %v2119 = vpop.f32.mrf.mxu0
        %v2120 = vadd.f32 0.0, %v2119
        %2121 = vmatmul.f32.gmra.mxu0 %v1958
        %v2122 = vpop.f32.mrf.mxu0
        %v2123 = vadd.f32 0.0, %v2122
        %2124 = vmatmul.f32.gmra.mxu0 %v1959
        %v2125 = vpop.f32.mrf.mxu0
        %v2126 = vadd.f32 0.0, %v2125
        %2127 = vmatmul.f32.gmra.mxu0 %v1960
        %v2128 = vpop.f32.mrf.mxu0
        %v2129 = vadd.f32 0.0, %v2128
        %2130 = vmatmul.f32.gmra.mxu0 %v1961
        %v2131 = vpop.f32.mrf.mxu0
        %v2132 = vadd.f32 0.0, %v2131
        %2133 = vmatmul.f32.gmra.mxu0 %v1962
        %v2134 = vpop.f32.mrf.mxu0
        %v2135 = vadd.f32 0.0, %v2134
        %2136 = vmatmul.f32.gmra.mxu0 %v1963
        %v2137 = vpop.f32.mrf.mxu0
        %v2138 = vadd.f32 0.0, %v2137
        %2139 = vmatmul.f32.gmra.mxu0 %v1964
        %v2140 = vpop.f32.mrf.mxu0
        %v2141 = vadd.f32 0.0, %v2140
        %2142 = vmatmul.f32.gmra.mxu0 %v1965
        %v2143 = vpop.f32.mrf.mxu0
        %v2144 = vadd.f32 0.0, %v2143
        %2145 = vmatmul.f32.gmra.mxu0 %v1966
        %v2146 = vpop.f32.mrf.mxu0
        %v2147 = vadd.f32 0.0, %v2146
        %2148 = vmatmul.f32.gmra.mxu0 %v1967
        %v2149 = vpop.f32.mrf.mxu0
        %v2150 = vadd.f32 0.0, %v2149
        %2151 = vmatmul.f32.gmra.mxu0 %v1968
        %v2152 = vpop.f32.mrf.mxu0
        %v2153 = vadd.f32 0.0, %v2152
        %2154 = vmatmul.f32.gmra.mxu0 %v1969
        %v2155 = vpop.f32.mrf.mxu0
        %v2156 = vadd.f32 0.0, %v2155
        %2157 = vmatmul.f32.gmra.mxu0 %v1970
        %v2158 = vpop.f32.mrf.mxu0
        %v2159 = vadd.f32 0.0, %v2158
        %2160 = vmatmul.f32.gmra.mxu0 %v1971
        %v2161 = vpop.f32.mrf.mxu0
        %v2162 = vadd.f32 0.0, %v2161
        %2163 = vmatmul.f32.gmra.mxu0 %v1972
        %v2164 = vpop.f32.mrf.mxu0
        %v2165 = vadd.f32 0.0, %v2164
        %2166 = vmatmul.f32.gmra.mxu0 %v1973
        %v2167 = vpop.f32.mrf.mxu0
        %v2168 = vadd.f32 0.0, %v2167
        %2169 = vdwg.mxu0
        %v2170 = vadd.f32 %v1863, %v2009
        %v2171 = vadd.f32 %v1864, %v2012
        %v2172 = vadd.f32 %v1865, %v2015
        %v2173 = vadd.f32 %v1866, %v2018
        %v2174 = vadd.f32 %v1867, %v2021
        %v2175 = vadd.f32 %v1868, %v2024
        %v2176 = vadd.f32 %v1869, %v2027
        %v2177 = vadd.f32 %v1870, %v2030
        %v2178 = vadd.f32 %v1871, %v2033
        %v2179 = vadd.f32 %v1872, %v2036
        %v2180 = vadd.f32 %v1873, %v2039
        %v2181 = vadd.f32 %v1874, %v2042
        %v2182 = vadd.f32 %v1875, %v2045
        %v2183 = vadd.f32 %v1876, %v2048
        %v2184 = vadd.f32 %v1877, %v2051
        %v2185 = vadd.f32 %v1878, %v2054
        %v2186 = vadd.f32 %v1879, %v2057
        %v2187 = vadd.f32 %v1880, %v2060
        %v2188 = vadd.f32 %v1881, %v2063
        %v2189 = vadd.f32 %v1882, %v2066
        %v2190 = vadd.f32 %v1883, %v2069
        %v2191 = vadd.f32 %v1884, %v2072
        %v2192 = vadd.f32 %v1885, %v2075
        %v2193 = vadd.f32 %v1886, %v2078
        %v2194 = vadd.f32 %v1887, %v2081
        %v2195 = vadd.f32 %v1888, %v2084
        %v2196 = vadd.f32 %v1889, %v2087
        %v2197 = vadd.f32 %v1890, %v2090
        %v2198 = vadd.f32 %v1891, %v2093
        %v2199 = vadd.f32 %v1892, %v2096
        %v2200 = vadd.f32 %v1893, %v2099
        %v2201 = vadd.f32 %v1894, %v2102
        %v2202 = vadd.f32 %v1895, %v2105
        %v2203 = vadd.f32 %v1896, %v2108
        %v2204 = vadd.f32 %v1897, %v2111
        %v2205 = vadd.f32 %v1898, %v2114
        %v2206 = vadd.f32 %v1899, %v2117
        %v2207 = vadd.f32 %v1900, %v2120
        %v2208 = vadd.f32 %v1901, %v2123
        %v2209 = vadd.f32 %v1902, %v2126
        %v2210 = vadd.f32 %v1903, %v2129
        %v2211 = vadd.f32 %v1904, %v2132
        %v2212 = vadd.f32 %v1905, %v2135
        %v2213 = vadd.f32 %v1906, %v2138
        %v2214 = vadd.f32 %v1907, %v2141
        %v2215 = vadd.f32 %v1908, %v2144
        %v2216 = vadd.f32 %v1909, %v2147
        %v2217 = vadd.f32 %v1910, %v2150
        %v2218 = vadd.f32 %v1911, %v2153
        %v2219 = vadd.f32 %v1912, %v2156
        %v2220 = vadd.f32 %v1913, %v2159
        %v2221 = vadd.f32 %v1914, %v2162
        %v2222 = vadd.f32 %v1915, %v2165
        %v2223 = vadd.f32 %v1916, %v2168
        %v2224 = vld [vmem:[%s1919 + $0x2] sm:$0xff]
        %v2225 = vld [vmem:[%s1919 + $0xa] sm:$0xff]
        %v2226 = vld [vmem:[%s1919 + $0x12] sm:$0xff]
        %v2227 = vld [vmem:[%s1919 + $0x22] sm:$0xff]
        %v2228 = vld [vmem:[%s1919 + $0x2a] sm:$0xff]
        %v2229 = vld [vmem:[%s1919 + $0x32] sm:$0xff]
        %v2230 = vld [vmem:[%s1919 + $0x42] sm:$0xff]
        %v2231 = vld [vmem:[%s1919 + $0x4a] sm:$0xff]
        %v2232 = vld [vmem:[%s1919 + $0x52] sm:$0xff]
        %v2233 = vld [vmem:[%s1919 + $0x62] sm:$0xff]
        %v2234 = vld [vmem:[%s1919 + $0x6a] sm:$0xff]
        %v2235 = vld [vmem:[%s1919 + $0x72] sm:$0xff]
        %v2236 = vld [vmem:[%s1919 + $0x82] sm:$0xff]
        %v2237 = vld [vmem:[%s1919 + $0x8a] sm:$0xff]
        %v2238 = vld [vmem:[%s1919 + $0x92] sm:$0xff]
        %v2239 = vld [vmem:[%s1919 + $0xa2] sm:$0xff]
        %v2240 = vld [vmem:[%s1919 + $0xaa] sm:$0xff]
        %v2241 = vld [vmem:[%s1919 + $0xb2] sm:$0xff]
        %v2242 = vld [vmem:[%s1919 + $0xc2] sm:$0xff]
        %v2243 = vld [vmem:[%s1919 + $0xca] sm:$0xff]
        %v2244 = vld [vmem:[%s1919 + $0xd2] sm:$0xff]
        %v2245 = vld [vmem:[%s1919 + $0xe2] sm:$0xff]
        %v2246 = vld [vmem:[%s1919 + $0xea] sm:$0xff]
        %v2247 = vld [vmem:[%s1919 + $0xf2] sm:$0xff]
        %v2248 = vld [vmem:[%s1919 + $0x102] sm:$0xff]
        %v2249 = vld [vmem:[%s1919 + $0x10a] sm:$0xff]
        %v2250 = vld [vmem:[%s1919 + $0x112] sm:$0xff]
        %v2251 = vld [vmem:[%s1919 + $0x122] sm:$0xff]
        %v2252 = vld [vmem:[%s1919 + $0x12a] sm:$0xff]
        %v2253 = vld [vmem:[%s1919 + $0x132] sm:$0xff]
        %v2254 = vld [vmem:[%s1919 + $0x142] sm:$0xff]
        %v2255 = vld [vmem:[%s1919 + $0x14a] sm:$0xff]
        %v2256 = vld [vmem:[%s1919 + $0x152] sm:$0xff]
        %v2257 = vld [vmem:[%s1919 + $0x162] sm:$0xff]
        %v2258 = vld [vmem:[%s1919 + $0x16a] sm:$0xff]
        %v2259 = vld [vmem:[%s1919 + $0x172] sm:$0xff]
        %v2260 = vld [vmem:[%s1919 + $0x182] sm:$0xff]
        %v2261 = vld [vmem:[%s1919 + $0x18a] sm:$0xff]
        %v2262 = vld [vmem:[%s1919 + $0x192] sm:$0xff]
        %v2263 = vld [vmem:[%s1919 + $0x1a2] sm:$0xff]
        %v2264 = vld [vmem:[%s1919 + $0x1aa] sm:$0xff]
        %v2265 = vld [vmem:[%s1919 + $0x1b2] sm:$0xff]
        %v2266 = vld [vmem:[%s1919 + $0x1c2] sm:$0xff]
        %v2267 = vld [vmem:[%s1919 + $0x1ca] sm:$0xff]
        %v2268 = vld [vmem:[%s1919 + $0x1d2] sm:$0xff]
        %v2269 = vld [vmem:[%s1919 + $0x1e2] sm:$0xff]
        %v2270 = vld [vmem:[%s1919 + $0x1ea] sm:$0xff]
        %v2271 = vld [vmem:[%s1919 + $0x1f2] sm:$0xff]
        %v2272 = vld [vmem:[%s1919 + $0x202] sm:$0xff]
        %v2273 = vld [vmem:[%s1919 + $0x20a] sm:$0xff]
        %v2274 = vld [vmem:[%s1919 + $0x212] sm:$0xff]
        %v2275 = vld [vmem:[%s1919 + $0x222] sm:$0xff]
        %v2276 = vld [vmem:[%s1919 + $0x22a] sm:$0xff]
        %v2277 = vld [vmem:[%s1919 + $0x232] sm:$0xff]
        %s2278 = scalar_lea.vmem %s1, 896
        %v2279 = vld [vmem:[%s2278] sm:$0xff]
        %v2280 = vld [vmem:[%s2278 + $0x8] sm:$0xff]
        %v2281 = vld [vmem:[%s2278 + $0x10] sm:$0xff]
        %v2282 = vld [vmem:[%s2278 + $0x18] sm:$0xff]
        %v2283 = vld [vmem:[%s2278 + $0x20] sm:$0xff]
        %v2284 = vld [vmem:[%s2278 + $0x28] sm:$0xff]
        %v2285 = vld [vmem:[%s2278 + $0x30] sm:$0xff]
        %v2286 = vld [vmem:[%s2278 + $0x38] sm:$0xff]
        %v2287 = vld [vmem:[%s2278 + $0x40] sm:$0xff]
        %v2288 = vld [vmem:[%s2278 + $0x48] sm:$0xff]
        %v2289 = vld [vmem:[%s2278 + $0x50] sm:$0xff]
        %v2290 = vld [vmem:[%s2278 + $0x58] sm:$0xff]
        %v2291 = vld [vmem:[%s2278 + $0x60] sm:$0xff]
        %v2292 = vld [vmem:[%s2278 + $0x68] sm:$0xff]
        %v2293 = vld [vmem:[%s2278 + $0x70] sm:$0xff]
        %v2294 = vld [vmem:[%s2278 + $0x78] sm:$0xff]
        %2295 = vmatpush.msra.mxu0 %v2294
        %2296 = vmatpush.msra.mxu0 %v2293
        %2297 = vmatpush.msra.mxu0 %v2292
        %2298 = vmatpush.msra.mxu0 %v2291
        %2299 = vmatpush.msra.mxu0 %v2290
        %2300 = vmatpush.msra.mxu0 %v2289
        %2301 = vmatpush.msra.mxu0 %v2288
        %2302 = vmatpush.msra.mxu0 %v2287
        %2303 = vmatpush.msra.mxu0 %v2286
        %2304 = vmatpush.msra.mxu0 %v2285
        %2305 = vmatpush.msra.mxu0 %v2284
        %2306 = vmatpush.msra.mxu0 %v2283
        %2307 = vmatpush.msra.mxu0 %v2282
        %2308 = vmatpush.msra.mxu0 %v2281
        %2309 = vmatpush.msra.mxu0 %v2280
        %2310 = vmatpush.msra.mxu0 %v2279
        %2311 = vmatmul.f32.gmra.mxu0 %v2224
        %v2312 = vpop.f32.mrf.mxu0
        %v2313 = vadd.f32 0.0, %v2312
        %2314 = vmatmul.f32.gmra.mxu0 %v2225
        %v2315 = vpop.f32.mrf.mxu0
        %v2316 = vadd.f32 0.0, %v2315
        %2317 = vmatmul.f32.gmra.mxu0 %v2226
        %v2318 = vpop.f32.mrf.mxu0
        %v2319 = vadd.f32 0.0, %v2318
        %2320 = vmatmul.f32.gmra.mxu0 %v2227
        %v2321 = vpop.f32.mrf.mxu0
        %v2322 = vadd.f32 0.0, %v2321
        %2323 = vmatmul.f32.gmra.mxu0 %v2228
        %v2324 = vpop.f32.mrf.mxu0
        %v2325 = vadd.f32 0.0, %v2324
        %2326 = vmatmul.f32.gmra.mxu0 %v2229
        %v2327 = vpop.f32.mrf.mxu0
        %v2328 = vadd.f32 0.0, %v2327
        %2329 = vmatmul.f32.gmra.mxu0 %v2230
        %v2330 = vpop.f32.mrf.mxu0
        %v2331 = vadd.f32 0.0, %v2330
        %2332 = vmatmul.f32.gmra.mxu0 %v2231
        %v2333 = vpop.f32.mrf.mxu0
        %v2334 = vadd.f32 0.0, %v2333
        %2335 = vmatmul.f32.gmra.mxu0 %v2232
        %v2336 = vpop.f32.mrf.mxu0
        %v2337 = vadd.f32 0.0, %v2336
        %2338 = vmatmul.f32.gmra.mxu0 %v2233
        %v2339 = vpop.f32.mrf.mxu0
        %v2340 = vadd.f32 0.0, %v2339
        %2341 = vmatmul.f32.gmra.mxu0 %v2234
        %v2342 = vpop.f32.mrf.mxu0
        %v2343 = vadd.f32 0.0, %v2342
        %2344 = vmatmul.f32.gmra.mxu0 %v2235
        %v2345 = vpop.f32.mrf.mxu0
        %v2346 = vadd.f32 0.0, %v2345
        %2347 = vmatmul.f32.gmra.mxu0 %v2236
        %v2348 = vpop.f32.mrf.mxu0
        %v2349 = vadd.f32 0.0, %v2348
        %2350 = vmatmul.f32.gmra.mxu0 %v2237
        %v2351 = vpop.f32.mrf.mxu0
        %v2352 = vadd.f32 0.0, %v2351
        %2353 = vmatmul.f32.gmra.mxu0 %v2238
        %v2354 = vpop.f32.mrf.mxu0
        %v2355 = vadd.f32 0.0, %v2354
        %2356 = vmatmul.f32.gmra.mxu0 %v2239
        %v2357 = vpop.f32.mrf.mxu0
        %v2358 = vadd.f32 0.0, %v2357
        %2359 = vmatmul.f32.gmra.mxu0 %v2240
        %v2360 = vpop.f32.mrf.mxu0
        %v2361 = vadd.f32 0.0, %v2360
        %2362 = vmatmul.f32.gmra.mxu0 %v2241
        %v2363 = vpop.f32.mrf.mxu0
        %v2364 = vadd.f32 0.0, %v2363
        %2365 = vmatmul.f32.gmra.mxu0 %v2242
        %v2366 = vpop.f32.mrf.mxu0
        %v2367 = vadd.f32 0.0, %v2366
        %2368 = vmatmul.f32.gmra.mxu0 %v2243
        %v2369 = vpop.f32.mrf.mxu0
        %v2370 = vadd.f32 0.0, %v2369
        %2371 = vmatmul.f32.gmra.mxu0 %v2244
        %v2372 = vpop.f32.mrf.mxu0
        %v2373 = vadd.f32 0.0, %v2372
        %2374 = vmatmul.f32.gmra.mxu0 %v2245
        %v2375 = vpop.f32.mrf.mxu0
        %v2376 = vadd.f32 0.0, %v2375
        %2377 = vmatmul.f32.gmra.mxu0 %v2246
        %v2378 = vpop.f32.mrf.mxu0
        %v2379 = vadd.f32 0.0, %v2378
        %2380 = vmatmul.f32.gmra.mxu0 %v2247
        %v2381 = vpop.f32.mrf.mxu0
        %v2382 = vadd.f32 0.0, %v2381
        %2383 = vmatmul.f32.gmra.mxu0 %v2248
        %v2384 = vpop.f32.mrf.mxu0
        %v2385 = vadd.f32 0.0, %v2384
        %2386 = vmatmul.f32.gmra.mxu0 %v2249
        %v2387 = vpop.f32.mrf.mxu0
        %v2388 = vadd.f32 0.0, %v2387
        %2389 = vmatmul.f32.gmra.mxu0 %v2250
        %v2390 = vpop.f32.mrf.mxu0
        %v2391 = vadd.f32 0.0, %v2390
        %2392 = vmatmul.f32.gmra.mxu0 %v2251
        %v2393 = vpop.f32.mrf.mxu0
        %v2394 = vadd.f32 0.0, %v2393
        %2395 = vmatmul.f32.gmra.mxu0 %v2252
        %v2396 = vpop.f32.mrf.mxu0
        %v2397 = vadd.f32 0.0, %v2396
        %2398 = vmatmul.f32.gmra.mxu0 %v2253
        %v2399 = vpop.f32.mrf.mxu0
        %v2400 = vadd.f32 0.0, %v2399
        %2401 = vmatmul.f32.gmra.mxu0 %v2254
        %v2402 = vpop.f32.mrf.mxu0
        %v2403 = vadd.f32 0.0, %v2402
        %2404 = vmatmul.f32.gmra.mxu0 %v2255
        %v2405 = vpop.f32.mrf.mxu0
        %v2406 = vadd.f32 0.0, %v2405
        %2407 = vmatmul.f32.gmra.mxu0 %v2256
        %v2408 = vpop.f32.mrf.mxu0
        %v2409 = vadd.f32 0.0, %v2408
        %2410 = vmatmul.f32.gmra.mxu0 %v2257
        %v2411 = vpop.f32.mrf.mxu0
        %v2412 = vadd.f32 0.0, %v2411
        %2413 = vmatmul.f32.gmra.mxu0 %v2258
        %v2414 = vpop.f32.mrf.mxu0
        %v2415 = vadd.f32 0.0, %v2414
        %2416 = vmatmul.f32.gmra.mxu0 %v2259
        %v2417 = vpop.f32.mrf.mxu0
        %v2418 = vadd.f32 0.0, %v2417
        %2419 = vmatmul.f32.gmra.mxu0 %v2260
        %v2420 = vpop.f32.mrf.mxu0
        %v2421 = vadd.f32 0.0, %v2420
        %2422 = vmatmul.f32.gmra.mxu0 %v2261
        %v2423 = vpop.f32.mrf.mxu0
        %v2424 = vadd.f32 0.0, %v2423
        %2425 = vmatmul.f32.gmra.mxu0 %v2262
        %v2426 = vpop.f32.mrf.mxu0
        %v2427 = vadd.f32 0.0, %v2426
        %2428 = vmatmul.f32.gmra.mxu0 %v2263
        %v2429 = vpop.f32.mrf.mxu0
        %v2430 = vadd.f32 0.0, %v2429
        %2431 = vmatmul.f32.gmra.mxu0 %v2264
        %v2432 = vpop.f32.mrf.mxu0
        %v2433 = vadd.f32 0.0, %v2432
        %2434 = vmatmul.f32.gmra.mxu0 %v2265
        %v2435 = vpop.f32.mrf.mxu0
        %v2436 = vadd.f32 0.0, %v2435
        %2437 = vmatmul.f32.gmra.mxu0 %v2266
        %v2438 = vpop.f32.mrf.mxu0
        %v2439 = vadd.f32 0.0, %v2438
        %2440 = vmatmul.f32.gmra.mxu0 %v2267
        %v2441 = vpop.f32.mrf.mxu0
        %v2442 = vadd.f32 0.0, %v2441
        %2443 = vmatmul.f32.gmra.mxu0 %v2268
        %v2444 = vpop.f32.mrf.mxu0
        %v2445 = vadd.f32 0.0, %v2444
        %2446 = vmatmul.f32.gmra.mxu0 %v2269
        %v2447 = vpop.f32.mrf.mxu0
        %v2448 = vadd.f32 0.0, %v2447
        %2449 = vmatmul.f32.gmra.mxu0 %v2270
        %v2450 = vpop.f32.mrf.mxu0
        %v2451 = vadd.f32 0.0, %v2450
        %2452 = vmatmul.f32.gmra.mxu0 %v2271
        %v2453 = vpop.f32.mrf.mxu0
        %v2454 = vadd.f32 0.0, %v2453
        %2455 = vmatmul.f32.gmra.mxu0 %v2272
        %v2456 = vpop.f32.mrf.mxu0
        %v2457 = vadd.f32 0.0, %v2456
        %2458 = vmatmul.f32.gmra.mxu0 %v2273
        %v2459 = vpop.f32.mrf.mxu0
        %v2460 = vadd.f32 0.0, %v2459
        %2461 = vmatmul.f32.gmra.mxu0 %v2274
        %v2462 = vpop.f32.mrf.mxu0
        %v2463 = vadd.f32 0.0, %v2462
        %2464 = vmatmul.f32.gmra.mxu0 %v2275
        %v2465 = vpop.f32.mrf.mxu0
        %v2466 = vadd.f32 0.0, %v2465
        %2467 = vmatmul.f32.gmra.mxu0 %v2276
        %v2468 = vpop.f32.mrf.mxu0
        %v2469 = vadd.f32 0.0, %v2468
        %2470 = vmatmul.f32.gmra.mxu0 %v2277
        %v2471 = vpop.f32.mrf.mxu0
        %v2472 = vadd.f32 0.0, %v2471
        %2473 = vdwg.mxu0
        %v2474 = vadd.f32 %v2170, %v2313
        %v2475 = vadd.f32 %v2171, %v2316
        %v2476 = vadd.f32 %v2172, %v2319
        %v2477 = vadd.f32 %v2173, %v2322
        %v2478 = vadd.f32 %v2174, %v2325
        %v2479 = vadd.f32 %v2175, %v2328
        %v2480 = vadd.f32 %v2176, %v2331
        %v2481 = vadd.f32 %v2177, %v2334
        %v2482 = vadd.f32 %v2178, %v2337
        %v2483 = vadd.f32 %v2179, %v2340
        %v2484 = vadd.f32 %v2180, %v2343
        %v2485 = vadd.f32 %v2181, %v2346
        %v2486 = vadd.f32 %v2182, %v2349
        %v2487 = vadd.f32 %v2183, %v2352
        %v2488 = vadd.f32 %v2184, %v2355
        %v2489 = vadd.f32 %v2185, %v2358
        %v2490 = vadd.f32 %v2186, %v2361
        %v2491 = vadd.f32 %v2187, %v2364
        %v2492 = vadd.f32 %v2188, %v2367
        %v2493 = vadd.f32 %v2189, %v2370
        %v2494 = vadd.f32 %v2190, %v2373
        %v2495 = vadd.f32 %v2191, %v2376
        %v2496 = vadd.f32 %v2192, %v2379
        %v2497 = vadd.f32 %v2193, %v2382
        %v2498 = vadd.f32 %v2194, %v2385
        %v2499 = vadd.f32 %v2195, %v2388
        %v2500 = vadd.f32 %v2196, %v2391
        %v2501 = vadd.f32 %v2197, %v2394
        %v2502 = vadd.f32 %v2198, %v2397
        %v2503 = vadd.f32 %v2199, %v2400
        %v2504 = vadd.f32 %v2200, %v2403
        %v2505 = vadd.f32 %v2201, %v2406
        %v2506 = vadd.f32 %v2202, %v2409
        %v2507 = vadd.f32 %v2203, %v2412
        %v2508 = vadd.f32 %v2204, %v2415
        %v2509 = vadd.f32 %v2205, %v2418
        %v2510 = vadd.f32 %v2206, %v2421
        %v2511 = vadd.f32 %v2207, %v2424
        %v2512 = vadd.f32 %v2208, %v2427
        %v2513 = vadd.f32 %v2209, %v2430
        %v2514 = vadd.f32 %v2210, %v2433
        %v2515 = vadd.f32 %v2211, %v2436
        %v2516 = vadd.f32 %v2212, %v2439
        %v2517 = vadd.f32 %v2213, %v2442
        %v2518 = vadd.f32 %v2214, %v2445
        %v2519 = vadd.f32 %v2215, %v2448
        %v2520 = vadd.f32 %v2216, %v2451
        %v2521 = vadd.f32 %v2217, %v2454
        %v2522 = vadd.f32 %v2218, %v2457
        %v2523 = vadd.f32 %v2219, %v2460
        %v2524 = vadd.f32 %v2220, %v2463
        %v2525 = vadd.f32 %v2221, %v2466
        %v2526 = vadd.f32 %v2222, %v2469
        %v2527 = vadd.f32 %v2223, %v2472
        %v2528 = vld [vmem:[%s1919 + $0x4] sm:$0xff]
        %v2529 = vld [vmem:[%s1919 + $0xc] sm:$0xff]
        %v2530 = vld [vmem:[%s1919 + $0x14] sm:$0xff]
        %v2531 = vld [vmem:[%s1919 + $0x24] sm:$0xff]
        %v2532 = vld [vmem:[%s1919 + $0x2c] sm:$0xff]
        %v2533 = vld [vmem:[%s1919 + $0x34] sm:$0xff]
        %v2534 = vld [vmem:[%s1919 + $0x44] sm:$0xff]
        %v2535 = vld [vmem:[%s1919 + $0x4c] sm:$0xff]
        %v2536 = vld [vmem:[%s1919 + $0x54] sm:$0xff]
        %v2537 = vld [vmem:[%s1919 + $0x64] sm:$0xff]
        %v2538 = vld [vmem:[%s1919 + $0x6c] sm:$0xff]
        %v2539 = vld [vmem:[%s1919 + $0x74] sm:$0xff]
        %v2540 = vld [vmem:[%s1919 + $0x84] sm:$0xff]
        %v2541 = vld [vmem:[%s1919 + $0x8c] sm:$0xff]
        %v2542 = vld [vmem:[%s1919 + $0x94] sm:$0xff]
        %v2543 = vld [vmem:[%s1919 + $0xa4] sm:$0xff]
        %v2544 = vld [vmem:[%s1919 + $0xac] sm:$0xff]
        %v2545 = vld [vmem:[%s1919 + $0xb4] sm:$0xff]
        %v2546 = vld [vmem:[%s1919 + $0xc4] sm:$0xff]
        %v2547 = vld [vmem:[%s1919 + $0xcc] sm:$0xff]
        %v2548 = vld [vmem:[%s1919 + $0xd4] sm:$0xff]
        %v2549 = vld [vmem:[%s1919 + $0xe4] sm:$0xff]
        %v2550 = vld [vmem:[%s1919 + $0xec] sm:$0xff]
        %v2551 = vld [vmem:[%s1919 + $0xf4] sm:$0xff]
        %v2552 = vld [vmem:[%s1919 + $0x104] sm:$0xff]
        %v2553 = vld [vmem:[%s1919 + $0x10c] sm:$0xff]
        %v2554 = vld [vmem:[%s1919 + $0x114] sm:$0xff]
        %v2555 = vld [vmem:[%s1919 + $0x124] sm:$0xff]
        %v2556 = vld [vmem:[%s1919 + $0x12c] sm:$0xff]
        %v2557 = vld [vmem:[%s1919 + $0x134] sm:$0xff]
        %v2558 = vld [vmem:[%s1919 + $0x144] sm:$0xff]
        %v2559 = vld [vmem:[%s1919 + $0x14c] sm:$0xff]
        %v2560 = vld [vmem:[%s1919 + $0x154] sm:$0xff]
        %v2561 = vld [vmem:[%s1919 + $0x164] sm:$0xff]
        %v2562 = vld [vmem:[%s1919 + $0x16c] sm:$0xff]
        %v2563 = vld [vmem:[%s1919 + $0x174] sm:$0xff]
        %v2564 = vld [vmem:[%s1919 + $0x184] sm:$0xff]
        %v2565 = vld [vmem:[%s1919 + $0x18c] sm:$0xff]
        %v2566 = vld [vmem:[%s1919 + $0x194] sm:$0xff]
        %v2567 = vld [vmem:[%s1919 + $0x1a4] sm:$0xff]
        %v2568 = vld [vmem:[%s1919 + $0x1ac] sm:$0xff]
        %v2569 = vld [vmem:[%s1919 + $0x1b4] sm:$0xff]
        %v2570 = vld [vmem:[%s1919 + $0x1c4] sm:$0xff]
        %v2571 = vld [vmem:[%s1919 + $0x1cc] sm:$0xff]
        %v2572 = vld [vmem:[%s1919 + $0x1d4] sm:$0xff]
        %v2573 = vld [vmem:[%s1919 + $0x1e4] sm:$0xff]
        %v2574 = vld [vmem:[%s1919 + $0x1ec] sm:$0xff]
        %v2575 = vld [vmem:[%s1919 + $0x1f4] sm:$0xff]
        %v2576 = vld [vmem:[%s1919 + $0x204] sm:$0xff]
        %v2577 = vld [vmem:[%s1919 + $0x20c] sm:$0xff]
        %v2578 = vld [vmem:[%s1919 + $0x214] sm:$0xff]
        %v2579 = vld [vmem:[%s1919 + $0x224] sm:$0xff]
        %v2580 = vld [vmem:[%s1919 + $0x22c] sm:$0xff]
        %v2581 = vld [vmem:[%s1919 + $0x234] sm:$0xff]
        %s2582 = scalar_lea.vmem %s1, 1024
        %v2583 = vld [vmem:[%s2582] sm:$0xff]
        %v2584 = vld [vmem:[%s2582 + $0x8] sm:$0xff]
        %v2585 = vld [vmem:[%s2582 + $0x10] sm:$0xff]
        %v2586 = vld [vmem:[%s2582 + $0x18] sm:$0xff]
        %v2587 = vld [vmem:[%s2582 + $0x20] sm:$0xff]
        %v2588 = vld [vmem:[%s2582 + $0x28] sm:$0xff]
        %v2589 = vld [vmem:[%s2582 + $0x30] sm:$0xff]
        %v2590 = vld [vmem:[%s2582 + $0x38] sm:$0xff]
        %v2591 = vld [vmem:[%s2582 + $0x40] sm:$0xff]
        %v2592 = vld [vmem:[%s2582 + $0x48] sm:$0xff]
        %v2593 = vld [vmem:[%s2582 + $0x50] sm:$0xff]
        %v2594 = vld [vmem:[%s2582 + $0x58] sm:$0xff]
        %v2595 = vld [vmem:[%s2582 + $0x60] sm:$0xff]
        %v2596 = vld [vmem:[%s2582 + $0x68] sm:$0xff]
        %v2597 = vld [vmem:[%s2582 + $0x70] sm:$0xff]
        %v2598 = vld [vmem:[%s2582 + $0x78] sm:$0xff]
        %2599 = vmatpush.msra.mxu0 %v2598
        %2600 = vmatpush.msra.mxu0 %v2597
        %2601 = vmatpush.msra.mxu0 %v2596
        %2602 = vmatpush.msra.mxu0 %v2595
        %2603 = vmatpush.msra.mxu0 %v2594
        %2604 = vmatpush.msra.mxu0 %v2593
        %2605 = vmatpush.msra.mxu0 %v2592
        %2606 = vmatpush.msra.mxu0 %v2591
        %2607 = vmatpush.msra.mxu0 %v2590
        %2608 = vmatpush.msra.mxu0 %v2589
        %2609 = vmatpush.msra.mxu0 %v2588
        %2610 = vmatpush.msra.mxu0 %v2587
        %2611 = vmatpush.msra.mxu0 %v2586
        %2612 = vmatpush.msra.mxu0 %v2585
        %2613 = vmatpush.msra.mxu0 %v2584
        %2614 = vmatpush.msra.mxu0 %v2583
        %2615 = vmatmul.f32.gmra.mxu0 %v2528
        %v2616 = vpop.f32.mrf.mxu0
        %v2617 = vadd.f32 0.0, %v2616
        %2618 = vmatmul.f32.gmra.mxu0 %v2529
        %v2619 = vpop.f32.mrf.mxu0
        %v2620 = vadd.f32 0.0, %v2619
        %2621 = vmatmul.f32.gmra.mxu0 %v2530
        %v2622 = vpop.f32.mrf.mxu0
        %v2623 = vadd.f32 0.0, %v2622
        %2624 = vmatmul.f32.gmra.mxu0 %v2531
        %v2625 = vpop.f32.mrf.mxu0
        %v2626 = vadd.f32 0.0, %v2625
        %2627 = vmatmul.f32.gmra.mxu0 %v2532
        %v2628 = vpop.f32.mrf.mxu0
        %v2629 = vadd.f32 0.0, %v2628
        %2630 = vmatmul.f32.gmra.mxu0 %v2533
        %v2631 = vpop.f32.mrf.mxu0
        %v2632 = vadd.f32 0.0, %v2631
        %2633 = vmatmul.f32.gmra.mxu0 %v2534
        %v2634 = vpop.f32.mrf.mxu0
        %v2635 = vadd.f32 0.0, %v2634
        %2636 = vmatmul.f32.gmra.mxu0 %v2535
        %v2637 = vpop.f32.mrf.mxu0
        %v2638 = vadd.f32 0.0, %v2637
        %2639 = vmatmul.f32.gmra.mxu0 %v2536
        %v2640 = vpop.f32.mrf.mxu0
        %v2641 = vadd.f32 0.0, %v2640
        %2642 = vmatmul.f32.gmra.mxu0 %v2537
        %v2643 = vpop.f32.mrf.mxu0
        %v2644 = vadd.f32 0.0, %v2643
        %2645 = vmatmul.f32.gmra.mxu0 %v2538
        %v2646 = vpop.f32.mrf.mxu0
        %v2647 = vadd.f32 0.0, %v2646
        %2648 = vmatmul.f32.gmra.mxu0 %v2539
        %v2649 = vpop.f32.mrf.mxu0
        %v2650 = vadd.f32 0.0, %v2649
        %2651 = vmatmul.f32.gmra.mxu0 %v2540
        %v2652 = vpop.f32.mrf.mxu0
        %v2653 = vadd.f32 0.0, %v2652
        %2654 = vmatmul.f32.gmra.mxu0 %v2541
        %v2655 = vpop.f32.mrf.mxu0
        %v2656 = vadd.f32 0.0, %v2655
        %2657 = vmatmul.f32.gmra.mxu0 %v2542
        %v2658 = vpop.f32.mrf.mxu0
        %v2659 = vadd.f32 0.0, %v2658
        %2660 = vmatmul.f32.gmra.mxu0 %v2543
        %v2661 = vpop.f32.mrf.mxu0
        %v2662 = vadd.f32 0.0, %v2661
        %2663 = vmatmul.f32.gmra.mxu0 %v2544
        %v2664 = vpop.f32.mrf.mxu0
        %v2665 = vadd.f32 0.0, %v2664
        %2666 = vmatmul.f32.gmra.mxu0 %v2545
        %v2667 = vpop.f32.mrf.mxu0
        %v2668 = vadd.f32 0.0, %v2667
        %2669 = vmatmul.f32.gmra.mxu0 %v2546
        %v2670 = vpop.f32.mrf.mxu0
        %v2671 = vadd.f32 0.0, %v2670
        %2672 = vmatmul.f32.gmra.mxu0 %v2547
        %v2673 = vpop.f32.mrf.mxu0
        %v2674 = vadd.f32 0.0, %v2673
        %2675 = vmatmul.f32.gmra.mxu0 %v2548
        %v2676 = vpop.f32.mrf.mxu0
        %v2677 = vadd.f32 0.0, %v2676
        %2678 = vmatmul.f32.gmra.mxu0 %v2549
        %v2679 = vpop.f32.mrf.mxu0
        %v2680 = vadd.f32 0.0, %v2679
        %2681 = vmatmul.f32.gmra.mxu0 %v2550
        %v2682 = vpop.f32.mrf.mxu0
        %v2683 = vadd.f32 0.0, %v2682
        %2684 = vmatmul.f32.gmra.mxu0 %v2551
        %v2685 = vpop.f32.mrf.mxu0
        %v2686 = vadd.f32 0.0, %v2685
        %2687 = vmatmul.f32.gmra.mxu0 %v2552
        %v2688 = vpop.f32.mrf.mxu0
        %v2689 = vadd.f32 0.0, %v2688
        %2690 = vmatmul.f32.gmra.mxu0 %v2553
        %v2691 = vpop.f32.mrf.mxu0
        %v2692 = vadd.f32 0.0, %v2691
        %2693 = vmatmul.f32.gmra.mxu0 %v2554
        %v2694 = vpop.f32.mrf.mxu0
        %v2695 = vadd.f32 0.0, %v2694
        %2696 = vmatmul.f32.gmra.mxu0 %v2555
        %v2697 = vpop.f32.mrf.mxu0
        %v2698 = vadd.f32 0.0, %v2697
        %2699 = vmatmul.f32.gmra.mxu0 %v2556
        %v2700 = vpop.f32.mrf.mxu0
        %v2701 = vadd.f32 0.0, %v2700
        %2702 = vmatmul.f32.gmra.mxu0 %v2557
        %v2703 = vpop.f32.mrf.mxu0
        %v2704 = vadd.f32 0.0, %v2703
        %2705 = vmatmul.f32.gmra.mxu0 %v2558
        %v2706 = vpop.f32.mrf.mxu0
        %v2707 = vadd.f32 0.0, %v2706
        %2708 = vmatmul.f32.gmra.mxu0 %v2559
        %v2709 = vpop.f32.mrf.mxu0
        %v2710 = vadd.f32 0.0, %v2709
        %2711 = vmatmul.f32.gmra.mxu0 %v2560
        %v2712 = vpop.f32.mrf.mxu0
        %v2713 = vadd.f32 0.0, %v2712
        %2714 = vmatmul.f32.gmra.mxu0 %v2561
        %v2715 = vpop.f32.mrf.mxu0
        %v2716 = vadd.f32 0.0, %v2715
        %2717 = vmatmul.f32.gmra.mxu0 %v2562
        %v2718 = vpop.f32.mrf.mxu0
        %v2719 = vadd.f32 0.0, %v2718
        %2720 = vmatmul.f32.gmra.mxu0 %v2563
        %v2721 = vpop.f32.mrf.mxu0
        %v2722 = vadd.f32 0.0, %v2721
        %2723 = vmatmul.f32.gmra.mxu0 %v2564
        %v2724 = vpop.f32.mrf.mxu0
        %v2725 = vadd.f32 0.0, %v2724
        %2726 = vmatmul.f32.gmra.mxu0 %v2565
        %v2727 = vpop.f32.mrf.mxu0
        %v2728 = vadd.f32 0.0, %v2727
        %2729 = vmatmul.f32.gmra.mxu0 %v2566
        %v2730 = vpop.f32.mrf.mxu0
        %v2731 = vadd.f32 0.0, %v2730
        %2732 = vmatmul.f32.gmra.mxu0 %v2567
        %v2733 = vpop.f32.mrf.mxu0
        %v2734 = vadd.f32 0.0, %v2733
        %2735 = vmatmul.f32.gmra.mxu0 %v2568
        %v2736 = vpop.f32.mrf.mxu0
        %v2737 = vadd.f32 0.0, %v2736
        %2738 = vmatmul.f32.gmra.mxu0 %v2569
        %v2739 = vpop.f32.mrf.mxu0
        %v2740 = vadd.f32 0.0, %v2739
        %2741 = vmatmul.f32.gmra.mxu0 %v2570
        %v2742 = vpop.f32.mrf.mxu0
        %v2743 = vadd.f32 0.0, %v2742
        %2744 = vmatmul.f32.gmra.mxu0 %v2571
        %v2745 = vpop.f32.mrf.mxu0
        %v2746 = vadd.f32 0.0, %v2745
        %2747 = vmatmul.f32.gmra.mxu0 %v2572
        %v2748 = vpop.f32.mrf.mxu0
        %v2749 = vadd.f32 0.0, %v2748
        %2750 = vmatmul.f32.gmra.mxu0 %v2573
        %v2751 = vpop.f32.mrf.mxu0
        %v2752 = vadd.f32 0.0, %v2751
        %2753 = vmatmul.f32.gmra.mxu0 %v2574
        %v2754 = vpop.f32.mrf.mxu0
        %v2755 = vadd.f32 0.0, %v2754
        %2756 = vmatmul.f32.gmra.mxu0 %v2575
        %v2757 = vpop.f32.mrf.mxu0
        %v2758 = vadd.f32 0.0, %v2757
        %2759 = vmatmul.f32.gmra.mxu0 %v2576
        %v2760 = vpop.f32.mrf.mxu0
        %v2761 = vadd.f32 0.0, %v2760
        %2762 = vmatmul.f32.gmra.mxu0 %v2577
        %v2763 = vpop.f32.mrf.mxu0
        %v2764 = vadd.f32 0.0, %v2763
        %2765 = vmatmul.f32.gmra.mxu0 %v2578
        %v2766 = vpop.f32.mrf.mxu0
        %v2767 = vadd.f32 0.0, %v2766
        %2768 = vmatmul.f32.gmra.mxu0 %v2579
        %v2769 = vpop.f32.mrf.mxu0
        %v2770 = vadd.f32 0.0, %v2769
        %2771 = vmatmul.f32.gmra.mxu0 %v2580
        %v2772 = vpop.f32.mrf.mxu0
        %v2773 = vadd.f32 0.0, %v2772
        %2774 = vmatmul.f32.gmra.mxu0 %v2581
        %v2775 = vpop.f32.mrf.mxu0
        %v2776 = vadd.f32 0.0, %v2775
        %2777 = vdwg.mxu0
        %v2778 = vadd.f32 %v2474, %v2617
        %v2779 = vadd.f32 %v2475, %v2620
        %v2780 = vadd.f32 %v2476, %v2623
        %v2781 = vadd.f32 %v2477, %v2626
        %v2782 = vadd.f32 %v2478, %v2629
        %v2783 = vadd.f32 %v2479, %v2632
        %v2784 = vadd.f32 %v2480, %v2635
        %v2785 = vadd.f32 %v2481, %v2638
        %v2786 = vadd.f32 %v2482, %v2641
        %v2787 = vadd.f32 %v2483, %v2644
        %v2788 = vadd.f32 %v2484, %v2647
        %v2789 = vadd.f32 %v2485, %v2650
        %v2790 = vadd.f32 %v2486, %v2653
        %v2791 = vadd.f32 %v2487, %v2656
        %v2792 = vadd.f32 %v2488, %v2659
        %v2793 = vadd.f32 %v2489, %v2662
        %v2794 = vadd.f32 %v2490, %v2665
        %v2795 = vadd.f32 %v2491, %v2668
        %v2796 = vadd.f32 %v2492, %v2671
        %v2797 = vadd.f32 %v2493, %v2674
        %v2798 = vadd.f32 %v2494, %v2677
        %v2799 = vadd.f32 %v2495, %v2680
        %v2800 = vadd.f32 %v2496, %v2683
        %v2801 = vadd.f32 %v2497, %v2686
        %v2802 = vadd.f32 %v2498, %v2689
        %v2803 = vadd.f32 %v2499, %v2692
        %v2804 = vadd.f32 %v2500, %v2695
        %v2805 = vadd.f32 %v2501, %v2698
        %v2806 = vadd.f32 %v2502, %v2701
        %v2807 = vadd.f32 %v2503, %v2704
        %v2808 = vadd.f32 %v2504, %v2707
        %v2809 = vadd.f32 %v2505, %v2710
        %v2810 = vadd.f32 %v2506, %v2713
        %v2811 = vadd.f32 %v2507, %v2716
        %v2812 = vadd.f32 %v2508, %v2719
        %v2813 = vadd.f32 %v2509, %v2722
        %v2814 = vadd.f32 %v2510, %v2725
        %v2815 = vadd.f32 %v2511, %v2728
        %v2816 = vadd.f32 %v2512, %v2731
        %v2817 = vadd.f32 %v2513, %v2734
        %v2818 = vadd.f32 %v2514, %v2737
        %v2819 = vadd.f32 %v2515, %v2740
        %v2820 = vadd.f32 %v2516, %v2743
        %v2821 = vadd.f32 %v2517, %v2746
        %v2822 = vadd.f32 %v2518, %v2749
        %v2823 = vadd.f32 %v2519, %v2752
        %v2824 = vadd.f32 %v2520, %v2755
        %v2825 = vadd.f32 %v2521, %v2758
        %v2826 = vadd.f32 %v2522, %v2761
        %v2827 = vadd.f32 %v2523, %v2764
        %v2828 = vadd.f32 %v2524, %v2767
        %v2829 = vadd.f32 %v2525, %v2770
        %v2830 = vadd.f32 %v2526, %v2773
        %v2831 = vadd.f32 %v2527, %v2776
        %v2832 = vlaneseq
        %v2833 = vshrl.u32 %v2832, 7
        %v2834 = vadd.s32 %v2833, 8
        %v2835 = vadd.s32 %v2833, 16
        %p2836 = scmp.gt.s32.totalorder %s26, 0
        %s2837 = scalar_select %p2836, 1, 0
        %v2838 = vstv %s2837
        %vm2839 = vcmp.eq.s32.totalorder %v2838, 1
        %p2840 = scmp.lt.s32.totalorder %s26, 0
        %s2841 = scalar_select %p2840, 1, 0
        %v2842 = vstv %s2841
        %vm2843 = vcmp.eq.s32.totalorder %v2842, 1
        %vm2844 = vcmp.ge.s32.totalorder %v2833, 1
        %vm2845 = vcmp.ge.s32.totalorder %v2834, 1
        %vm2846 = vcmp.ge.s32.totalorder %v2835, 1
        %vm2847 = vcmp.le.s32.totalorder %v2833, 16
        %vm2848 = vcmp.le.s32.totalorder %v2834, 16
        %vm2849 = vcmp.le.s32.totalorder %v2835, 16
        %vm2850 = vmand %vm2844, %vm2847
        %vm2851 = vmand %vm2845, %vm2848
        %vm2852 = vmand %vm2846, %vm2849
        %vm2853 = vmand %vm2839, %vm2850
        %vm2854 = vmand %vm2839, %vm2851
        %vm2855 = vmand %vm2839, %vm2852
        %vm2856 = vmand 1, %vm2850
        %vm2857 = vmand 1, %vm2851
        %vm2858 = vmand 1, %vm2852
        %vm2859 = vmand %vm2843, %vm2850
        %vm2860 = vmand %vm2843, %vm2851
        %vm2861 = vmand %vm2843, %vm2852
        %v2862 = vsel %vm2853, 1, 0
        %v2863 = vsel %vm2854, 1, 0
        %v2864 = vsel %vm2855, 1, 0
        %v2865 = vsel %vm2856, 1, 0
        %v2866 = vsel %vm2857, 1, 0
        %v2867 = vsel %vm2858, 1, 0
        %v2868 = vsel %vm2859, 1, 0
        %v2869 = vsel %vm2860, 1, 0
        %v2870 = vsel %vm2861, 1, 0
        %vm2871 = vcmp.eq.s32.totalorder %v2862, 1
        %vm2872 = vcmp.eq.s32.totalorder %v2863, 1
        %vm2873 = vcmp.eq.s32.totalorder %v2864, 1
        %vm2874 = vcmp.eq.s32.totalorder %v2865, 1
        %vm2875 = vcmp.eq.s32.totalorder %v2866, 1
        %vm2876 = vcmp.eq.s32.totalorder %v2867, 1
        %vm2877 = vcmp.eq.s32.totalorder %v2868, 1
        %vm2878 = vcmp.eq.s32.totalorder %v2869, 1
        %vm2879 = vcmp.eq.s32.totalorder %v2870, 1
        %v2880 = vsel %vm2871, %v2778, 0.0
        %v2881 = vsel %vm2872, %v2779, 0.0
        %v2882 = vsel %vm2873, %v2780, 0.0
        %v2883 = vsel %vm2874, %v2781, 0.0
        %v2884 = vsel %vm2875, %v2782, 0.0
        %v2885 = vsel %vm2876, %v2783, 0.0
        %v2886 = vsel %vm2874, %v2784, 0.0
        %v2887 = vsel %vm2875, %v2785, 0.0
        %v2888 = vsel %vm2876, %v2786, 0.0
        %v2889 = vsel %vm2874, %v2787, 0.0
        %v2890 = vsel %vm2875, %v2788, 0.0
        %v2891 = vsel %vm2876, %v2789, 0.0
        %v2892 = vsel %vm2874, %v2790, 0.0
        %v2893 = vsel %vm2875, %v2791, 0.0
        %v2894 = vsel %vm2876, %v2792, 0.0
        %v2895 = vsel %vm2874, %v2793, 0.0
        %v2896 = vsel %vm2875, %v2794, 0.0
        %v2897 = vsel %vm2876, %v2795, 0.0
        %v2898 = vsel %vm2874, %v2796, 0.0
        %v2899 = vsel %vm2875, %v2797, 0.0
        %v2900 = vsel %vm2876, %v2798, 0.0
        %v2901 = vsel %vm2874, %v2799, 0.0
        %v2902 = vsel %vm2875, %v2800, 0.0
        %v2903 = vsel %vm2876, %v2801, 0.0
        %v2904 = vsel %vm2874, %v2802, 0.0
        %v2905 = vsel %vm2875, %v2803, 0.0
        %v2906 = vsel %vm2876, %v2804, 0.0
        %v2907 = vsel %vm2874, %v2805, 0.0
        %v2908 = vsel %vm2875, %v2806, 0.0
        %v2909 = vsel %vm2876, %v2807, 0.0
        %v2910 = vsel %vm2874, %v2808, 0.0
        %v2911 = vsel %vm2875, %v2809, 0.0
        %v2912 = vsel %vm2876, %v2810, 0.0
        %v2913 = vsel %vm2874, %v2811, 0.0
        %v2914 = vsel %vm2875, %v2812, 0.0
        %v2915 = vsel %vm2876, %v2813, 0.0
        %v2916 = vsel %vm2874, %v2814, 0.0
        %v2917 = vsel %vm2875, %v2815, 0.0
        %v2918 = vsel %vm2876, %v2816, 0.0
        %v2919 = vsel %vm2874, %v2817, 0.0
        %v2920 = vsel %vm2875, %v2818, 0.0
        %v2921 = vsel %vm2876, %v2819, 0.0
        %v2922 = vsel %vm2874, %v2820, 0.0
        %v2923 = vsel %vm2875, %v2821, 0.0
        %v2924 = vsel %vm2876, %v2822, 0.0
        %v2925 = vsel %vm2874, %v2823, 0.0
        %v2926 = vsel %vm2875, %v2824, 0.0
        %v2927 = vsel %vm2876, %v2825, 0.0
        %v2928 = vsel %vm2874, %v2826, 0.0
        %v2929 = vsel %vm2875, %v2827, 0.0
        %v2930 = vsel %vm2876, %v2828, 0.0
        %v2931 = vsel %vm2877, %v2829, 0.0
        %v2932 = vsel %vm2878, %v2830, 0.0
        %v2933 = vsel %vm2879, %v2831, 0.0
        %2934 = vst [vmem:[%s183] sm:$0xff] %v2880
        %2935 = vst [vmem:[%s183 + $0x8] sm:$0xff] %v2881
        %2936 = vst [vmem:[%s183 + $0x10] sm:$0xff] %v2882
        %2937 = vst [vmem:[%s183 + $0x18] sm:$0xff] %v2883
        %2938 = vst [vmem:[%s183 + $0x20] sm:$0xff] %v2884
        %2939 = vst [vmem:[%s183 + $0x28] sm:$0xff] %v2885
        %2940 = vst [vmem:[%s183 + $0x30] sm:$0xff] %v2886
        %2941 = vst [vmem:[%s183 + $0x38] sm:$0xff] %v2887
        %2942 = vst [vmem:[%s183 + $0x40] sm:$0xff] %v2888
        %2943 = vst [vmem:[%s183 + $0x48] sm:$0xff] %v2889
        %2944 = vst [vmem:[%s183 + $0x50] sm:$0xff] %v2890
        %2945 = vst [vmem:[%s183 + $0x58] sm:$0xff] %v2891
        %2946 = vst [vmem:[%s183 + $0x60] sm:$0xff] %v2892
        %2947 = vst [vmem:[%s183 + $0x68] sm:$0xff] %v2893
        %2948 = vst [vmem:[%s183 + $0x70] sm:$0xff] %v2894
        %2949 = vst [vmem:[%s183 + $0x78] sm:$0xff] %v2895
        %2950 = vst [vmem:[%s183 + $0x80] sm:$0xff] %v2896
        %2951 = vst [vmem:[%s183 + $0x88] sm:$0xff] %v2897
        %2952 = vst [vmem:[%s183 + $0x90] sm:$0xff] %v2898
        %2953 = vst [vmem:[%s183 + $0x98] sm:$0xff] %v2899
        %2954 = vst [vmem:[%s183 + $0xa0] sm:$0xff] %v2900
        %2955 = vst [vmem:[%s183 + $0xa8] sm:$0xff] %v2901
        %2956 = vst [vmem:[%s183 + $0xb0] sm:$0xff] %v2902
        %2957 = vst [vmem:[%s183 + $0xb8] sm:$0xff] %v2903
        %2958 = vst [vmem:[%s183 + $0xc0] sm:$0xff] %v2904
        %2959 = vst [vmem:[%s183 + $0xc8] sm:$0xff] %v2905
        %2960 = vst [vmem:[%s183 + $0xd0] sm:$0xff] %v2906
        %2961 = vst [vmem:[%s183 + $0xd8] sm:$0xff] %v2907
        %2962 = vst [vmem:[%s183 + $0xe0] sm:$0xff] %v2908
        %2963 = vst [vmem:[%s183 + $0xe8] sm:$0xff] %v2909
        %2964 = vst [vmem:[%s183 + $0xf0] sm:$0xff] %v2910
        %2965 = vst [vmem:[%s183 + $0xf8] sm:$0xff] %v2911
        %2966 = vst [vmem:[%s183 + $0x100] sm:$0xff] %v2912
        %2967 = vst [vmem:[%s183 + $0x108] sm:$0xff] %v2913
        %2968 = vst [vmem:[%s183 + $0x110] sm:$0xff] %v2914
        %2969 = vst [vmem:[%s183 + $0x118] sm:$0xff] %v2915
        %2970 = vst [vmem:[%s183 + $0x120] sm:$0xff] %v2916
        %2971 = vst [vmem:[%s183 + $0x128] sm:$0xff] %v2917
        %2972 = vst [vmem:[%s183 + $0x130] sm:$0xff] %v2918
        %2973 = vst [vmem:[%s183 + $0x138] sm:$0xff] %v2919
        %2974 = vst [vmem:[%s183 + $0x140] sm:$0xff] %v2920
        %2975 = vst [vmem:[%s183 + $0x148] sm:$0xff] %v2921
        %2976 = vst [vmem:[%s183 + $0x150] sm:$0xff] %v2922
        %2977 = vst [vmem:[%s183 + $0x158] sm:$0xff] %v2923
        %2978 = vst [vmem:[%s183 + $0x160] sm:$0xff] %v2924
        %2979 = vst [vmem:[%s183 + $0x168] sm:$0xff] %v2925
        %2980 = vst [vmem:[%s183 + $0x170] sm:$0xff] %v2926
        %2981 = vst [vmem:[%s183 + $0x178] sm:$0xff] %v2927
        %2982 = vst [vmem:[%s183 + $0x180] sm:$0xff] %v2928
        %2983 = vst [vmem:[%s183 + $0x188] sm:$0xff] %v2929
        %2984 = vst [vmem:[%s183 + $0x190] sm:$0xff] %v2930
        %2985 = vst [vmem:[%s183 + $0x198] sm:$0xff] %v2931
        %2986 = vst [vmem:[%s183 + $0x1a0] sm:$0xff] %v2932
        %2987 = vst [vmem:[%s183 + $0x1a8] sm:$0xff] %v2933
        %vm3036 = vcmask 1046528
        %v3037 = vrot.slane %v2883, 1
        %v3038 = vrot.slane %v2884, 1
        %v3039 = vsel %vm3036, %v3037, %v3038
        %v3040 = vrot.slane %v2885, 1
        %v3041 = vsel %vm3036, %v3038, %v3040
        %v3042 = vrot.slane %v2886, 1
        %v3043 = vrot.slane %v2887, 1
        %v3044 = vsel %vm3036, %v3042, %v3043
        %v3045 = vrot.slane %v2888, 1
        %v3046 = vsel %vm3036, %v3043, %v3045
        %v3047 = vrot.slane %v2889, 1
        %v3048 = vrot.slane %v2890, 1
        %v3049 = vsel %vm3036, %v3047, %v3048
        %v3050 = vrot.slane %v2891, 1
        %v3051 = vsel %vm3036, %v3048, %v3050
        %v3052 = vrot.slane %v2892, 1
        %v3053 = vrot.slane %v2893, 1
        %v3054 = vsel %vm3036, %v3052, %v3053
        %v3055 = vrot.slane %v2894, 1
        %v3056 = vsel %vm3036, %v3053, %v3055
        %v3057 = vrot.slane %v2895, 1
        %v3058 = vrot.slane %v2896, 1
        %v3059 = vsel %vm3036, %v3057, %v3058
        %v3060 = vrot.slane %v2897, 1
        %v3061 = vsel %vm3036, %v3058, %v3060
        %v3062 = vrot.slane %v2898, 1
        %v3063 = vrot.slane %v2899, 1
        %v3064 = vsel %vm3036, %v3062, %v3063
        %v3065 = vrot.slane %v2900, 1
        %v3066 = vsel %vm3036, %v3063, %v3065
        %v3067 = vrot.slane %v2901, 1
        %v3068 = vrot.slane %v2902, 1
        %v3069 = vsel %vm3036, %v3067, %v3068
        %v3070 = vrot.slane %v2903, 1
        %v3071 = vsel %vm3036, %v3068, %v3070
        %v3072 = vrot.slane %v2904, 1
        %v3073 = vrot.slane %v2905, 1
        %v3074 = vsel %vm3036, %v3072, %v3073
        %v3075 = vrot.slane %v2906, 1
        %v3076 = vsel %vm3036, %v3073, %v3075
        %v3077 = vrot.slane %v2907, 1
        %v3078 = vrot.slane %v2908, 1
        %v3079 = vsel %vm3036, %v3077, %v3078
        %v3080 = vrot.slane %v2909, 1
        %v3081 = vsel %vm3036, %v3078, %v3080
        %v3082 = vrot.slane %v2910, 1
        %v3083 = vrot.slane %v2911, 1
        %v3084 = vsel %vm3036, %v3082, %v3083
        %v3085 = vrot.slane %v2912, 1
        %v3086 = vsel %vm3036, %v3083, %v3085
        %v3087 = vrot.slane %v2913, 1
        %v3088 = vrot.slane %v2914, 1
        %v3089 = vsel %vm3036, %v3087, %v3088
        %v3090 = vrot.slane %v2915, 1
        %v3091 = vsel %vm3036, %v3088, %v3090
        %v3092 = vrot.slane %v2916, 1
        %v3093 = vrot.slane %v2917, 1
        %v3094 = vsel %vm3036, %v3092, %v3093
        %v3095 = vrot.slane %v2918, 1
        %v3096 = vsel %vm3036, %v3093, %v3095
        %v3097 = vrot.slane %v2919, 1
        %v3098 = vrot.slane %v2920, 1
        %v3099 = vsel %vm3036, %v3097, %v3098
        %v3100 = vrot.slane %v2921, 1
        %v3101 = vsel %vm3036, %v3098, %v3100
        %v3102 = vrot.slane %v2922, 1
        %v3103 = vrot.slane %v2923, 1
        %v3104 = vsel %vm3036, %v3102, %v3103
        %v3105 = vrot.slane %v2924, 1
        %v3106 = vsel %vm3036, %v3103, %v3105
        %v3107 = vrot.slane %v2925, 1
        %v3108 = vrot.slane %v2926, 1
        %v3109 = vsel %vm3036, %v3107, %v3108
        %v3110 = vrot.slane %v2927, 1
        %v3111 = vsel %vm3036, %v3108, %v3110
        %v3112 = vrot.slane %v2928, 1
        %v3113 = vrot.slane %v2929, 1
        %v3114 = vsel %vm3036, %v3112, %v3113
        %v3115 = vrot.slane %v2930, 1
        %v3116 = vsel %vm3036, %v3113, %v3115
        %v3149 = vadd.f32 %v3039, %v3041
        %v3150 = vadd.f32 %v3149, %v3044
        %v3151 = vadd.f32 %v3150, %v3046
        %v3152 = vadd.f32 %v3151, %v3049
        %v3153 = vadd.f32 %v3152, %v3051
        %v3154 = vadd.f32 %v3153, %v3054
        %v3155 = vadd.f32 %v3154, %v3056
        %v3156 = vadd.f32 %v3155, %v3059
        %v3157 = vadd.f32 %v3156, %v3061
        %v3158 = vadd.f32 %v3157, %v3064
        %v3159 = vadd.f32 %v3158, %v3066
        %v3160 = vadd.f32 %v3159, %v3069
        %v3161 = vadd.f32 %v3160, %v3071
        %v3162 = vadd.f32 %v3161, %v3074
        %v3163 = vadd.f32 %v3162, %v3076
        %v3164 = vadd.f32 %v3163, %v3079
        %v3165 = vadd.f32 %v3164, %v3081
        %v3166 = vadd.f32 %v3165, %v3084
        %v3167 = vadd.f32 %v3166, %v3086
        %v3168 = vadd.f32 %v3167, %v3089
        %v3169 = vadd.f32 %v3168, %v3091
        %v3170 = vadd.f32 %v3169, %v3094
        %v3171 = vadd.f32 %v3170, %v3096
        %v3172 = vadd.f32 %v3171, %v3099
        %v3173 = vadd.f32 %v3172, %v3101
        %v3174 = vadd.f32 %v3173, %v3104
        %v3175 = vadd.f32 %v3174, %v3106
        %v3176 = vadd.f32 %v3175, %v3109
        %v3177 = vadd.f32 %v3176, %v3111
        %v3178 = vadd.f32 %v3177, %v3114
        %v3179 = vadd.f32 %v3178, %v3116
        %v3180 = vrot.slane %v3179, 4
        %v3181 = vadd.f32 %v3179, %v3180
        %v3182 = vrot.slane %v3181, 2
        %v3183 = vadd.f32 %v3181, %v3182
        %v3184 = vrot.slane %v3183, 1
        %v3185 = vadd.f32 %v3183, %v3184
        %3186 = vst [vmem:[%s190] sm:$0x1] %v3185
        %v3187 = vmul.f32 %v2883, %v2883
        %v3188 = vmul.f32 %v2884, %v2884
        %v3189 = vmul.f32 %v2885, %v2885
        %v3190 = vmul.f32 %v2886, %v2886
        %v3191 = vmul.f32 %v2887, %v2887
        %v3192 = vmul.f32 %v2888, %v2888
        %v3193 = vmul.f32 %v2889, %v2889
        %v3194 = vmul.f32 %v2890, %v2890
        %v3195 = vmul.f32 %v2891, %v2891
        %v3196 = vmul.f32 %v2892, %v2892
        %v3197 = vmul.f32 %v2893, %v2893
        %v3198 = vmul.f32 %v2894, %v2894
        %v3199 = vmul.f32 %v2895, %v2895
        %v3200 = vmul.f32 %v2896, %v2896
        %v3201 = vmul.f32 %v2897, %v2897
        %v3202 = vmul.f32 %v2898, %v2898
        %v3203 = vmul.f32 %v2899, %v2899
        %v3204 = vmul.f32 %v2900, %v2900
        %v3205 = vmul.f32 %v2901, %v2901
        %v3206 = vmul.f32 %v2902, %v2902
        %v3207 = vmul.f32 %v2903, %v2903
        %v3208 = vmul.f32 %v2904, %v2904
        %v3209 = vmul.f32 %v2905, %v2905
        %v3210 = vmul.f32 %v2906, %v2906
        %v3211 = vmul.f32 %v2907, %v2907
        %v3212 = vmul.f32 %v2908, %v2908
        %v3213 = vmul.f32 %v2909, %v2909
        %v3214 = vmul.f32 %v2910, %v2910
        %v3215 = vmul.f32 %v2911, %v2911
        %v3216 = vmul.f32 %v2912, %v2912
        %v3217 = vmul.f32 %v2913, %v2913
        %v3218 = vmul.f32 %v2914, %v2914
        %v3219 = vmul.f32 %v2915, %v2915
        %v3220 = vmul.f32 %v2916, %v2916
        %v3221 = vmul.f32 %v2917, %v2917
        %v3222 = vmul.f32 %v2918, %v2918
        %v3223 = vmul.f32 %v2919, %v2919
        %v3224 = vmul.f32 %v2920, %v2920
        %v3225 = vmul.f32 %v2921, %v2921
        %v3226 = vmul.f32 %v2922, %v2922
        %v3227 = vmul.f32 %v2923, %v2923
        %v3228 = vmul.f32 %v2924, %v2924
        %v3229 = vmul.f32 %v2925, %v2925
        %v3230 = vmul.f32 %v2926, %v2926
        %v3231 = vmul.f32 %v2927, %v2927
        %v3232 = vmul.f32 %v2928, %v2928
        %v3233 = vmul.f32 %v2929, %v2929
        %v3234 = vmul.f32 %v2930, %v2930
        %v3283 = vrot.slane %v3187, 1
        %v3284 = vrot.slane %v3188, 1
        %v3285 = vsel %vm3036, %v3283, %v3284
        %v3286 = vrot.slane %v3189, 1
        %v3287 = vsel %vm3036, %v3284, %v3286
        %v3288 = vrot.slane %v3190, 1
        %v3289 = vrot.slane %v3191, 1
        %v3290 = vsel %vm3036, %v3288, %v3289
        %v3291 = vrot.slane %v3192, 1
        %v3292 = vsel %vm3036, %v3289, %v3291
        %v3293 = vrot.slane %v3193, 1
        %v3294 = vrot.slane %v3194, 1
        %v3295 = vsel %vm3036, %v3293, %v3294
        %v3296 = vrot.slane %v3195, 1
        %v3297 = vsel %vm3036, %v3294, %v3296
        %v3298 = vrot.slane %v3196, 1
        %v3299 = vrot.slane %v3197, 1
        %v3300 = vsel %vm3036, %v3298, %v3299
        %v3301 = vrot.slane %v3198, 1
        %v3302 = vsel %vm3036, %v3299, %v3301
        %v3303 = vrot.slane %v3199, 1
        %v3304 = vrot.slane %v3200, 1
        %v3305 = vsel %vm3036, %v3303, %v3304
        %v3306 = vrot.slane %v3201, 1
        %v3307 = vsel %vm3036, %v3304, %v3306
        %v3308 = vrot.slane %v3202, 1
        %v3309 = vrot.slane %v3203, 1
        %v3310 = vsel %vm3036, %v3308, %v3309
        %v3311 = vrot.slane %v3204, 1
        %v3312 = vsel %vm3036, %v3309, %v3311
        %v3313 = vrot.slane %v3205, 1
        %v3314 = vrot.slane %v3206, 1
        %v3315 = vsel %vm3036, %v3313, %v3314
        %v3316 = vrot.slane %v3207, 1
        %v3317 = vsel %vm3036, %v3314, %v3316
        %v3318 = vrot.slane %v3208, 1
        %v3319 = vrot.slane %v3209, 1
        %v3320 = vsel %vm3036, %v3318, %v3319
        %v3321 = vrot.slane %v3210, 1
        %v3322 = vsel %vm3036, %v3319, %v3321
        %v3323 = vrot.slane %v3211, 1
        %v3324 = vrot.slane %v3212, 1
        %v3325 = vsel %vm3036, %v3323, %v3324
        %v3326 = vrot.slane %v3213, 1
        %v3327 = vsel %vm3036, %v3324, %v3326
        %v3328 = vrot.slane %v3214, 1
        %v3329 = vrot.slane %v3215, 1
        %v3330 = vsel %vm3036, %v3328, %v3329
        %v3331 = vrot.slane %v3216, 1
        %v3332 = vsel %vm3036, %v3329, %v3331
        %v3333 = vrot.slane %v3217, 1
        %v3334 = vrot.slane %v3218, 1
        %v3335 = vsel %vm3036, %v3333, %v3334
        %v3336 = vrot.slane %v3219, 1
        %v3337 = vsel %vm3036, %v3334, %v3336
        %v3338 = vrot.slane %v3220, 1
        %v3339 = vrot.slane %v3221, 1
        %v3340 = vsel %vm3036, %v3338, %v3339
        %v3341 = vrot.slane %v3222, 1
        %v3342 = vsel %vm3036, %v3339, %v3341
        %v3343 = vrot.slane %v3223, 1
        %v3344 = vrot.slane %v3224, 1
        %v3345 = vsel %vm3036, %v3343, %v3344
        %v3346 = vrot.slane %v3225, 1
        %v3347 = vsel %vm3036, %v3344, %v3346
        %v3348 = vrot.slane %v3226, 1
        %v3349 = vrot.slane %v3227, 1
        %v3350 = vsel %vm3036, %v3348, %v3349
        %v3351 = vrot.slane %v3228, 1
        %v3352 = vsel %vm3036, %v3349, %v3351
        %v3353 = vrot.slane %v3229, 1
        %v3354 = vrot.slane %v3230, 1
        %v3355 = vsel %vm3036, %v3353, %v3354
        %v3356 = vrot.slane %v3231, 1
        %v3357 = vsel %vm3036, %v3354, %v3356
        %v3358 = vrot.slane %v3232, 1
        %v3359 = vrot.slane %v3233, 1
        %v3360 = vsel %vm3036, %v3358, %v3359
        %v3361 = vrot.slane %v3234, 1
        %v3362 = vsel %vm3036, %v3359, %v3361
        %v3395 = vadd.f32 %v3285, %v3287
        %v3396 = vadd.f32 %v3395, %v3290
        %v3397 = vadd.f32 %v3396, %v3292
        %v3398 = vadd.f32 %v3397, %v3295
        %v3399 = vadd.f32 %v3398, %v3297
        %v3400 = vadd.f32 %v3399, %v3300
        %v3401 = vadd.f32 %v3400, %v3302
        %v3402 = vadd.f32 %v3401, %v3305
        %v3403 = vadd.f32 %v3402, %v3307
        %v3404 = vadd.f32 %v3403, %v3310
        %v3405 = vadd.f32 %v3404, %v3312
        %v3406 = vadd.f32 %v3405, %v3315
        %v3407 = vadd.f32 %v3406, %v3317
        %v3408 = vadd.f32 %v3407, %v3320
        %v3409 = vadd.f32 %v3408, %v3322
        %v3410 = vadd.f32 %v3409, %v3325
        %v3411 = vadd.f32 %v3410, %v3327
        %v3412 = vadd.f32 %v3411, %v3330
        %v3413 = vadd.f32 %v3412, %v3332
        %v3414 = vadd.f32 %v3413, %v3335
        %v3415 = vadd.f32 %v3414, %v3337
        %v3416 = vadd.f32 %v3415, %v3340
        %v3417 = vadd.f32 %v3416, %v3342
        %v3418 = vadd.f32 %v3417, %v3345
        %v3419 = vadd.f32 %v3418, %v3347
        %v3420 = vadd.f32 %v3419, %v3350
        %v3421 = vadd.f32 %v3420, %v3352
        %v3422 = vadd.f32 %v3421, %v3355
        %v3423 = vadd.f32 %v3422, %v3357
        %v3424 = vadd.f32 %v3423, %v3360
        %v3425 = vadd.f32 %v3424, %v3362
        %v3426 = vrot.slane %v3425, 4
        %v3427 = vadd.f32 %v3425, %v3426
        %v3428 = vrot.slane %v3427, 2
        %v3429 = vadd.f32 %v3427, %v3428
        %v3430 = vrot.slane %v3429, 1
        %v3431 = vadd.f32 %v3429, %v3430
        %3432 = vst [vmem:[%s190 + $0x1] sm:$0x1] %v3431
        %s3433 = sand.u32 %s90, 1
        %s3434 = scalar_lea.sflag [#allocation3], %s3433
        %s3435 = sand.u32 %s90, 1
        %s3436 = smul.addr %s3435, 432
        %s3437 = scalar_lea.vmem [#allocation2], %s3436
        %s3438 = sand.u32 %s118, 1
        %s3439 = scalar_lea.sflag [#allocation5], %s3438
        %s3440 = sand.u32 %s118, 1
        %s3441 = smul.addr %s3440, 2
        %s3442 = scalar_lea.vmem [#allocation4], %s3441
        // Predicated region
        $region29: #{tpu_custom_call.1} parent=27 // pred_check
          %p3443 = pneg %p100
        $region30: #{tpu_custom_call.1} parent=27 // pred_check_branch
          %3445 = sbr.rel (%p3443) target = $region32
        $region31: #{tpu_custom_call.1} parent=27 // pred_region
          %3447 = vsyncadd %s3434, 0
          %s3448 = smul.addr %s26, 54
          %s3449 = smul.addr %s25, 54
          %s3450 = sadd.s32 %s3448, %s3449
          %s3451 = smul.addr %s3450, 8
          %s3452 = scalar_lea.hbm %s2, %s3451
          %s3453 = sshll.u32 %s3437, 4
          %s3454 = int_to_ptr.vmem [resolvable:$true] %s3453
          %s3455 = sshll.u32 %s3452, 4
          %s3456 = int_to_ptr.hbm [resolvable:$true] %s3455
          %3461 = dma.vmem_to_hbm [thread:$0]  %s3454, 6912, %s3456, %s3434, 128, 128, 8
        $region32: #{tpu_custom_call.1} parent=27 // pred_fallthru
          _
        // Predicated region
        $region33: #{tpu_custom_call.1} parent=27 // pred_check
          %p3462 = pneg %p128
        $region34: #{tpu_custom_call.1} parent=27 // pred_check_branch
          %3464 = sbr.rel (%p3462) target = $region36
        $region35: #{tpu_custom_call.1} parent=27 // pred_region
          %3466 = vsyncadd %s3439, 0
          %s3467 = sadd.s32 %s26, %s25
          %s3468 = smul.addr %s3467, 2
          %s3469 = scalar_lea.hbm %s3, %s3468
          %s3471 = sshll.u32 %s3442, 4
          %s3472 = int_to_ptr.vmem [resolvable:$true] %s3471
          %s3473 = sshll.u32 %s3469, 4
          %s3474 = int_to_ptr.hbm [resolvable:$true] %s3473
          %3476 = dma.vmem_to_hbm [thread:$0]  %s3472, 32, %s3474, %s3439
        $region36: #{tpu_custom_call.1} parent=27 // pred_fallthru
          _
      $region28: #{tpu_custom_call.1} parent=5 // pred_fallthru
        _
      %p3477 = scmp.le.s32.totalorder 2, %s16
      // Predicated region
      $region37: #{tpu_custom_call.1} parent=5 // pred_check
        %p3478 = pneg %p3477
      $region38: #{tpu_custom_call.1} parent=5 // pred_check_branch
        %3480 = sbr.rel (%p3478) target = $region40
      $region39: #{tpu_custom_call.1} parent=5 // pred_region
        %s3481 = ssub.s32 %s16, 2
        // Predicated region
        $region41: #{tpu_custom_call.1} parent=39 // pred_check
          %p3482 = pneg %p106
        $region42: #{tpu_custom_call.1} parent=39 // pred_check_branch
          %3484 = sbr.rel (%p3482) target = $region44
        $region43: #{tpu_custom_call.1} parent=39 // pred_region
          %s3485 = sand.u32 %s91, 1
          %s3486 = scalar_lea.sflag [#allocation3], %s3485
          %s3487 = sand.u32 %s91, 1
          %s3488 = smul.addr %s3487, 432
          %s3489 = scalar_lea.vmem [#allocation2], %s3488
          %3491 = dma.done %s3486, 6912
        $region44: #{tpu_custom_call.1} parent=39 // pred_fallthru
          _
        // Predicated region
        $region45: #{tpu_custom_call.1} parent=39 // pred_check
          %p3492 = pneg %p134
        $region46: #{tpu_custom_call.1} parent=39 // pred_check_branch
          %3494 = sbr.rel (%p3492) target = $region48
        $region47: #{tpu_custom_call.1} parent=39 // pred_region
          %s3495 = sand.u32 %s119, 1
          %s3496 = scalar_lea.sflag [#allocation5], %s3495
          %s3497 = sand.u32 %s119, 1
          %s3498 = smul.addr %s3497, 2
          %s3499 = scalar_lea.vmem [#allocation4], %s3498
          %3501 = dma.done %s3496, 32
        $region48: #{tpu_custom_call.1} parent=39 // pred_fallthru
          _
      $region40: #{tpu_custom_call.1} parent=5 // pred_fallthru
        _
    $region6: #{tpu_custom_call.1} parent=1 // loop_footer
      %s20 = sadd.s32 1, %s16
    $region7: #{tpu_custom_call.1} parent=1 // loop_footer_branch
      %15 = sbr.rel target = $region3
    $region8: #{tpu_custom_call.1} parent=1 // loop_exit
      _
    %3502 = vsyncpa [#allocation3], 1
    %s3503 = scalar_lea.sflag [#allocation3], 1
    %3504 = vsyncpa %s3503, 1
    %3505 = vsyncpa [#allocation5], 1
    %s3506 = scalar_lea.sflag [#allocation5], 1
    %3507 = vsyncpa %s3506, 1

</llo_original>
